<compile_context>
chip_gen: v7x
topology: tpu7x:2x2x1
jax: 0.10.0
libtpu: 0.0.40
codegen_flags: <defaults>
</compile_context>

<pallas_src>
import functools

import jax
import jax.numpy as jnp
from jax.experimental import pallas as pl
from jax.experimental.pallas import tpu as pltpu

IMAGENET_MEAN = jnp.array([0.485, 0.456, 0.406], jnp.float32)
IMAGENET_STD = jnp.array([0.229, 0.224, 0.225], jnp.float32)
BN_EPS = 1e-5


@functools.lru_cache(maxsize=None)
def _vmem_limit():
    """Generation-aware VMEM request: ~75% of per-core capacity, capped at
    96 MiB (v7x: 64 MiB physical -> 48 MiB; v5e/v6e: 128 MiB -> 96 MiB)."""
    cap = 64 * 1024 * 1024
    try:
        cap = int(getattr(pltpu.get_tpu_info(), "vmem_capacity_bytes", cap))
    except Exception:
        pass
    return min((cap * 3) // 4, 96 * 1024 * 1024)


def _pick_tile(h, cap, even=False):
    """Largest row tile <= cap that divides h (and is even when pooling)."""
    for th in range(max(2, min(h, cap)), 1, -1):
        if h % th == 0 and (not even or th % 2 == 0):
            return th
    return h


# ----------------------------- Pallas kernels -------------------------------

def _conv3x3_pair(xa, xb, w_ref, th, wd, cin):
    """3x3/stride-1 conv of two (th+2, wd+2, cin) bf16 windows against packed
    weights w_ref (3, 3*cin, cout).  The two streams are stacked along rows so
    each dy tap issues ONE MXU matmul with M=2*th*wd and K=3*cin (weights stay
    resident for both streams).  Returns two (th*wd, cout) f32 accumulators."""
    m = th * wd
    acc = None
    for dy in range(3):
        pa = jnp.concatenate(
            [xa[dy:dy + th, dx:dx + wd, :] for dx in range(3)],
            axis=-1).reshape(m, 3 * cin)
        pb = jnp.concatenate(
            [xb[dy:dy + th, dx:dx + wd, :] for dx in range(3)],
            axis=-1).reshape(m, 3 * cin)
        part = jnp.dot(jnp.concatenate([pa, pb], axis=0), w_ref[dy],
                       preferred_element_type=jnp.float32)
        acc = part if acc is None else acc + part
    return acc[:m], acc[m:]


def _dense_bn_relu_kernel(a_ref, b_ref, w_ref, scale_ref, shift_ref,
                          oa_ref, ob_ref, *, th, wd):
    """Layer 0: pre-im2col'ed 3x3 conv as one dense MXU matmul (both streams
    stacked along rows) + folded Normalize/bias/BN scale-shift + ReLU."""
    k = a_ref.shape[-1]
    cout = oa_ref.shape[-1]
    m = th * wd
    patch = jnp.concatenate(
        [a_ref[0].reshape(m, k), b_ref[0].reshape(m, k)], axis=0)
    acc = jnp.dot(patch, w_ref[...], preferred_element_type=jnp.float32)
    y = jnp.maximum(acc * scale_ref[0] + shift_ref[0], 0.0)
    oa_ref[0] = y[:m].reshape(th, wd, cout).astype(oa_ref.dtype)
    ob_ref[0] = y[m:].reshape(th, wd, cout).astype(ob_ref.dtype)


def _conv_bn_relu_kernel(a0_ref, a1_ref, b0_ref, b1_ref, w_ref, scale_ref,
                         shift_ref, oa_ref, ob_ref, *, th, wd):
    """Non-hooked 3x3 conv + eval-BN + ReLU for one (sample, row-tile) pair.
    a0/b0 hold padded rows [r*th, r*th+th); a1/b1 hold the next th rows and
    contribute the 2-row bottom halo."""
    cin = a0_ref.shape[-1]
    cout = oa_ref.shape[-1]
    xa = jnp.concatenate([a0_ref[0], a1_ref[0, 0:2]], axis=0)
    xb = jnp.concatenate([b0_ref[0], b1_ref[0, 0:2]], axis=0)
    fa, fb = _conv3x3_pair(xa, xb, w_ref, th, wd, cin)
    scale = scale_ref[0]
    shift = shift_ref[0]
    oa_ref[0] = jnp.maximum(fa * scale + shift, 0.0).reshape(
        th, wd, cout).astype(oa_ref.dtype)
    ob_ref[0] = jnp.maximum(fb * scale + shift, 0.0).reshape(
        th, wd, cout).astype(ob_ref.dtype)


def _conv_bn_loss_kernel(a0_ref, a1_ref, b0_ref, b1_ref, w_ref, scale_ref,
                         shift_ref, *rest, th, wd, emit_pool):
    """Hooked layers: 3x3 conv + eval-BN for both streams of one
    (sample, row-tile), fused L1 partial on the pre-ReLU features; for hook 0
    also the fused ReLU + 2x2/stride-2 max-pool output that feeds the next
    conv (the hooked feature itself never touches HBM)."""
    if emit_pool:
        oa_ref, ob_ref, loss_ref, pool_sc = rest
    else:
        (loss_ref,) = rest
    cin = a0_ref.shape[-1]
    cout = w_ref.shape[-1]
    xa = jnp.concatenate([a0_ref[0], a1_ref[0, 0:2]], axis=0)
    xb = jnp.concatenate([b0_ref[0], b1_ref[0, 0:2]], axis=0)
    fa, fb = _conv3x3_pair(xa, xb, w_ref, th, wd, cin)
    scale = scale_ref[0]
    shift = shift_ref[0]
    fa = fa * scale + shift
    fb = fb * scale + shift

    # Per-(sample, row-tile) L1 partial sum, reduced while both features sit
    # in vregs (per-tile partials also improve the f32 accumulation).
    col = jnp.sum(jnp.abs(fa - fb), axis=0, keepdims=True)          # (1, cout)
    loss_ref[...] = jnp.sum(col, axis=1, keepdims=True).reshape(1, 1, 1, 1)

    if emit_pool:
        def relu_pool(f, o_ref):
            y = jnp.maximum(f, 0.0).reshape(th, wd, cout)
            # pool row pairs (leading-dim reshape, layout-free) ...
            pool_sc[...] = jnp.max(y.reshape(th // 2, 2, wd, cout), axis=1)
            # ... then column pairs via strided sublane loads.
            even = pool_sc[:, pl.ds(0, wd // 2, 2), :]
            odd = pool_sc[:, pl.ds(1, wd // 2, 2), :]
            o_ref[0] = jnp.maximum(even, odd).astype(o_ref.dtype)
        relu_pool(fa, oa_ref)
        relu_pool(fb, ob_ref)


# ----------------------------- kernel wrappers -------------------------------

def _halo_in_specs(th, wp, cin):
    blk0 = pl.BlockSpec((1, th, wp, cin), lambda j, r: (j, r, 0, 0))
    blk1 = pl.BlockSpec((1, th, wp, cin), lambda j, r: (j, r + 1, 0, 0))
    return blk0, blk1


def dense_bn_relu_pair(xa, xb, w, scale, shift, *, th):
    """Layer 0 over im2col'ed inputs: (N, H, W, 9*Cin) -> (N, H, W, Cout)."""
    n, h, wd, k = xa.shape
    cout = w.shape[-1]
    t = h // th
    kernel = functools.partial(_dense_bn_relu_kernel, th=th, wd=wd)
    out_sd = jax.ShapeDtypeStruct((n, h, wd, cout), jnp.bfloat16)
    x_spec = pl.BlockSpec((1, th, wd, k), lambda j, r: (j, r, 0, 0))
    o_spec = pl.BlockSpec((1, th, wd, cout), lambda j, r: (j, r, 0, 0))
    return pl.pallas_call(
        kernel,
        out_shape=(out_sd, out_sd),
        grid=(n, t),
        in_specs=[
            x_spec, x_spec,
            pl.BlockSpec((k, cout), lambda j, r: (0, 0)),
            pl.BlockSpec((1, cout), lambda j, r: (0, 0)),
            pl.BlockSpec((1, cout), lambda j, r: (0, 0)),
        ],
        out_specs=(o_spec, o_spec),
        compiler_params=pltpu.CompilerParams(
            dimension_semantics=("parallel", "parallel"),
            vmem_limit_bytes=_vmem_limit()),
    )(xa, xb, w, scale, shift)


def conv_bn_relu_pair(xa_p, xb_p, w, scale, shift, *, th, out_h):
    """Non-hooked conv layer on row-tile-padded inputs (N, Hp, W+2, Cin) ->
    (N, out_h, W, Cout)."""
    n, hp, wp, cin = xa_p.shape
    wd = wp - 2
    cout = w.shape[-1]
    t = out_h // th
    kernel = functools.partial(_conv_bn_relu_kernel, th=th, wd=wd)
    blk0, blk1 = _halo_in_specs(th, wp, cin)
    out_sd = jax.ShapeDtypeStruct((n, out_h, wd, cout), jnp.bfloat16)
    o_spec = pl.BlockSpec((1, th, wd, cout), lambda j, r: (j, r, 0, 0))
    return pl.pallas_call(
        kernel,
        out_shape=(out_sd, out_sd),
        grid=(n, t),
        in_specs=[
            blk0, blk1, blk0, blk1,
            pl.BlockSpec((3, 3 * cin, cout), lambda j, r: (0, 0, 0)),
            pl.BlockSpec((1, cout), lambda j, r: (0, 0)),
            pl.BlockSpec((1, cout), lambda j, r: (0, 0)),
        ],
        out_specs=(o_spec, o_spec),
        compiler_params=pltpu.CompilerParams(
            dimension_semantics=("parallel", "parallel"),
            vmem_limit_bytes=_vmem_limit()),
    )(xa_p, xa_p, xb_p, xb_p, w, scale, shift)


def conv_bn_loss_pair(xa_p, xb_p, w, scale, shift, *, th, out_h, emit_pool):
    """Hooked conv layer: per-(sample, row-tile) L1 partial sums of the
    pre-ReLU BN features and, when emit_pool, the fused ReLU+maxpool output."""
    n, hp, wp, cin = xa_p.shape
    wd = wp - 2
    cout = w.shape[-1]
    t = out_h // th
    kernel = functools.partial(_conv_bn_loss_kernel, th=th, wd=wd,
                               emit_pool=emit_pool)
    blk0, blk1 = _halo_in_specs(th, wp, cin)
    loss_sd = jax.ShapeDtypeStruct((n, t, 1, 1), jnp.float32)
    loss_spec = pl.BlockSpec((1, 1, 1, 1), lambda j, r: (j, r, 0, 0))
    if emit_pool:
        pool_sd = jax.ShapeDtypeStruct((n, out_h // 2, wd // 2, cout),
                                       jnp.bfloat16)
        pool_spec = pl.BlockSpec((1, th // 2, wd // 2, cout),
                                 lambda j, r: (j, r, 0, 0))
        out_shape = (pool_sd, pool_sd, loss_sd)
        out_specs = (pool_spec, pool_spec, loss_spec)
        scratch = [pltpu.VMEM((th // 2, wd, cout), jnp.float32)]
    else:
        out_shape = loss_sd
        out_specs = loss_spec
        scratch = []
    return pl.pallas_call(
        kernel,
        out_shape=out_shape,
        grid=(n, t),
        in_specs=[
            blk0, blk1, blk0, blk1,
            pl.BlockSpec((3, 3 * cin, cout), lambda j, r: (0, 0, 0)),
            pl.BlockSpec((1, cout), lambda j, r: (0, 0)),
            pl.BlockSpec((1, cout), lambda j, r: (0, 0)),
        ],
        out_specs=out_specs,
        scratch_shapes=scratch,
        compiler_params=pltpu.CompilerParams(
            dimension_semantics=("parallel", "parallel"),
            vmem_limit_bytes=_vmem_limit()),
    )(xa_p, xa_p, xb_p, xb_p, w, scale, shift)


# ------------------------------ JAX glue -------------------------------------

def _pad_hw_mean(x, mean_c):
    """+1 spatial pad with a per-channel constant (layer-0 Normalize fold:
    mean-valued border keeps the folded conv exact at the edges)."""
    n, h, wd, c = x.shape
    base = jnp.broadcast_to(mean_c.astype(x.dtype).reshape(1, 1, 1, c),
                            (n, h + 2, wd + 2, c))
    return jax.lax.dynamic_update_slice(base, x, (0, 1, 1, 0))


def _pad_for_rowtiles(x, th):
    """(N, H, W, C) -> (N, (H//th + 1)*th, W+2, C): zero border, interior at
    rows [1, H+1) / cols [1, W+1).  The extra bottom zero rows keep the
    (r, r+1) halo block reads of the row-tiled consumers in bounds."""
    n, h, wd, c = x.shape
    hp = (h // th + 1) * th
    return jnp.pad(x, ((0, 0), (1, hp - h - 1), (1, 1), (0, 0)))


def _im2col3x3(x_p):
    """(N, H+2, W+2, C) -> (N, H, W, 9*C), taps in (dy, dx, c) order."""
    n, hp, wp, c = x_p.shape
    h, wd = hp - 2, wp - 2
    taps = [x_p[:, dy:dy + h, dx:dx + wd, :]
            for dy in range(3) for dx in range(3)]
    return jnp.concatenate(taps, axis=-1)


def _maxpool2x2(x):
    """Pure-JAX 2x2/stride-2 max-pool (reference path only; the kernel path
    fuses the pool into the hook-0 conv epilogue)."""
    n, h, w, c = x.shape
    return x.reshape(n, h // 2, 2, w // 2, 2, c).max(axis=(2, 4))


def init_vgg_params(key):
    """Deterministic synthetic raw parameters (conv + eval BatchNorm) for the
    VGG16_bn prefix used by blocks=[0, 1]."""
    layer_dims = [(3, 64), (64, 64), (64, 128), (128, 128)]
    params = []
    for cin, cout in layer_dims:
        key, kw, kb, kg, kbe, km, kv = jax.random.split(key, 7)
        w = jax.random.normal(kw, (3, 3, cin, cout), jnp.float32)
        w = w * (1.0 / jnp.sqrt(9.0 * cin))
        params.append(dict(
            w=w,
            bias=0.05 * jax.random.normal(kb, (cout,), jnp.float32),
            gamma=jax.random.uniform(kg, (cout,), jnp.float32, 0.5, 1.5),
            beta=0.1 * jax.random.normal(kbe, (cout,), jnp.float32),
            mean=0.1 * jax.random.normal(km, (cout,), jnp.float32),
            var=jax.random.uniform(kv, (cout,), jnp.float32, 0.5, 1.5),
        ))
    return params


def prepare_kernel_params(raw_params):
    """Fold conv bias + eval BatchNorm into per-channel (scale, shift), fold
    the ImageNet Normalize into layer 0, pack weights for deep-K matmuls and
    cast the MXU operands to bf16."""
    out = []
    for li, p in enumerate(raw_params):
        w = p["w"]                                   # (3, 3, cin, cout) f32
        cin, cout = w.shape[2], w.shape[3]
        scale = p["gamma"] / jnp.sqrt(p["var"] + BN_EPS)
        if li == 0:
            # conv((x-mean)/std, w) == conv(pad_with_mean(x), w/std) + c
            w = w / IMAGENET_STD.reshape(1, 1, 3, 1)
            c = p["bias"] - jnp.einsum("yxic,i->c", w, IMAGENET_MEAN)
            shift = p["beta"] + scale * (c - p["mean"])
            w_k = w.reshape(9 * cin, cout).astype(jnp.bfloat16)   # im2col'ed
        else:
            shift = p["beta"] + scale * (p["bias"] - p["mean"])
            w_k = w.reshape(3, 3 * cin, cout).astype(jnp.bfloat16)
        out.append((w_k,
                    scale.reshape(1, cout).astype(jnp.float32),
                    shift.reshape(1, cout).astype(jnp.float32)))
    return out


def feature_loss(inputs_nchw, targets_nchw, kparams, block_weights,
                 *, row_tile=16):
    """Pallas port of FeatureLoss.forward with feature_loss = L1 (mean).

    Reproduces the reference quirk: `zip(input_features[i], target_features[i],
    self.weights)` iterates over *batch* elements, so only the first
    min(N, len(weights)) samples contribute, weighted by batch position.
    Dead samples are sliced away before any kernel runs."""
    n = inputs_nchw.shape[0]
    j_terms = min(n, int(block_weights.shape[0]))
    xa = jnp.transpose(inputs_nchw[:j_terms], (0, 2, 3, 1)).astype(jnp.float32)
    xb = jnp.transpose(targets_nchw[:j_terms], (0, 2, 3, 1)).astype(jnp.float32)
    wvec = block_weights[:j_terms].astype(jnp.float32)

    (w0, s0, b0), (w1, s1, b1), (w2, s2, b2), (w3, s3, b3) = kparams
    h, wd = xa.shape[1], xa.shape[2]
    h2, wd2 = h // 2, wd // 2
    th0 = _pick_tile(h, row_tile)
    th1 = _pick_tile(h, row_tile, even=True)
    th2 = _pick_tile(h2, row_tile)
    th3 = _pick_tile(h2, row_tile)

    # Layer 0: Normalize folded into w0/shift; raw pixels padded with the
    # ImageNet mean so the fold stays exact at the border; im2col to K=27 and
    # one dense MXU matmul per (sample, row-tile).
    pa = _im2col3x3(_pad_hw_mean(xa, IMAGENET_MEAN)).astype(jnp.bfloat16)
    pb = _im2col3x3(_pad_hw_mean(xb, IMAGENET_MEAN)).astype(jnp.bfloat16)
    ya, yb = dense_bn_relu_pair(pa, pb, w0, s0, b0, th=th0)

    # Layer 1 (hook 0): conv+BN, fused L1 partials on the pre-ReLU feature,
    # fused ReLU + 2x2 maxpool output (the hooked feature never hits HBM).
    qa, qb, l0 = conv_bn_loss_pair(
        _pad_for_rowtiles(ya, th1), _pad_for_rowtiles(yb, th1),
        w1, s1, b1, th=th1, out_h=h, emit_pool=True)

    # Layer 2.
    za, zb = conv_bn_relu_pair(
        _pad_for_rowtiles(qa, th2), _pad_for_rowtiles(qb, th2),
        w2, s2, b2, th=th2, out_h=h2)

    # Layer 3 (hook 1): L1 partials only — the feature never leaves VMEM.
    l1 = conv_bn_loss_pair(
        _pad_for_rowtiles(za, th3), _pad_for_rowtiles(zb, th3),
        w3, s3, b3, th=th3, out_h=h2, emit_pool=False)

    c1 = w1.shape[-1]
    c3 = w3.shape[-1]
    per_sample = (jnp.sum(l0, axis=(1, 2, 3)) / float(h * wd * c1) +
                  jnp.sum(l1, axis=(1, 2, 3)) / float(h2 * wd2 * c3))
    return jnp.sum(per_sample * wvec)


# ---------------------------- pure-JAX reference -----------------------------

def _ref_conv_bn(x, w_hwio, scale, shift, relu):
    y = jax.lax.conv_general_dilated(
        x, w_hwio, (1, 1), "SAME",
        dimension_numbers=("NHWC", "HWIO", "NHWC"),
        precision=jax.lax.Precision.HIGHEST)
    y = y * scale[0] + shift[0]
    return jnp.maximum(y, 0.0) if relu else y


def _ref_loss(inputs_nchw, targets_nchw, raw_params, block_weights):
    ref_p = []
    for p in raw_params:
        cout = p["w"].shape[-1]
        scale = p["gamma"] / jnp.sqrt(p["var"] + BN_EPS)
        shift = p["beta"] + scale * (p["bias"] - p["mean"])
        ref_p.append((p["w"], scale.reshape(1, cout), shift.reshape(1, cout)))
    (w0, s0, b0), (w1, s1, b1), (w2, s2, b2), (w3, s3, b3) = ref_p

    def feats(x_nchw):
        x = jnp.transpose(x_nchw, (0, 2, 3, 1)).astype(jnp.float32)
        x = (x - IMAGENET_MEAN) / IMAGENET_STD
        x = _ref_conv_bn(x, w0, s0, b0, True)
        f0 = _ref_conv_bn(x, w1, s1, b1, False)
        x = _maxpool2x2(jnp.maximum(f0, 0.0))
        x = _ref_conv_bn(x, w2, s2, b2, True)
        f1 = _ref_conv_bn(x, w3, s3, b3, False)
        return [f0, f1]

    in_f, tg_f = feats(inputs_nchw), feats(targets_nchw)
    j_terms = min(inputs_nchw.shape[0], block_weights.shape[0])
    loss = 0.0
    for fa, fb in zip(in_f, tg_f):
        for j in range(j_terms):
            loss = loss + jnp.mean(jnp.abs(fa[j] - fb[j])) * block_weights[j]
    return loss


# ----------------------------------- main ------------------------------------

if __name__ == "__main__":
    key = jax.random.PRNGKey(0)
    k_params, k_in, k_tgt = jax.random.split(key, 3)
    raw_params = init_vgg_params(k_params)
    kparams = prepare_kernel_params(raw_params)

    N, C, H, W = 2, 3, 16, 16                      # NCHW, as in PyTorch
    inputs = jax.random.uniform(k_in, (N, C, H, W), jnp.float32)
    targets = jax.random.uniform(k_tgt, (N, C, H, W), jnp.float32)

    # FeatureLoss(loss=nn.L1Loss(), blocks=[0, 1], weights=[1.0, 0.5], device)
    block_weights = jnp.array([1.0, 0.5], jnp.float32)

    # row_tile=4 so the 16x16 test genuinely exercises multi-row-tile halos
    # and cross-tile loss partials (production default is 16).
    loss_fn = jax.jit(functools.partial(feature_loss, kparams=kparams,
                                        block_weights=block_weights,
                                        row_tile=4))
    loss = loss_fn(inputs, targets)
    jax.block_until_ready(loss)

    ref = _ref_loss(inputs, targets, raw_params, block_weights)
    # bf16 MXU operands (f32 accumulation + f32 epilogue) -> slightly looser
    # tolerance than a pure-f32 pipeline.
    assert jnp.allclose(loss, ref, rtol=2e-2, atol=2e-3), (float(loss),
                                                           float(ref))
    print("KERNEL_OK")
</pallas_src>

<mosaic_0001>
module attributes {stable_mosaic.version = 11 : i64} {
  func.func @_dense_bn_relu_kernel(%arg0: i32, %arg1: i32, %arg2: memref<1x4x16x27xbf16, #tpu.memory_space<vmem>>, %arg3: memref<1x4x16x27xbf16, #tpu.memory_space<vmem>>, %arg4: memref<27x64xbf16, #tpu.memory_space<vmem>>, %arg5: memref<1x64xf32, #tpu.memory_space<vmem>>, %arg6: memref<1x64xf32, #tpu.memory_space<vmem>>, %arg7: memref<1x4x16x64xbf16, #tpu.memory_space<vmem>>, %arg8: memref<1x4x16x64xbf16, #tpu.memory_space<vmem>>) attributes {dimension_semantics = [#tpu.dimension_semantics<parallel>, #tpu.dimension_semantics<parallel>], iteration_bounds = array<i64: 2, 4>, scalar_prefetch = 0 : i64, scratch_operands = 0 : i64, tpu.core_type = #tpu.core_type<tc>, window_params = [{transform_indices = @transform_0, window_bounds = array<i64: 1, 4, 16, 27>}, {transform_indices = @transform_1, window_bounds = array<i64: 1, 4, 16, 27>}, {pipeline_mode = #tpu.pipeline_mode<synchronous>, transform_indices = @transform_2, window_bounds = array<i64: 27, 64>}, {pipeline_mode = #tpu.pipeline_mode<synchronous>, transform_indices = @transform_3, window_bounds = array<i64: 1, 64>}, {pipeline_mode = #tpu.pipeline_mode<synchronous>, transform_indices = @transform_4, window_bounds = array<i64: 1, 64>}, {transform_indices = @transform_5, window_bounds = array<i64: 1, 4, 16, 64>}, {transform_indices = @transform_6, window_bounds = array<i64: 1, 4, 16, 64>}]} {
    %c0 = arith.constant 0 : index
    %c0_0 = arith.constant 0 : index
    %c0_1 = arith.constant 0 : index
    %c0_2 = arith.constant 0 : index
    %0 = vector.load %arg2[%c0, %c0_0, %c0_1, %c0_2] : memref<1x4x16x27xbf16, #tpu.memory_space<vmem>>, vector<1x4x16x27xbf16>
    %1 = vector.shape_cast %0 : vector<1x4x16x27xbf16> to vector<4x16x27xbf16>
    %2 = vector.shape_cast %1 : vector<4x16x27xbf16> to vector<64x27xbf16>
    %c0_3 = arith.constant 0 : index
    %c0_4 = arith.constant 0 : index
    %c0_5 = arith.constant 0 : index
    %c0_6 = arith.constant 0 : index
    %3 = vector.load %arg3[%c0_3, %c0_4, %c0_5, %c0_6] : memref<1x4x16x27xbf16, #tpu.memory_space<vmem>>, vector<1x4x16x27xbf16>
    %4 = vector.shape_cast %3 : vector<1x4x16x27xbf16> to vector<4x16x27xbf16>
    %5 = vector.shape_cast %4 : vector<4x16x27xbf16> to vector<64x27xbf16>
    %6 = tpu.concatenate %2, %5 in 0 : vector<64x27xbf16>, vector<64x27xbf16> -> vector<128x27xbf16>
    %c0_7 = arith.constant 0 : index
    %c0_8 = arith.constant 0 : index
    %7 = vector.load %arg4[%c0_7, %c0_8] : memref<27x64xbf16, #tpu.memory_space<vmem>>, vector<27x64xbf16>
    %cst = arith.constant dense<0.000000e+00> : vector<128x64xf32>
    %8 = tpu.matmul %6, %7, %cst {dimension_numbers = #tpu.dot_dimension_numbers<[1], [0], [0], [1], [0, 0, 1, 1], [], []>} : vector<128x27xbf16>, vector<27x64xbf16>, vector<128x64xf32> -> vector<128x64xf32>
    %c0_9 = arith.constant 0 : index
    %c0_10 = arith.constant 0 : index
    %9 = vector.load %arg5[%c0_9, %c0_10] : memref<1x64xf32, #tpu.memory_space<vmem>>, vector<1x64xf32>
    %10 = vector.shape_cast %9 : vector<1x64xf32> to vector<64xf32>
    %11 = vector.shape_cast %10 : vector<64xf32> to vector<1x64xf32>
    %12 = vector.broadcast %11 : vector<1x64xf32> to vector<128x64xf32>
    %13 = arith.mulf %8, %12 : vector<128x64xf32>
    %c0_11 = arith.constant 0 : index
    %c0_12 = arith.constant 0 : index
    %14 = vector.load %arg6[%c0_11, %c0_12] : memref<1x64xf32, #tpu.memory_space<vmem>>, vector<1x64xf32>
    %15 = vector.shape_cast %14 : vector<1x64xf32> to vector<64xf32>
    %16 = vector.shape_cast %15 : vector<64xf32> to vector<1x64xf32>
    %17 = vector.broadcast %16 : vector<1x64xf32> to vector<128x64xf32>
    %18 = arith.addf %13, %17 : vector<128x64xf32>
    %cst_13 = arith.constant 0.000000e+00 : f32
    %19 = vector.broadcast %cst_13 : f32 to vector<128x64xf32>
    %20 = arith.maximumf %18, %19 : vector<128x64xf32>
    %21 = vector.extract_strided_slice %20 {offsets = [0, 0], sizes = [64, 64], strides = [1, 1]} : vector<128x64xf32> to vector<64x64xf32>
    %22 = vector.shape_cast %21 : vector<64x64xf32> to vector<4x16x64xf32>
    %23 = arith.truncf %22 : vector<4x16x64xf32> to vector<4x16x64xbf16>
    %c0_14 = arith.constant 0 : index
    %c0_15 = arith.constant 0 : index
    %c0_16 = arith.constant 0 : index
    %c0_17 = arith.constant 0 : index
    %24 = vector.load %arg7[%c0_14, %c0_15, %c0_16, %c0_17] : memref<1x4x16x64xbf16, #tpu.memory_space<vmem>>, vector<1x4x16x64xbf16>
    %25 = vector.shape_cast %24 : vector<1x4x16x64xbf16> to vector<4x16x64xbf16>
    %26 = vector.shape_cast %23 : vector<4x16x64xbf16> to vector<1x4x16x64xbf16>
    tpu.vector_store %arg7[%c0_14, %c0_15, %c0_16, %c0_17], %26 {strides = array<i32>} : memref<1x4x16x64xbf16, #tpu.memory_space<vmem>>, vector<1x4x16x64xbf16>,
    %27 = vector.extract_strided_slice %20 {offsets = [64, 0], sizes = [64, 64], strides = [1, 1]} : vector<128x64xf32> to vector<64x64xf32>
    %28 = vector.shape_cast %27 : vector<64x64xf32> to vector<4x16x64xf32>
    %29 = arith.truncf %28 : vector<4x16x64xf32> to vector<4x16x64xbf16>
    %c0_18 = arith.constant 0 : index
    %c0_19 = arith.constant 0 : index
    %c0_20 = arith.constant 0 : index
    %c0_21 = arith.constant 0 : index
    %30 = vector.load %arg8[%c0_18, %c0_19, %c0_20, %c0_21] : memref<1x4x16x64xbf16, #tpu.memory_space<vmem>>, vector<1x4x16x64xbf16>
    %31 = vector.shape_cast %30 : vector<1x4x16x64xbf16> to vector<4x16x64xbf16>
    %32 = vector.shape_cast %29 : vector<4x16x64xbf16> to vector<1x4x16x64xbf16>
    tpu.vector_store %arg8[%c0_18, %c0_19, %c0_20, %c0_21], %32 {strides = array<i32>} : memref<1x4x16x64xbf16, #tpu.memory_space<vmem>>, vector<1x4x16x64xbf16>,
    return
  }
  func.func @transform_0(%arg0: i32, %arg1: i32) -> (i32, i32, i32, i32) {
    %c0_i32 = arith.constant 0 : i32
    %c0_i32_0 = arith.constant 0 : i32
    %c0_i32_1 = arith.constant 0 : i32
    return %arg0, %arg1, %c0_i32, %c0_i32_0 : i32, i32, i32, i32
  }
  func.func @transform_1(%arg0: i32, %arg1: i32) -> (i32, i32, i32, i32) {
    %c0_i32 = arith.constant 0 : i32
    %c0_i32_0 = arith.constant 0 : i32
    %c0_i32_1 = arith.constant 0 : i32
    return %arg0, %arg1, %c0_i32, %c0_i32_0 : i32, i32, i32, i32
  }
  func.func @transform_2(%arg0: i32, %arg1: i32) -> (i32, i32) {
    %c0_i32 = arith.constant 0 : i32
    %c0_i32_0 = arith.constant 0 : i32
    %c0_i32_1 = arith.constant 0 : i32
    return %c0_i32, %c0_i32_0 : i32, i32
  }
  func.func @transform_3(%arg0: i32, %arg1: i32) -> (i32, i32) {
    %c0_i32 = arith.constant 0 : i32
    %c0_i32_0 = arith.constant 0 : i32
    %c0_i32_1 = arith.constant 0 : i32
    return %c0_i32, %c0_i32_0 : i32, i32
  }
  func.func @transform_4(%arg0: i32, %arg1: i32) -> (i32, i32) {
    %c0_i32 = arith.constant 0 : i32
    %c0_i32_0 = arith.constant 0 : i32
    %c0_i32_1 = arith.constant 0 : i32
    return %c0_i32, %c0_i32_0 : i32, i32
  }
  func.func @transform_5(%arg0: i32, %arg1: i32) -> (i32, i32, i32, i32) {
    %c0_i32 = arith.constant 0 : i32
    %c0_i32_0 = arith.constant 0 : i32
    %c0_i32_1 = arith.constant 0 : i32
    return %arg0, %arg1, %c0_i32, %c0_i32_0 : i32, i32, i32, i32
  }
  func.func @transform_6(%arg0: i32, %arg1: i32) -> (i32, i32, i32, i32) {
    %c0_i32 = arith.constant 0 : i32
    %c0_i32_0 = arith.constant 0 : i32
    %c0_i32_1 = arith.constant 0 : i32
    return %arg0, %arg1, %c0_i32, %c0_i32_0 : i32, i32, i32, i32
  }
}

module attributes {stable_mosaic.version = 11 : i64} {
  func.func @_conv_bn_loss_kernel(%arg0: i32, %arg1: i32, %arg2: memref<1x4x18x64xbf16, #tpu.memory_space<vmem>>, %arg3: memref<1x4x18x64xbf16, #tpu.memory_space<vmem>>, %arg4: memref<1x4x18x64xbf16, #tpu.memory_space<vmem>>, %arg5: memref<1x4x18x64xbf16, #tpu.memory_space<vmem>>, %arg6: memref<3x192x64xbf16, #tpu.memory_space<vmem>>, %arg7: memref<1x64xf32, #tpu.memory_space<vmem>>, %arg8: memref<1x64xf32, #tpu.memory_space<vmem>>, %arg9: memref<1x2x8x64xbf16, #tpu.memory_space<vmem>>, %arg10: memref<1x2x8x64xbf16, #tpu.memory_space<vmem>>, %arg11: memref<1x1x1x1xf32, #tpu.memory_space<vmem>>, %arg12: memref<2x16x64xf32, #tpu.memory_space<vmem>>) attributes {dimension_semantics = [#tpu.dimension_semantics<parallel>, #tpu.dimension_semantics<parallel>], iteration_bounds = array<i64: 2, 4>, scalar_prefetch = 0 : i64, scratch_operands = 1 : i64, tpu.core_type = #tpu.core_type<tc>, window_params = [{transform_indices = @transform_0, window_bounds = array<i64: 1, 4, 18, 64>}, {transform_indices = @transform_1, window_bounds = array<i64: 1, 4, 18, 64>}, {transform_indices = @transform_2, window_bounds = array<i64: 1, 4, 18, 64>}, {transform_indices = @transform_3, window_bounds = array<i64: 1, 4, 18, 64>}, {pipeline_mode = #tpu.pipeline_mode<synchronous>, transform_indices = @transform_4, window_bounds = array<i64: 3, 192, 64>}, {pipeline_mode = #tpu.pipeline_mode<synchronous>, transform_indices = @transform_5, window_bounds = array<i64: 1, 64>}, {pipeline_mode = #tpu.pipeline_mode<synchronous>, transform_indices = @transform_6, window_bounds = array<i64: 1, 64>}, {transform_indices = @transform_7, window_bounds = array<i64: 1, 2, 8, 64>}, {transform_indices = @transform_8, window_bounds = array<i64: 1, 2, 8, 64>}, {transform_indices = @transform_9, window_bounds = array<i64: 1, 1, 1, 1>}]} {
    %c0 = arith.constant 0 : index
    %c0_0 = arith.constant 0 : index
    %c0_1 = arith.constant 0 : index
    %c0_2 = arith.constant 0 : index
    %0 = vector.load %arg2[%c0, %c0_0, %c0_1, %c0_2] : memref<1x4x18x64xbf16, #tpu.memory_space<vmem>>, vector<1x4x18x64xbf16>
    %1 = vector.shape_cast %0 : vector<1x4x18x64xbf16> to vector<4x18x64xbf16>
    %c0_3 = arith.constant 0 : index
    %c0_4 = arith.constant 0 : index
    %c0_5 = arith.constant 0 : index
    %c0_6 = arith.constant 0 : index
    %2 = vector.load %arg3[%c0_3, %c0_4, %c0_5, %c0_6] : memref<1x4x18x64xbf16, #tpu.memory_space<vmem>>, vector<1x2x18x64xbf16>
    %3 = vector.shape_cast %2 : vector<1x2x18x64xbf16> to vector<2x18x64xbf16>
    %4 = tpu.concatenate %1, %3 in 0 : vector<4x18x64xbf16>, vector<2x18x64xbf16> -> vector<6x18x64xbf16>
    %c0_7 = arith.constant 0 : index
    %c0_8 = arith.constant 0 : index
    %c0_9 = arith.constant 0 : index
    %c0_10 = arith.constant 0 : index
    %5 = vector.load %arg4[%c0_7, %c0_8, %c0_9, %c0_10] : memref<1x4x18x64xbf16, #tpu.memory_space<vmem>>, vector<1x4x18x64xbf16>
    %6 = vector.shape_cast %5 : vector<1x4x18x64xbf16> to vector<4x18x64xbf16>
    %c0_11 = arith.constant 0 : index
    %c0_12 = arith.constant 0 : index
    %c0_13 = arith.constant 0 : index
    %c0_14 = arith.constant 0 : index
    %7 = vector.load %arg5[%c0_11, %c0_12, %c0_13, %c0_14] : memref<1x4x18x64xbf16, #tpu.memory_space<vmem>>, vector<1x2x18x64xbf16>
    %8 = vector.shape_cast %7 : vector<1x2x18x64xbf16> to vector<2x18x64xbf16>
    %9 = tpu.concatenate %6, %8 in 0 : vector<4x18x64xbf16>, vector<2x18x64xbf16> -> vector<6x18x64xbf16>
    %10 = vector.extract_strided_slice %4 {offsets = [0, 0, 0], sizes = [4, 16, 64], strides = [1, 1, 1]} : vector<6x18x64xbf16> to vector<4x16x64xbf16>
    %11 = vector.extract_strided_slice %4 {offsets = [0, 1, 0], sizes = [4, 16, 64], strides = [1, 1, 1]} : vector<6x18x64xbf16> to vector<4x16x64xbf16>
    %12 = vector.extract_strided_slice %4 {offsets = [0, 2, 0], sizes = [4, 16, 64], strides = [1, 1, 1]} : vector<6x18x64xbf16> to vector<4x16x64xbf16>
    %13 = tpu.concatenate %10, %11, %12 in 2 : vector<4x16x64xbf16>, vector<4x16x64xbf16>, vector<4x16x64xbf16> -> vector<4x16x192xbf16>
    %14 = vector.shape_cast %13 : vector<4x16x192xbf16> to vector<64x192xbf16>
    %15 = vector.extract_strided_slice %9 {offsets = [0, 0, 0], sizes = [4, 16, 64], strides = [1, 1, 1]} : vector<6x18x64xbf16> to vector<4x16x64xbf16>
    %16 = vector.extract_strided_slice %9 {offsets = [0, 1, 0], sizes = [4, 16, 64], strides = [1, 1, 1]} : vector<6x18x64xbf16> to vector<4x16x64xbf16>
    %17 = vector.extract_strided_slice %9 {offsets = [0, 2, 0], sizes = [4, 16, 64], strides = [1, 1, 1]} : vector<6x18x64xbf16> to vector<4x16x64xbf16>
    %18 = tpu.concatenate %15, %16, %17 in 2 : vector<4x16x64xbf16>, vector<4x16x64xbf16>, vector<4x16x64xbf16> -> vector<4x16x192xbf16>
    %19 = vector.shape_cast %18 : vector<4x16x192xbf16> to vector<64x192xbf16>
    %20 = tpu.concatenate %14, %19 in 0 : vector<64x192xbf16>, vector<64x192xbf16> -> vector<128x192xbf16>
    %c0_15 = arith.constant 0 : index
    %c0_16 = arith.constant 0 : index
    %c0_17 = arith.constant 0 : index
    %21 = vector.load %arg6[%c0_15, %c0_16, %c0_17] : memref<3x192x64xbf16, #tpu.memory_space<vmem>>, vector<1x192x64xbf16>
    %22 = vector.shape_cast %21 : vector<1x192x64xbf16> to vector<192x64xbf16>
    %cst = arith.constant dense<0.000000e+00> : vector<128x64xf32>
    %23 = tpu.matmul %20, %22, %cst {dimension_numbers = #tpu.dot_dimension_numbers<[1], [0], [0], [1], [0, 0, 1, 1], [], []>} : vector<128x192xbf16>, vector<192x64xbf16>, vector<128x64xf32> -> vector<128x64xf32>
    %24 = vector.extract_strided_slice %4 {offsets = [1, 0, 0], sizes = [4, 16, 64], strides = [1, 1, 1]} : vector<6x18x64xbf16> to vector<4x16x64xbf16>
    %25 = vector.extract_strided_slice %4 {offsets = [1, 1, 0], sizes = [4, 16, 64], strides = [1, 1, 1]} : vector<6x18x64xbf16> to vector<4x16x64xbf16>
    %26 = vector.extract_strided_slice %4 {offsets = [1, 2, 0], sizes = [4, 16, 64], strides = [1, 1, 1]} : vector<6x18x64xbf16> to vector<4x16x64xbf16>
    %27 = tpu.concatenate %24, %25, %26 in 2 : vector<4x16x64xbf16>, vector<4x16x64xbf16>, vector<4x16x64xbf16> -> vector<4x16x192xbf16>
    %28 = vector.shape_cast %27 : vector<4x16x192xbf16> to vector<64x192xbf16>
    %29 = vector.extract_strided_slice %9 {offsets = [1, 0, 0], sizes = [4, 16, 64], strides = [1, 1, 1]} : vector<6x18x64xbf16> to vector<4x16x64xbf16>
    %30 = vector.extract_strided_slice %9 {offsets = [1, 1, 0], sizes = [4, 16, 64], strides = [1, 1, 1]} : vector<6x18x64xbf16> to vector<4x16x64xbf16>
    %31 = vector.extract_strided_slice %9 {offsets = [1, 2, 0], sizes = [4, 16, 64], strides = [1, 1, 1]} : vector<6x18x64xbf16> to vector<4x16x64xbf16>
    %32 = tpu.concatenate %29, %30, %31 in 2 : vector<4x16x64xbf16>, vector<4x16x64xbf16>, vector<4x16x64xbf16> -> vector<4x16x192xbf16>
    %33 = vector.shape_cast %32 : vector<4x16x192xbf16> to vector<64x192xbf16>
    %34 = tpu.concatenate %28, %33 in 0 : vector<64x192xbf16>, vector<64x192xbf16> -> vector<128x192xbf16>
    %c1 = arith.constant 1 : index
    %c0_18 = arith.constant 0 : index
    %c0_19 = arith.constant 0 : index
    %35 = vector.load %arg6[%c1, %c0_18, %c0_19] : memref<3x192x64xbf16, #tpu.memory_space<vmem>>, vector<1x192x64xbf16>
    %36 = vector.shape_cast %35 : vector<1x192x64xbf16> to vector<192x64xbf16>
    %cst_20 = arith.constant dense<0.000000e+00> : vector<128x64xf32>
    %37 = tpu.matmul %34, %36, %cst_20 {dimension_numbers = #tpu.dot_dimension_numbers<[1], [0], [0], [1], [0, 0, 1, 1], [], []>} : vector<128x192xbf16>, vector<192x64xbf16>, vector<128x64xf32> -> vector<128x64xf32>
    %38 = arith.addf %23, %37 : vector<128x64xf32>
    %39 = vector.extract_strided_slice %4 {offsets = [2, 0, 0], sizes = [4, 16, 64], strides = [1, 1, 1]} : vector<6x18x64xbf16> to vector<4x16x64xbf16>
    %40 = vector.extract_strided_slice %4 {offsets = [2, 1, 0], sizes = [4, 16, 64], strides = [1, 1, 1]} : vector<6x18x64xbf16> to vector<4x16x64xbf16>
    %41 = vector.extract_strided_slice %4 {offsets = [2, 2, 0], sizes = [4, 16, 64], strides = [1, 1, 1]} : vector<6x18x64xbf16> to vector<4x16x64xbf16>
    %42 = tpu.concatenate %39, %40, %41 in 2 : vector<4x16x64xbf16>, vector<4x16x64xbf16>, vector<4x16x64xbf16> -> vector<4x16x192xbf16>
    %43 = vector.shape_cast %42 : vector<4x16x192xbf16> to vector<64x192xbf16>
    %44 = vector.extract_strided_slice %9 {offsets = [2, 0, 0], sizes = [4, 16, 64], strides = [1, 1, 1]} : vector<6x18x64xbf16> to vector<4x16x64xbf16>
    %45 = vector.extract_strided_slice %9 {offsets = [2, 1, 0], sizes = [4, 16, 64], strides = [1, 1, 1]} : vector<6x18x64xbf16> to vector<4x16x64xbf16>
    %46 = vector.extract_strided_slice %9 {offsets = [2, 2, 0], sizes = [4, 16, 64], strides = [1, 1, 1]} : vector<6x18x64xbf16> to vector<4x16x64xbf16>
    %47 = tpu.concatenate %44, %45, %46 in 2 : vector<4x16x64xbf16>, vector<4x16x64xbf16>, vector<4x16x64xbf16> -> vector<4x16x192xbf16>
    %48 = vector.shape_cast %47 : vector<4x16x192xbf16> to vector<64x192xbf16>
    %49 = tpu.concatenate %43, %48 in 0 : vector<64x192xbf16>, vector<64x192xbf16> -> vector<128x192xbf16>
    %c2 = arith.constant 2 : index
    %c0_21 = arith.constant 0 : index
    %c0_22 = arith.constant 0 : index
    %50 = vector.load %arg6[%c2, %c0_21, %c0_22] : memref<3x192x64xbf16, #tpu.memory_space<vmem>>, vector<1x192x64xbf16>
    %51 = vector.shape_cast %50 : vector<1x192x64xbf16> to vector<192x64xbf16>
    %cst_23 = arith.constant dense<0.000000e+00> : vector<128x64xf32>
    %52 = tpu.matmul %49, %51, %cst_23 {dimension_numbers = #tpu.dot_dimension_numbers<[1], [0], [0], [1], [0, 0, 1, 1], [], []>} : vector<128x192xbf16>, vector<192x64xbf16>, vector<128x64xf32> -> vector<128x64xf32>
    %53 = arith.addf %38, %52 : vector<128x64xf32>
    %54 = vector.extract_strided_slice %53 {offsets = [0, 0], sizes = [64, 64], strides = [1, 1]} : vector<128x64xf32> to vector<64x64xf32>
    %55 = vector.extract_strided_slice %53 {offsets = [64, 0], sizes = [64, 64], strides = [1, 1]} : vector<128x64xf32> to vector<64x64xf32>
    %c0_24 = arith.constant 0 : index
    %c0_25 = arith.constant 0 : index
    %56 = vector.load %arg7[%c0_24, %c0_25] : memref<1x64xf32, #tpu.memory_space<vmem>>, vector<1x64xf32>
    %57 = vector.shape_cast %56 : vector<1x64xf32> to vector<64xf32>
    %c0_26 = arith.constant 0 : index
    %c0_27 = arith.constant 0 : index
    %58 = vector.load %arg8[%c0_26, %c0_27] : memref<1x64xf32, #tpu.memory_space<vmem>>, vector<1x64xf32>
    %59 = vector.shape_cast %58 : vector<1x64xf32> to vector<64xf32>
    %60 = vector.shape_cast %57 : vector<64xf32> to vector<1x64xf32>
    %61 = vector.broadcast %60 : vector<1x64xf32> to vector<64x64xf32>
    %62 = arith.mulf %54, %61 : vector<64x64xf32>
    %63 = vector.shape_cast %59 : vector<64xf32> to vector<1x64xf32>
    %64 = vector.broadcast %63 : vector<1x64xf32> to vector<64x64xf32>
    %65 = arith.addf %62, %64 : vector<64x64xf32>
    %66 = vector.shape_cast %57 : vector<64xf32> to vector<1x64xf32>
    %67 = vector.broadcast %66 : vector<1x64xf32> to vector<64x64xf32>
    %68 = arith.mulf %55, %67 : vector<64x64xf32>
    %69 = vector.shape_cast %59 : vector<64xf32> to vector<1x64xf32>
    %70 = vector.broadcast %69 : vector<1x64xf32> to vector<64x64xf32>
    %71 = arith.addf %68, %70 : vector<64x64xf32>
    %72 = arith.subf %65, %71 : vector<64x64xf32>
    %73 = math.absf %72 : vector<64x64xf32>
    %cst_28 = arith.constant dense<0.000000e+00> : vector<64xf32>
    %74 = vector.multi_reduction <add>, %73, %cst_28 [0] : vector<64x64xf32> to vector<64xf32>
    %75 = vector.shape_cast %74 : vector<64xf32> to vector<1x64xf32>
    %cst_29 = arith.constant dense<0.000000e+00> : vector<1xf32>
    %76 = vector.multi_reduction <add>, %75, %cst_29 [1] : vector<1x64xf32> to vector<1xf32>
    %77 = vector.shape_cast %76 : vector<1xf32> to vector<1x1xf32>
    %78 = vector.shape_cast %77 : vector<1x1xf32> to vector<1x1x1x1xf32>
    %c0_30 = arith.constant 0 : index
    %c0_31 = arith.constant 0 : index
    %c0_32 = arith.constant 0 : index
    %c0_33 = arith.constant 0 : index
    %79 = vector.load %arg11[%c0_30, %c0_31, %c0_32, %c0_33] : memref<1x1x1x1xf32, #tpu.memory_space<vmem>>, vector<1x1x1x1xf32>
    tpu.vector_store %arg11[%c0_30, %c0_31, %c0_32, %c0_33], %78 {strides = array<i32>} : memref<1x1x1x1xf32, #tpu.memory_space<vmem>>, vector<1x1x1x1xf32>,
    %cst_34 = arith.constant 0.000000e+00 : f32
    %80 = vector.broadcast %cst_34 : f32 to vector<64x64xf32>
    %81 = arith.maximumf %65, %80 : vector<64x64xf32>
    %82 = vector.shape_cast %81 : vector<64x64xf32> to vector<4x16x64xf32>
    %83 = vector.shape_cast %82 : vector<4x16x64xf32> to vector<2x2x16x64xf32>
    %cst_35 = arith.constant dense<0xFF800000> : vector<2x16x64xf32>
    %84 = vector.multi_reduction <maximumf>, %83, %cst_35 [1] : vector<2x2x16x64xf32> to vector<2x16x64xf32>
    %c0_36 = arith.constant 0 : index
    %c0_37 = arith.constant 0 : index
    %c0_38 = arith.constant 0 : index
    %85 = vector.load %arg12[%c0_36, %c0_37, %c0_38] : memref<2x16x64xf32, #tpu.memory_space<vmem>>, vector<2x16x64xf32>
    tpu.vector_store %arg12[%c0_36, %c0_37, %c0_38], %84 {strides = array<i32>} : memref<2x16x64xf32, #tpu.memory_space<vmem>>, vector<2x16x64xf32>,
    %c0_39 = arith.constant 0 : index
    %c0_40 = arith.constant 0 : index
    %c0_41 = arith.constant 0 : index
    %86 = tpu.strided_load %arg12[%c0_39, %c0_40, %c0_41] {strides = array<i32: 1, 2, 1>} : memref<2x16x64xf32, #tpu.memory_space<vmem>>, vector<2x8x64xf32>
    %c0_42 = arith.constant 0 : index
    %c1_43 = arith.constant 1 : index
    %c0_44 = arith.constant 0 : index
    %87 = tpu.strided_load %arg12[%c0_42, %c1_43, %c0_44] {strides = array<i32: 1, 2, 1>} : memref<2x16x64xf32, #tpu.memory_space<vmem>>, vector<2x8x64xf32>
    %88 = arith.maximumf %86, %87 : vector<2x8x64xf32>
    %89 = arith.truncf %88 : vector<2x8x64xf32> to vector<2x8x64xbf16>
    %c0_45 = arith.constant 0 : index
    %c0_46 = arith.constant 0 : index
    %c0_47 = arith.constant 0 : index
    %c0_48 = arith.constant 0 : index
    %90 = vector.load %arg9[%c0_45, %c0_46, %c0_47, %c0_48] : memref<1x2x8x64xbf16, #tpu.memory_space<vmem>>, vector<1x2x8x64xbf16>
    %91 = vector.shape_cast %90 : vector<1x2x8x64xbf16> to vector<2x8x64xbf16>
    %92 = vector.shape_cast %89 : vector<2x8x64xbf16> to vector<1x2x8x64xbf16>
    tpu.vector_store %arg9[%c0_45, %c0_46, %c0_47, %c0_48], %92 {strides = array<i32>} : memref<1x2x8x64xbf16, #tpu.memory_space<vmem>>, vector<1x2x8x64xbf16>,
    %cst_49 = arith.constant 0.000000e+00 : f32
    %93 = vector.broadcast %cst_49 : f32 to vector<64x64xf32>
    %94 = arith.maximumf %71, %93 : vector<64x64xf32>
    %95 = vector.shape_cast %94 : vector<64x64xf32> to vector<4x16x64xf32>
    %96 = vector.shape_cast %95 : vector<4x16x64xf32> to vector<2x2x16x64xf32>
    %cst_50 = arith.constant dense<0xFF800000> : vector<2x16x64xf32>
    %97 = vector.multi_reduction <maximumf>, %96, %cst_50 [1] : vector<2x2x16x64xf32> to vector<2x16x64xf32>
    %c0_51 = arith.constant 0 : index
    %c0_52 = arith.constant 0 : index
    %c0_53 = arith.constant 0 : index
    %98 = vector.load %arg12[%c0_51, %c0_52, %c0_53] : memref<2x16x64xf32, #tpu.memory_space<vmem>>, vector<2x16x64xf32>
    tpu.vector_store %arg12[%c0_51, %c0_52, %c0_53], %97 {strides = array<i32>} : memref<2x16x64xf32, #tpu.memory_space<vmem>>, vector<2x16x64xf32>,
    %c0_54 = arith.constant 0 : index
    %c0_55 = arith.constant 0 : index
    %c0_56 = arith.constant 0 : index
    %99 = tpu.strided_load %arg12[%c0_54, %c0_55, %c0_56] {strides = array<i32: 1, 2, 1>} : memref<2x16x64xf32, #tpu.memory_space<vmem>>, vector<2x8x64xf32>
    %c0_57 = arith.constant 0 : index
    %c1_58 = arith.constant 1 : index
    %c0_59 = arith.constant 0 : index
    %100 = tpu.strided_load %arg12[%c0_57, %c1_58, %c0_59] {strides = array<i32: 1, 2, 1>} : memref<2x16x64xf32, #tpu.memory_space<vmem>>, vector<2x8x64xf32>
    %101 = arith.maximumf %99, %100 : vector<2x8x64xf32>
    %102 = arith.truncf %101 : vector<2x8x64xf32> to vector<2x8x64xbf16>
    %c0_60 = arith.constant 0 : index
    %c0_61 = arith.constant 0 : index
    %c0_62 = arith.constant 0 : index
    %c0_63 = arith.constant 0 : index
    %103 = vector.load %arg10[%c0_60, %c0_61, %c0_62, %c0_63] : memref<1x2x8x64xbf16, #tpu.memory_space<vmem>>, vector<1x2x8x64xbf16>
    %104 = vector.shape_cast %103 : vector<1x2x8x64xbf16> to vector<2x8x64xbf16>
    %105 = vector.shape_cast %102 : vector<2x8x64xbf16> to vector<1x2x8x64xbf16>
    tpu.vector_store %arg10[%c0_60, %c0_61, %c0_62, %c0_63], %105 {strides = array<i32>} : memref<1x2x8x64xbf16, #tpu.memory_space<vmem>>, vector<1x2x8x64xbf16>,
    return
  }
  func.func @transform_0(%arg0: i32, %arg1: i32) -> (i32, i32, i32, i32) {
    %c0_i32 = arith.constant 0 : i32
    %c0_i32_0 = arith.constant 0 : i32
    %c0_i32_1 = arith.constant 0 : i32
    return %arg0, %arg1, %c0_i32, %c0_i32_0 : i32, i32, i32, i32
  }
  func.func @transform_1(%arg0: i32, %arg1: i32) -> (i32, i32, i32, i32) {
    %c1_i32 = arith.constant 1 : i32
    %0 = arith.addi %arg1, %c1_i32 : i32
    %c0_i32 = arith.constant 0 : i32
    %c0_i32_0 = arith.constant 0 : i32
    %c0_i32_1 = arith.constant 0 : i32
    return %arg0, %0, %c0_i32, %c0_i32_0 : i32, i32, i32, i32
  }
  func.func @transform_2(%arg0: i32, %arg1: i32) -> (i32, i32, i32, i32) {
    %c0_i32 = arith.constant 0 : i32
    %c0_i32_0 = arith.constant 0 : i32
    %c0_i32_1 = arith.constant 0 : i32
    return %arg0, %arg1, %c0_i32, %c0_i32_0 : i32, i32, i32, i32
  }
  func.func @transform_3(%arg0: i32, %arg1: i32) -> (i32, i32, i32, i32) {
    %c1_i32 = arith.constant 1 : i32
    %0 = arith.addi %arg1, %c1_i32 : i32
    %c0_i32 = arith.constant 0 : i32
    %c0_i32_0 = arith.constant 0 : i32
    %c0_i32_1 = arith.constant 0 : i32
    return %arg0, %0, %c0_i32, %c0_i32_0 : i32, i32, i32, i32
  }
  func.func @transform_4(%arg0: i32, %arg1: i32) -> (i32, i32, i32) {
    %c0_i32 = arith.constant 0 : i32
    %c0_i32_0 = arith.constant 0 : i32
    %c0_i32_1 = arith.constant 0 : i32
    %c0_i32_2 = arith.constant 0 : i32
    return %c0_i32, %c0_i32_0, %c0_i32_1 : i32, i32, i32
  }
  func.func @transform_5(%arg0: i32, %arg1: i32) -> (i32, i32) {
    %c0_i32 = arith.constant 0 : i32
    %c0_i32_0 = arith.constant 0 : i32
    %c0_i32_1 = arith.constant 0 : i32
    return %c0_i32, %c0_i32_0 : i32, i32
  }
  func.func @transform_6(%arg0: i32, %arg1: i32) -> (i32, i32) {
    %c0_i32 = arith.constant 0 : i32
    %c0_i32_0 = arith.constant 0 : i32
    %c0_i32_1 = arith.constant 0 : i32
    return %c0_i32, %c0_i32_0 : i32, i32
  }
  func.func @transform_7(%arg0: i32, %arg1: i32) -> (i32, i32, i32, i32) {
    %c0_i32 = arith.constant 0 : i32
    %c0_i32_0 = arith.constant 0 : i32
    %c0_i32_1 = arith.constant 0 : i32
    return %arg0, %arg1, %c0_i32, %c0_i32_0 : i32, i32, i32, i32
  }
  func.func @transform_8(%arg0: i32, %arg1: i32) -> (i32, i32, i32, i32) {
    %c0_i32 = arith.constant 0 : i32
    %c0_i32_0 = arith.constant 0 : i32
    %c0_i32_1 = arith.constant 0 : i32
    return %arg0, %arg1, %c0_i32, %c0_i32_0 : i32, i32, i32, i32
  }
  func.func @transform_9(%arg0: i32, %arg1: i32) -> (i32, i32, i32, i32) {
    %c0_i32 = arith.constant 0 : i32
    %c0_i32_0 = arith.constant 0 : i32
    %c0_i32_1 = arith.constant 0 : i32
    return %arg0, %arg1, %c0_i32, %c0_i32_0 : i32, i32, i32, i32
  }
}

module attributes {stable_mosaic.version = 11 : i64} {
  func.func @_conv_bn_relu_kernel(%arg0: i32, %arg1: i32, %arg2: memref<1x4x10x64xbf16, #tpu.memory_space<vmem>>, %arg3: memref<1x4x10x64xbf16, #tpu.memory_space<vmem>>, %arg4: memref<1x4x10x64xbf16, #tpu.memory_space<vmem>>, %arg5: memref<1x4x10x64xbf16, #tpu.memory_space<vmem>>, %arg6: memref<3x192x128xbf16, #tpu.memory_space<vmem>>, %arg7: memref<1x128xf32, #tpu.memory_space<vmem>>, %arg8: memref<1x128xf32, #tpu.memory_space<vmem>>, %arg9: memref<1x4x8x128xbf16, #tpu.memory_space<vmem>>, %arg10: memref<1x4x8x128xbf16, #tpu.memory_space<vmem>>) attributes {dimension_semantics = [#tpu.dimension_semantics<parallel>, #tpu.dimension_semantics<parallel>], iteration_bounds = array<i64: 2, 2>, scalar_prefetch = 0 : i64, scratch_operands = 0 : i64, tpu.core_type = #tpu.core_type<tc>, window_params = [{transform_indices = @transform_0, window_bounds = array<i64: 1, 4, 10, 64>}, {transform_indices = @transform_1, window_bounds = array<i64: 1, 4, 10, 64>}, {transform_indices = @transform_2, window_bounds = array<i64: 1, 4, 10, 64>}, {transform_indices = @transform_3, window_bounds = array<i64: 1, 4, 10, 64>}, {pipeline_mode = #tpu.pipeline_mode<synchronous>, transform_indices = @transform_4, window_bounds = array<i64: 3, 192, 128>}, {pipeline_mode = #tpu.pipeline_mode<synchronous>, transform_indices = @transform_5, window_bounds = array<i64: 1, 128>}, {pipeline_mode = #tpu.pipeline_mode<synchronous>, transform_indices = @transform_6, window_bounds = array<i64: 1, 128>}, {transform_indices = @transform_7, window_bounds = array<i64: 1, 4, 8, 128>}, {transform_indices = @transform_8, window_bounds = array<i64: 1, 4, 8, 128>}]} {
    %c0 = arith.constant 0 : index
    %c0_0 = arith.constant 0 : index
    %c0_1 = arith.constant 0 : index
    %c0_2 = arith.constant 0 : index
    %0 = vector.load %arg2[%c0, %c0_0, %c0_1, %c0_2] : memref<1x4x10x64xbf16, #tpu.memory_space<vmem>>, vector<1x4x10x64xbf16>
    %1 = vector.shape_cast %0 : vector<1x4x10x64xbf16> to vector<4x10x64xbf16>
    %c0_3 = arith.constant 0 : index
    %c0_4 = arith.constant 0 : index
    %c0_5 = arith.constant 0 : index
    %c0_6 = arith.constant 0 : index
    %2 = vector.load %arg3[%c0_3, %c0_4, %c0_5, %c0_6] : memref<1x4x10x64xbf16, #tpu.memory_space<vmem>>, vector<1x2x10x64xbf16>
    %3 = vector.shape_cast %2 : vector<1x2x10x64xbf16> to vector<2x10x64xbf16>
    %4 = tpu.concatenate %1, %3 in 0 : vector<4x10x64xbf16>, vector<2x10x64xbf16> -> vector<6x10x64xbf16>
    %c0_7 = arith.constant 0 : index
    %c0_8 = arith.constant 0 : index
    %c0_9 = arith.constant 0 : index
    %c0_10 = arith.constant 0 : index
    %5 = vector.load %arg4[%c0_7, %c0_8, %c0_9, %c0_10] : memref<1x4x10x64xbf16, #tpu.memory_space<vmem>>, vector<1x4x10x64xbf16>
    %6 = vector.shape_cast %5 : vector<1x4x10x64xbf16> to vector<4x10x64xbf16>
    %c0_11 = arith.constant 0 : index
    %c0_12 = arith.constant 0 : index
    %c0_13 = arith.constant 0 : index
    %c0_14 = arith.constant 0 : index
    %7 = vector.load %arg5[%c0_11, %c0_12, %c0_13, %c0_14] : memref<1x4x10x64xbf16, #tpu.memory_space<vmem>>, vector<1x2x10x64xbf16>
    %8 = vector.shape_cast %7 : vector<1x2x10x64xbf16> to vector<2x10x64xbf16>
    %9 = tpu.concatenate %6, %8 in 0 : vector<4x10x64xbf16>, vector<2x10x64xbf16> -> vector<6x10x64xbf16>
    %10 = vector.extract_strided_slice %4 {offsets = [0, 0, 0], sizes = [4, 8, 64], strides = [1, 1, 1]} : vector<6x10x64xbf16> to vector<4x8x64xbf16>
    %11 = vector.extract_strided_slice %4 {offsets = [0, 1, 0], sizes = [4, 8, 64], strides = [1, 1, 1]} : vector<6x10x64xbf16> to vector<4x8x64xbf16>
    %12 = vector.extract_strided_slice %4 {offsets = [0, 2, 0], sizes = [4, 8, 64], strides = [1, 1, 1]} : vector<6x10x64xbf16> to vector<4x8x64xbf16>
    %13 = tpu.concatenate %10, %11, %12 in 2 : vector<4x8x64xbf16>, vector<4x8x64xbf16>, vector<4x8x64xbf16> -> vector<4x8x192xbf16>
    %14 = vector.shape_cast %13 : vector<4x8x192xbf16> to vector<32x192xbf16>
    %15 = vector.extract_strided_slice %9 {offsets = [0, 0, 0], sizes = [4, 8, 64], strides = [1, 1, 1]} : vector<6x10x64xbf16> to vector<4x8x64xbf16>
    %16 = vector.extract_strided_slice %9 {offsets = [0, 1, 0], sizes = [4, 8, 64], strides = [1, 1, 1]} : vector<6x10x64xbf16> to vector<4x8x64xbf16>
    %17 = vector.extract_strided_slice %9 {offsets = [0, 2, 0], sizes = [4, 8, 64], strides = [1, 1, 1]} : vector<6x10x64xbf16> to vector<4x8x64xbf16>
    %18 = tpu.concatenate %15, %16, %17 in 2 : vector<4x8x64xbf16>, vector<4x8x64xbf16>, vector<4x8x64xbf16> -> vector<4x8x192xbf16>
    %19 = vector.shape_cast %18 : vector<4x8x192xbf16> to vector<32x192xbf16>
    %20 = tpu.concatenate %14, %19 in 0 : vector<32x192xbf16>, vector<32x192xbf16> -> vector<64x192xbf16>
    %c0_15 = arith.constant 0 : index
    %c0_16 = arith.constant 0 : index
    %c0_17 = arith.constant 0 : index
    %21 = vector.load %arg6[%c0_15, %c0_16, %c0_17] : memref<3x192x128xbf16, #tpu.memory_space<vmem>>, vector<1x192x128xbf16>
    %22 = vector.shape_cast %21 : vector<1x192x128xbf16> to vector<192x128xbf16>
    %cst = arith.constant dense<0.000000e+00> : vector<64x128xf32>
    %23 = tpu.matmul %20, %22, %cst {dimension_numbers = #tpu.dot_dimension_numbers<[1], [0], [0], [1], [0, 0, 1, 1], [], []>} : vector<64x192xbf16>, vector<192x128xbf16>, vector<64x128xf32> -> vector<64x128xf32>
    %24 = vector.extract_strided_slice %4 {offsets = [1, 0, 0], sizes = [4, 8, 64], strides = [1, 1, 1]} : vector<6x10x64xbf16> to vector<4x8x64xbf16>
    %25 = vector.extract_strided_slice %4 {offsets = [1, 1, 0], sizes = [4, 8, 64], strides = [1, 1, 1]} : vector<6x10x64xbf16> to vector<4x8x64xbf16>
    %26 = vector.extract_strided_slice %4 {offsets = [1, 2, 0], sizes = [4, 8, 64], strides = [1, 1, 1]} : vector<6x10x64xbf16> to vector<4x8x64xbf16>
    %27 = tpu.concatenate %24, %25, %26 in 2 : vector<4x8x64xbf16>, vector<4x8x64xbf16>, vector<4x8x64xbf16> -> vector<4x8x192xbf16>
    %28 = vector.shape_cast %27 : vector<4x8x192xbf16> to vector<32x192xbf16>
    %29 = vector.extract_strided_slice %9 {offsets = [1, 0, 0], sizes = [4, 8, 64], strides = [1, 1, 1]} : vector<6x10x64xbf16> to vector<4x8x64xbf16>
    %30 = vector.extract_strided_slice %9 {offsets = [1, 1, 0], sizes = [4, 8, 64], strides = [1, 1, 1]} : vector<6x10x64xbf16> to vector<4x8x64xbf16>
    %31 = vector.extract_strided_slice %9 {offsets = [1, 2, 0], sizes = [4, 8, 64], strides = [1, 1, 1]} : vector<6x10x64xbf16> to vector<4x8x64xbf16>
    %32 = tpu.concatenate %29, %30, %31 in 2 : vector<4x8x64xbf16>, vector<4x8x64xbf16>, vector<4x8x64xbf16> -> vector<4x8x192xbf16>
    %33 = vector.shape_cast %32 : vector<4x8x192xbf16> to vector<32x192xbf16>
    %34 = tpu.concatenate %28, %33 in 0 : vector<32x192xbf16>, vector<32x192xbf16> -> vector<64x192xbf16>
    %c1 = arith.constant 1 : index
    %c0_18 = arith.constant 0 : index
    %c0_19 = arith.constant 0 : index
    %35 = vector.load %arg6[%c1, %c0_18, %c0_19] : memref<3x192x128xbf16, #tpu.memory_space<vmem>>, vector<1x192x128xbf16>
    %36 = vector.shape_cast %35 : vector<1x192x128xbf16> to vector<192x128xbf16>
    %cst_20 = arith.constant dense<0.000000e+00> : vector<64x128xf32>
    %37 = tpu.matmul %34, %36, %cst_20 {dimension_numbers = #tpu.dot_dimension_numbers<[1], [0], [0], [1], [0, 0, 1, 1], [], []>} : vector<64x192xbf16>, vector<192x128xbf16>, vector<64x128xf32> -> vector<64x128xf32>
    %38 = arith.addf %23, %37 : vector<64x128xf32>
    %39 = vector.extract_strided_slice %4 {offsets = [2, 0, 0], sizes = [4, 8, 64], strides = [1, 1, 1]} : vector<6x10x64xbf16> to vector<4x8x64xbf16>
    %40 = vector.extract_strided_slice %4 {offsets = [2, 1, 0], sizes = [4, 8, 64], strides = [1, 1, 1]} : vector<6x10x64xbf16> to vector<4x8x64xbf16>
    %41 = vector.extract_strided_slice %4 {offsets = [2, 2, 0], sizes = [4, 8, 64], strides = [1, 1, 1]} : vector<6x10x64xbf16> to vector<4x8x64xbf16>
    %42 = tpu.concatenate %39, %40, %41 in 2 : vector<4x8x64xbf16>, vector<4x8x64xbf16>, vector<4x8x64xbf16> -> vector<4x8x192xbf16>
    %43 = vector.shape_cast %42 : vector<4x8x192xbf16> to vector<32x192xbf16>
    %44 = vector.extract_strided_slice %9 {offsets = [2, 0, 0], sizes = [4, 8, 64], strides = [1, 1, 1]} : vector<6x10x64xbf16> to vector<4x8x64xbf16>
    %45 = vector.extract_strided_slice %9 {offsets = [2, 1, 0], sizes = [4, 8, 64], strides = [1, 1, 1]} : vector<6x10x64xbf16> to vector<4x8x64xbf16>
    %46 = vector.extract_strided_slice %9 {offsets = [2, 2, 0], sizes = [4, 8, 64], strides = [1, 1, 1]} : vector<6x10x64xbf16> to vector<4x8x64xbf16>
    %47 = tpu.concatenate %44, %45, %46 in 2 : vector<4x8x64xbf16>, vector<4x8x64xbf16>, vector<4x8x64xbf16> -> vector<4x8x192xbf16>
    %48 = vector.shape_cast %47 : vector<4x8x192xbf16> to vector<32x192xbf16>
    %49 = tpu.concatenate %43, %48 in 0 : vector<32x192xbf16>, vector<32x192xbf16> -> vector<64x192xbf16>
    %c2 = arith.constant 2 : index
    %c0_21 = arith.constant 0 : index
    %c0_22 = arith.constant 0 : index
    %50 = vector.load %arg6[%c2, %c0_21, %c0_22] : memref<3x192x128xbf16, #tpu.memory_space<vmem>>, vector<1x192x128xbf16>
    %51 = vector.shape_cast %50 : vector<1x192x128xbf16> to vector<192x128xbf16>
    %cst_23 = arith.constant dense<0.000000e+00> : vector<64x128xf32>
    %52 = tpu.matmul %49, %51, %cst_23 {dimension_numbers = #tpu.dot_dimension_numbers<[1], [0], [0], [1], [0, 0, 1, 1], [], []>} : vector<64x192xbf16>, vector<192x128xbf16>, vector<64x128xf32> -> vector<64x128xf32>
    %53 = arith.addf %38, %52 : vector<64x128xf32>
    %54 = vector.extract_strided_slice %53 {offsets = [0, 0], sizes = [32, 128], strides = [1, 1]} : vector<64x128xf32> to vector<32x128xf32>
    %55 = vector.extract_strided_slice %53 {offsets = [32, 0], sizes = [32, 128], strides = [1, 1]} : vector<64x128xf32> to vector<32x128xf32>
    %c0_24 = arith.constant 0 : index
    %c0_25 = arith.constant 0 : index
    %56 = vector.load %arg7[%c0_24, %c0_25] : memref<1x128xf32, #tpu.memory_space<vmem>>, vector<1x128xf32>
    %57 = vector.shape_cast %56 : vector<1x128xf32> to vector<128xf32>
    %c0_26 = arith.constant 0 : index
    %c0_27 = arith.constant 0 : index
    %58 = vector.load %arg8[%c0_26, %c0_27] : memref<1x128xf32, #tpu.memory_space<vmem>>, vector<1x128xf32>
    %59 = vector.shape_cast %58 : vector<1x128xf32> to vector<128xf32>
    %60 = vector.shape_cast %57 : vector<128xf32> to vector<1x128xf32>
    %61 = vector.broadcast %60 : vector<1x128xf32> to vector<32x128xf32>
    %62 = arith.mulf %54, %61 : vector<32x128xf32>
    %63 = vector.shape_cast %59 : vector<128xf32> to vector<1x128xf32>
    %64 = vector.broadcast %63 : vector<1x128xf32> to vector<32x128xf32>
    %65 = arith.addf %62, %64 : vector<32x128xf32>
    %cst_28 = arith.constant 0.000000e+00 : f32
    %66 = vector.broadcast %cst_28 : f32 to vector<32x128xf32>
    %67 = arith.maximumf %65, %66 : vector<32x128xf32>
    %68 = vector.shape_cast %67 : vector<32x128xf32> to vector<4x8x128xf32>
    %69 = arith.truncf %68 : vector<4x8x128xf32> to vector<4x8x128xbf16>
    %c0_29 = arith.constant 0 : index
    %c0_30 = arith.constant 0 : index
    %c0_31 = arith.constant 0 : index
    %c0_32 = arith.constant 0 : index
    %70 = vector.load %arg9[%c0_29, %c0_30, %c0_31, %c0_32] : memref<1x4x8x128xbf16, #tpu.memory_space<vmem>>, vector<1x4x8x128xbf16>
    %71 = vector.shape_cast %70 : vector<1x4x8x128xbf16> to vector<4x8x128xbf16>
    %72 = vector.shape_cast %69 : vector<4x8x128xbf16> to vector<1x4x8x128xbf16>
    tpu.vector_store %arg9[%c0_29, %c0_30, %c0_31, %c0_32], %72 {strides = array<i32>} : memref<1x4x8x128xbf16, #tpu.memory_space<vmem>>, vector<1x4x8x128xbf16>,
    %73 = vector.shape_cast %57 : vector<128xf32> to vector<1x128xf32>
    %74 = vector.broadcast %73 : vector<1x128xf32> to vector<32x128xf32>
    %75 = arith.mulf %55, %74 : vector<32x128xf32>
    %76 = vector.shape_cast %59 : vector<128xf32> to vector<1x128xf32>
    %77 = vector.broadcast %76 : vector<1x128xf32> to vector<32x128xf32>
    %78 = arith.addf %75, %77 : vector<32x128xf32>
    %cst_33 = arith.constant 0.000000e+00 : f32
    %79 = vector.broadcast %cst_33 : f32 to vector<32x128xf32>
    %80 = arith.maximumf %78, %79 : vector<32x128xf32>
    %81 = vector.shape_cast %80 : vector<32x128xf32> to vector<4x8x128xf32>
    %82 = arith.truncf %81 : vector<4x8x128xf32> to vector<4x8x128xbf16>
    %c0_34 = arith.constant 0 : index
    %c0_35 = arith.constant 0 : index
    %c0_36 = arith.constant 0 : index
    %c0_37 = arith.constant 0 : index
    %83 = vector.load %arg10[%c0_34, %c0_35, %c0_36, %c0_37] : memref<1x4x8x128xbf16, #tpu.memory_space<vmem>>, vector<1x4x8x128xbf16>
    %84 = vector.shape_cast %83 : vector<1x4x8x128xbf16> to vector<4x8x128xbf16>
    %85 = vector.shape_cast %82 : vector<4x8x128xbf16> to vector<1x4x8x128xbf16>
    tpu.vector_store %arg10[%c0_34, %c0_35, %c0_36, %c0_37], %85 {strides = array<i32>} : memref<1x4x8x128xbf16, #tpu.memory_space<vmem>>, vector<1x4x8x128xbf16>,
    return
  }
  func.func @transform_0(%arg0: i32, %arg1: i32) -> (i32, i32, i32, i32) {
    %c0_i32 = arith.constant 0 : i32
    %c0_i32_0 = arith.constant 0 : i32
    %c0_i32_1 = arith.constant 0 : i32
    return %arg0, %arg1, %c0_i32, %c0_i32_0 : i32, i32, i32, i32
  }
  func.func @transform_1(%arg0: i32, %arg1: i32) -> (i32, i32, i32, i32) {
    %c1_i32 = arith.constant 1 : i32
    %0 = arith.addi %arg1, %c1_i32 : i32
    %c0_i32 = arith.constant 0 : i32
    %c0_i32_0 = arith.constant 0 : i32
    %c0_i32_1 = arith.constant 0 : i32
    return %arg0, %0, %c0_i32, %c0_i32_0 : i32, i32, i32, i32
  }
  func.func @transform_2(%arg0: i32, %arg1: i32) -> (i32, i32, i32, i32) {
    %c0_i32 = arith.constant 0 : i32
    %c0_i32_0 = arith.constant 0 : i32
    %c0_i32_1 = arith.constant 0 : i32
    return %arg0, %arg1, %c0_i32, %c0_i32_0 : i32, i32, i32, i32
  }
  func.func @transform_3(%arg0: i32, %arg1: i32) -> (i32, i32, i32, i32) {
    %c1_i32 = arith.constant 1 : i32
    %0 = arith.addi %arg1, %c1_i32 : i32
    %c0_i32 = arith.constant 0 : i32
    %c0_i32_0 = arith.constant 0 : i32
    %c0_i32_1 = arith.constant 0 : i32
    return %arg0, %0, %c0_i32, %c0_i32_0 : i32, i32, i32, i32
  }
  func.func @transform_4(%arg0: i32, %arg1: i32) -> (i32, i32, i32) {
    %c0_i32 = arith.constant 0 : i32
    %c0_i32_0 = arith.constant 0 : i32
    %c0_i32_1 = arith.constant 0 : i32
    %c0_i32_2 = arith.constant 0 : i32
    return %c0_i32, %c0_i32_0, %c0_i32_1 : i32, i32, i32
  }
  func.func @transform_5(%arg0: i32, %arg1: i32) -> (i32, i32) {
    %c0_i32 = arith.constant 0 : i32
    %c0_i32_0 = arith.constant 0 : i32
    %c0_i32_1 = arith.constant 0 : i32
    return %c0_i32, %c0_i32_0 : i32, i32
  }
  func.func @transform_6(%arg0: i32, %arg1: i32) -> (i32, i32) {
    %c0_i32 = arith.constant 0 : i32
    %c0_i32_0 = arith.constant 0 : i32
    %c0_i32_1 = arith.constant 0 : i32
    return %c0_i32, %c0_i32_0 : i32, i32
  }
  func.func @transform_7(%arg0: i32, %arg1: i32) -> (i32, i32, i32, i32) {
    %c0_i32 = arith.constant 0 : i32
    %c0_i32_0 = arith.constant 0 : i32
    %c0_i32_1 = arith.constant 0 : i32
    return %arg0, %arg1, %c0_i32, %c0_i32_0 : i32, i32, i32, i32
  }
  func.func @transform_8(%arg0: i32, %arg1: i32) -> (i32, i32, i32, i32) {
    %c0_i32 = arith.constant 0 : i32
    %c0_i32_0 = arith.constant 0 : i32
    %c0_i32_1 = arith.constant 0 : i32
    return %arg0, %arg1, %c0_i32, %c0_i32_0 : i32, i32, i32, i32
  }
}

module attributes {stable_mosaic.version = 11 : i64} {
  func.func @_conv_bn_loss_kernel(%arg0: i32, %arg1: i32, %arg2: memref<1x4x10x128xbf16, #tpu.memory_space<vmem>>, %arg3: memref<1x4x10x128xbf16, #tpu.memory_space<vmem>>, %arg4: memref<1x4x10x128xbf16, #tpu.memory_space<vmem>>, %arg5: memref<1x4x10x128xbf16, #tpu.memory_space<vmem>>, %arg6: memref<3x384x128xbf16, #tpu.memory_space<vmem>>, %arg7: memref<1x128xf32, #tpu.memory_space<vmem>>, %arg8: memref<1x128xf32, #tpu.memory_space<vmem>>, %arg9: memref<1x1x1x1xf32, #tpu.memory_space<vmem>>) attributes {dimension_semantics = [#tpu.dimension_semantics<parallel>, #tpu.dimension_semantics<parallel>], iteration_bounds = array<i64: 2, 2>, scalar_prefetch = 0 : i64, scratch_operands = 0 : i64, tpu.core_type = #tpu.core_type<tc>, window_params = [{transform_indices = @transform_0, window_bounds = array<i64: 1, 4, 10, 128>}, {transform_indices = @transform_1, window_bounds = array<i64: 1, 4, 10, 128>}, {transform_indices = @transform_2, window_bounds = array<i64: 1, 4, 10, 128>}, {transform_indices = @transform_3, window_bounds = array<i64: 1, 4, 10, 128>}, {pipeline_mode = #tpu.pipeline_mode<synchronous>, transform_indices = @transform_4, window_bounds = array<i64: 3, 384, 128>}, {pipeline_mode = #tpu.pipeline_mode<synchronous>, transform_indices = @transform_5, window_bounds = array<i64: 1, 128>}, {pipeline_mode = #tpu.pipeline_mode<synchronous>, transform_indices = @transform_6, window_bounds = array<i64: 1, 128>}, {transform_indices = @transform_7, window_bounds = array<i64: 1, 1, 1, 1>}]} {
    %c0 = arith.constant 0 : index
    %c0_0 = arith.constant 0 : index
    %c0_1 = arith.constant 0 : index
    %c0_2 = arith.constant 0 : index
    %0 = vector.load %arg2[%c0, %c0_0, %c0_1, %c0_2] : memref<1x4x10x128xbf16, #tpu.memory_space<vmem>>, vector<1x4x10x128xbf16>
    %1 = vector.shape_cast %0 : vector<1x4x10x128xbf16> to vector<4x10x128xbf16>
    %c0_3 = arith.constant 0 : index
    %c0_4 = arith.constant 0 : index
    %c0_5 = arith.constant 0 : index
    %c0_6 = arith.constant 0 : index
    %2 = vector.load %arg3[%c0_3, %c0_4, %c0_5, %c0_6] : memref<1x4x10x128xbf16, #tpu.memory_space<vmem>>, vector<1x2x10x128xbf16>
    %3 = vector.shape_cast %2 : vector<1x2x10x128xbf16> to vector<2x10x128xbf16>
    %4 = tpu.concatenate %1, %3 in 0 : vector<4x10x128xbf16>, vector<2x10x128xbf16> -> vector<6x10x128xbf16>
    %c0_7 = arith.constant 0 : index
    %c0_8 = arith.constant 0 : index
    %c0_9 = arith.constant 0 : index
    %c0_10 = arith.constant 0 : index
    %5 = vector.load %arg4[%c0_7, %c0_8, %c0_9, %c0_10] : memref<1x4x10x128xbf16, #tpu.memory_space<vmem>>, vector<1x4x10x128xbf16>
    %6 = vector.shape_cast %5 : vector<1x4x10x128xbf16> to vector<4x10x128xbf16>
    %c0_11 = arith.constant 0 : index
    %c0_12 = arith.constant 0 : index
    %c0_13 = arith.constant 0 : index
    %c0_14 = arith.constant 0 : index
    %7 = vector.load %arg5[%c0_11, %c0_12, %c0_13, %c0_14] : memref<1x4x10x128xbf16, #tpu.memory_space<vmem>>, vector<1x2x10x128xbf16>
    %8 = vector.shape_cast %7 : vector<1x2x10x128xbf16> to vector<2x10x128xbf16>
    %9 = tpu.concatenate %6, %8 in 0 : vector<4x10x128xbf16>, vector<2x10x128xbf16> -> vector<6x10x128xbf16>
    %10 = vector.extract_strided_slice %4 {offsets = [0, 0, 0], sizes = [4, 8, 128], strides = [1, 1, 1]} : vector<6x10x128xbf16> to vector<4x8x128xbf16>
    %11 = vector.extract_strided_slice %4 {offsets = [0, 1, 0], sizes = [4, 8, 128], strides = [1, 1, 1]} : vector<6x10x128xbf16> to vector<4x8x128xbf16>
    %12 = vector.extract_strided_slice %4 {offsets = [0, 2, 0], sizes = [4, 8, 128], strides = [1, 1, 1]} : vector<6x10x128xbf16> to vector<4x8x128xbf16>
    %13 = tpu.concatenate %10, %11, %12 in 2 : vector<4x8x128xbf16>, vector<4x8x128xbf16>, vector<4x8x128xbf16> -> vector<4x8x384xbf16>
    %14 = vector.shape_cast %13 : vector<4x8x384xbf16> to vector<32x384xbf16>
    %15 = vector.extract_strided_slice %9 {offsets = [0, 0, 0], sizes = [4, 8, 128], strides = [1, 1, 1]} : vector<6x10x128xbf16> to vector<4x8x128xbf16>
    %16 = vector.extract_strided_slice %9 {offsets = [0, 1, 0], sizes = [4, 8, 128], strides = [1, 1, 1]} : vector<6x10x128xbf16> to vector<4x8x128xbf16>
    %17 = vector.extract_strided_slice %9 {offsets = [0, 2, 0], sizes = [4, 8, 128], strides = [1, 1, 1]} : vector<6x10x128xbf16> to vector<4x8x128xbf16>
    %18 = tpu.concatenate %15, %16, %17 in 2 : vector<4x8x128xbf16>, vector<4x8x128xbf16>, vector<4x8x128xbf16> -> vector<4x8x384xbf16>
    %19 = vector.shape_cast %18 : vector<4x8x384xbf16> to vector<32x384xbf16>
    %20 = tpu.concatenate %14, %19 in 0 : vector<32x384xbf16>, vector<32x384xbf16> -> vector<64x384xbf16>
    %c0_15 = arith.constant 0 : index
    %c0_16 = arith.constant 0 : index
    %c0_17 = arith.constant 0 : index
    %21 = vector.load %arg6[%c0_15, %c0_16, %c0_17] : memref<3x384x128xbf16, #tpu.memory_space<vmem>>, vector<1x384x128xbf16>
    %22 = vector.shape_cast %21 : vector<1x384x128xbf16> to vector<384x128xbf16>
    %cst = arith.constant dense<0.000000e+00> : vector<64x128xf32>
    %23 = tpu.matmul %20, %22, %cst {dimension_numbers = #tpu.dot_dimension_numbers<[1], [0], [0], [1], [0, 0, 1, 1], [], []>} : vector<64x384xbf16>, vector<384x128xbf16>, vector<64x128xf32> -> vector<64x128xf32>
    %24 = vector.extract_strided_slice %4 {offsets = [1, 0, 0], sizes = [4, 8, 128], strides = [1, 1, 1]} : vector<6x10x128xbf16> to vector<4x8x128xbf16>
    %25 = vector.extract_strided_slice %4 {offsets = [1, 1, 0], sizes = [4, 8, 128], strides = [1, 1, 1]} : vector<6x10x128xbf16> to vector<4x8x128xbf16>
    %26 = vector.extract_strided_slice %4 {offsets = [1, 2, 0], sizes = [4, 8, 128], strides = [1, 1, 1]} : vector<6x10x128xbf16> to vector<4x8x128xbf16>
    %27 = tpu.concatenate %24, %25, %26 in 2 : vector<4x8x128xbf16>, vector<4x8x128xbf16>, vector<4x8x128xbf16> -> vector<4x8x384xbf16>
    %28 = vector.shape_cast %27 : vector<4x8x384xbf16> to vector<32x384xbf16>
    %29 = vector.extract_strided_slice %9 {offsets = [1, 0, 0], sizes = [4, 8, 128], strides = [1, 1, 1]} : vector<6x10x128xbf16> to vector<4x8x128xbf16>
    %30 = vector.extract_strided_slice %9 {offsets = [1, 1, 0], sizes = [4, 8, 128], strides = [1, 1, 1]} : vector<6x10x128xbf16> to vector<4x8x128xbf16>
    %31 = vector.extract_strided_slice %9 {offsets = [1, 2, 0], sizes = [4, 8, 128], strides = [1, 1, 1]} : vector<6x10x128xbf16> to vector<4x8x128xbf16>
    %32 = tpu.concatenate %29, %30, %31 in 2 : vector<4x8x128xbf16>, vector<4x8x128xbf16>, vector<4x8x128xbf16> -> vector<4x8x384xbf16>
    %33 = vector.shape_cast %32 : vector<4x8x384xbf16> to vector<32x384xbf16>
    %34 = tpu.concatenate %28, %33 in 0 : vector<32x384xbf16>, vector<32x384xbf16> -> vector<64x384xbf16>
    %c1 = arith.constant 1 : index
    %c0_18 = arith.constant 0 : index
    %c0_19 = arith.constant 0 : index
    %35 = vector.load %arg6[%c1, %c0_18, %c0_19] : memref<3x384x128xbf16, #tpu.memory_space<vmem>>, vector<1x384x128xbf16>
    %36 = vector.shape_cast %35 : vector<1x384x128xbf16> to vector<384x128xbf16>
    %cst_20 = arith.constant dense<0.000000e+00> : vector<64x128xf32>
    %37 = tpu.matmul %34, %36, %cst_20 {dimension_numbers = #tpu.dot_dimension_numbers<[1], [0], [0], [1], [0, 0, 1, 1], [], []>} : vector<64x384xbf16>, vector<384x128xbf16>, vector<64x128xf32> -> vector<64x128xf32>
    %38 = arith.addf %23, %37 : vector<64x128xf32>
    %39 = vector.extract_strided_slice %4 {offsets = [2, 0, 0], sizes = [4, 8, 128], strides = [1, 1, 1]} : vector<6x10x128xbf16> to vector<4x8x128xbf16>
    %40 = vector.extract_strided_slice %4 {offsets = [2, 1, 0], sizes = [4, 8, 128], strides = [1, 1, 1]} : vector<6x10x128xbf16> to vector<4x8x128xbf16>
    %41 = vector.extract_strided_slice %4 {offsets = [2, 2, 0], sizes = [4, 8, 128], strides = [1, 1, 1]} : vector<6x10x128xbf16> to vector<4x8x128xbf16>
    %42 = tpu.concatenate %39, %40, %41 in 2 : vector<4x8x128xbf16>, vector<4x8x128xbf16>, vector<4x8x128xbf16> -> vector<4x8x384xbf16>
    %43 = vector.shape_cast %42 : vector<4x8x384xbf16> to vector<32x384xbf16>
    %44 = vector.extract_strided_slice %9 {offsets = [2, 0, 0], sizes = [4, 8, 128], strides = [1, 1, 1]} : vector<6x10x128xbf16> to vector<4x8x128xbf16>
    %45 = vector.extract_strided_slice %9 {offsets = [2, 1, 0], sizes = [4, 8, 128], strides = [1, 1, 1]} : vector<6x10x128xbf16> to vector<4x8x128xbf16>
    %46 = vector.extract_strided_slice %9 {offsets = [2, 2, 0], sizes = [4, 8, 128], strides = [1, 1, 1]} : vector<6x10x128xbf16> to vector<4x8x128xbf16>
    %47 = tpu.concatenate %44, %45, %46 in 2 : vector<4x8x128xbf16>, vector<4x8x128xbf16>, vector<4x8x128xbf16> -> vector<4x8x384xbf16>
    %48 = vector.shape_cast %47 : vector<4x8x384xbf16> to vector<32x384xbf16>
    %49 = tpu.concatenate %43, %48 in 0 : vector<32x384xbf16>, vector<32x384xbf16> -> vector<64x384xbf16>
    %c2 = arith.constant 2 : index
    %c0_21 = arith.constant 0 : index
    %c0_22 = arith.constant 0 : index
    %50 = vector.load %arg6[%c2, %c0_21, %c0_22] : memref<3x384x128xbf16, #tpu.memory_space<vmem>>, vector<1x384x128xbf16>
    %51 = vector.shape_cast %50 : vector<1x384x128xbf16> to vector<384x128xbf16>
    %cst_23 = arith.constant dense<0.000000e+00> : vector<64x128xf32>
    %52 = tpu.matmul %49, %51, %cst_23 {dimension_numbers = #tpu.dot_dimension_numbers<[1], [0], [0], [1], [0, 0, 1, 1], [], []>} : vector<64x384xbf16>, vector<384x128xbf16>, vector<64x128xf32> -> vector<64x128xf32>
    %53 = arith.addf %38, %52 : vector<64x128xf32>
    %54 = vector.extract_strided_slice %53 {offsets = [0, 0], sizes = [32, 128], strides = [1, 1]} : vector<64x128xf32> to vector<32x128xf32>
    %55 = vector.extract_strided_slice %53 {offsets = [32, 0], sizes = [32, 128], strides = [1, 1]} : vector<64x128xf32> to vector<32x128xf32>
    %c0_24 = arith.constant 0 : index
    %c0_25 = arith.constant 0 : index
    %56 = vector.load %arg7[%c0_24, %c0_25] : memref<1x128xf32, #tpu.memory_space<vmem>>, vector<1x128xf32>
    %57 = vector.shape_cast %56 : vector<1x128xf32> to vector<128xf32>
    %c0_26 = arith.constant 0 : index
    %c0_27 = arith.constant 0 : index
    %58 = vector.load %arg8[%c0_26, %c0_27] : memref<1x128xf32, #tpu.memory_space<vmem>>, vector<1x128xf32>
    %59 = vector.shape_cast %58 : vector<1x128xf32> to vector<128xf32>
    %60 = vector.shape_cast %57 : vector<128xf32> to vector<1x128xf32>
    %61 = vector.broadcast %60 : vector<1x128xf32> to vector<32x128xf32>
    %62 = arith.mulf %54, %61 : vector<32x128xf32>
    %63 = vector.shape_cast %59 : vector<128xf32> to vector<1x128xf32>
    %64 = vector.broadcast %63 : vector<1x128xf32> to vector<32x128xf32>
    %65 = arith.addf %62, %64 : vector<32x128xf32>
    %66 = vector.shape_cast %57 : vector<128xf32> to vector<1x128xf32>
    %67 = vector.broadcast %66 : vector<1x128xf32> to vector<32x128xf32>
    %68 = arith.mulf %55, %67 : vector<32x128xf32>
    %69 = vector.shape_cast %59 : vector<128xf32> to vector<1x128xf32>
    %70 = vector.broadcast %69 : vector<1x128xf32> to vector<32x128xf32>
    %71 = arith.addf %68, %70 : vector<32x128xf32>
    %72 = arith.subf %65, %71 : vector<32x128xf32>
    %73 = math.absf %72 : vector<32x128xf32>
    %cst_28 = arith.constant dense<0.000000e+00> : vector<128xf32>
    %74 = vector.multi_reduction <add>, %73, %cst_28 [0] : vector<32x128xf32> to vector<128xf32>
    %75 = vector.shape_cast %74 : vector<128xf32> to vector<1x128xf32>
    %cst_29 = arith.constant dense<0.000000e+00> : vector<1xf32>
    %76 = vector.multi_reduction <add>, %75, %cst_29 [1] : vector<1x128xf32> to vector<1xf32>
    %77 = vector.shape_cast %76 : vector<1xf32> to vector<1x1xf32>
    %78 = vector.shape_cast %77 : vector<1x1xf32> to vector<1x1x1x1xf32>
    %c0_30 = arith.constant 0 : index
    %c0_31 = arith.constant 0 : index
    %c0_32 = arith.constant 0 : index
    %c0_33 = arith.constant 0 : index
    %79 = vector.load %arg9[%c0_30, %c0_31, %c0_32, %c0_33] : memref<1x1x1x1xf32, #tpu.memory_space<vmem>>, vector<1x1x1x1xf32>
    tpu.vector_store %arg9[%c0_30, %c0_31, %c0_32, %c0_33], %78 {strides = array<i32>} : memref<1x1x1x1xf32, #tpu.memory_space<vmem>>, vector<1x1x1x1xf32>,
    return
  }
  func.func @transform_0(%arg0: i32, %arg1: i32) -> (i32, i32, i32, i32) {
    %c0_i32 = arith.constant 0 : i32
    %c0_i32_0 = arith.constant 0 : i32
    %c0_i32_1 = arith.constant 0 : i32
    return %arg0, %arg1, %c0_i32, %c0_i32_0 : i32, i32, i32, i32
  }
  func.func @transform_1(%arg0: i32, %arg1: i32) -> (i32, i32, i32, i32) {
    %c1_i32 = arith.constant 1 : i32
    %0 = arith.addi %arg1, %c1_i32 : i32
    %c0_i32 = arith.constant 0 : i32
    %c0_i32_0 = arith.constant 0 : i32
    %c0_i32_1 = arith.constant 0 : i32
    return %arg0, %0, %c0_i32, %c0_i32_0 : i32, i32, i32, i32
  }
  func.func @transform_2(%arg0: i32, %arg1: i32) -> (i32, i32, i32, i32) {
    %c0_i32 = arith.constant 0 : i32
    %c0_i32_0 = arith.constant 0 : i32
    %c0_i32_1 = arith.constant 0 : i32
    return %arg0, %arg1, %c0_i32, %c0_i32_0 : i32, i32, i32, i32
  }
  func.func @transform_3(%arg0: i32, %arg1: i32) -> (i32, i32, i32, i32) {
    %c1_i32 = arith.constant 1 : i32
    %0 = arith.addi %arg1, %c1_i32 : i32
    %c0_i32 = arith.constant 0 : i32
    %c0_i32_0 = arith.constant 0 : i32
    %c0_i32_1 = arith.constant 0 : i32
    return %arg0, %0, %c0_i32, %c0_i32_0 : i32, i32, i32, i32
  }
  func.func @transform_4(%arg0: i32, %arg1: i32) -> (i32, i32, i32) {
    %c0_i32 = arith.constant 0 : i32
    %c0_i32_0 = arith.constant 0 : i32
    %c0_i32_1 = arith.constant 0 : i32
    %c0_i32_2 = arith.constant 0 : i32
    return %c0_i32, %c0_i32_0, %c0_i32_1 : i32, i32, i32
  }
  func.func @transform_5(%arg0: i32, %arg1: i32) -> (i32, i32) {
    %c0_i32 = arith.constant 0 : i32
    %c0_i32_0 = arith.constant 0 : i32
    %c0_i32_1 = arith.constant 0 : i32
    return %c0_i32, %c0_i32_0 : i32, i32
  }
  func.func @transform_6(%arg0: i32, %arg1: i32) -> (i32, i32) {
    %c0_i32 = arith.constant 0 : i32
    %c0_i32_0 = arith.constant 0 : i32
    %c0_i32_1 = arith.constant 0 : i32
    return %c0_i32, %c0_i32_0 : i32, i32
  }
  func.func @transform_7(%arg0: i32, %arg1: i32) -> (i32, i32, i32, i32) {
    %c0_i32 = arith.constant 0 : i32
    %c0_i32_0 = arith.constant 0 : i32
    %c0_i32_1 = arith.constant 0 : i32
    return %arg0, %arg1, %c0_i32, %c0_i32_0 : i32, i32, i32, i32
  }
}

</mosaic_0001>

<llo_original>
// kernel: feature_loss.4
$region0: #{feature_loss.4}
  #allocation0 [shape = 'u32[]', space=smem, size = 0x4, offset = 0x4, fixed_abs, tag = 'smem constant byte address 0x4 - core index']
  #allocation1 [shape = 'u32[144,128]{1,0:T(1,128)}', space=vmem, size = 0x12000, scoped, tag = 'internal scratch']
  %s0 = inlined_call_operand.vmem [shape: bf16[2,16,16,27], index: 0, kind: input, shape index: {}]
  %s1 = inlined_call_operand.vmem [shape: bf16[2,16,16,27], index: 1, kind: input, shape index: {}]
  %s2 = inlined_call_operand.vmem [shape: bf16[27,64], index: 2, kind: input, shape index: {}]
  %s3 = inlined_call_operand.vmem [shape: f32[1,64], index: 3, kind: input, shape index: {}]
  %s4 = inlined_call_operand.vmem [shape: f32[1,64], index: 4, kind: input, shape index: {}]
  %s5 = inlined_call_operand.vmem [shape: bf16[2,16,16,64], index: 5, kind: output, shape index: {0}]
  %s6 = inlined_call_operand.vmem [shape: bf16[2,16,16,64], index: 6, kind: output, shape index: {1}]
  %7 = xla_tuple %s5, %s6
  %s8 = sld [smem:[#allocation0]]
  $region61: #{feature_loss.4} parent=0
    _
  %s10 = ssub.s32 1, %s8
  %s11 = scalar_select 0, %s10, %s8
  loop: start=0, step=1, limit=10
  $region2: #{feature_loss.4} parent=0 // loop_pre_header
    _
  $region3: #{feature_loss.4} parent=0 // loop_header
    %s13 = sphi 0, %s17
    %p14 = scmp.ge.s32.totalorder %s13, 10
    %s20 = sphi 0, %s32
    %s21 = sphi 0, %s28
    %s22 = sphi 0, %s20
    %s23 = sphi 0, %s21
    %s24 = sphi 0, %s22
    %s25 = sphi 0, %s23
    %s37 = sphi 0, %s39
    %s40 = sphi 0, %s37
    %s41 = sphi 0, %s40
    %s57 = sphi 0, %s41
    %s65 = sphi 0, %s67
    %s68 = sphi 0, %s65
    %s69 = sphi 0, %s68
    %s85 = sphi 0, %s69
    %s89 = sphi 0, %s89
    %s91 = sphi 0, %s89
    %s92 = sphi 0, %s91
    %s106 = sphi 0, %s92
    %s110 = sphi 0, %s110
    %s112 = sphi 0, %s110
    %s113 = sphi 0, %s112
    %s127 = sphi 0, %s113
    %s131 = sphi 0, %s131
    %s133 = sphi 0, %s131
    %s134 = sphi 0, %s133
    %s148 = sphi 0, %s134
    %s156 = sphi 0, %s158
    %s159 = sphi 0, %s156
    %s160 = sphi 0, %s159
    %s176 = sphi 0, %s160
    %s184 = sphi 0, %s186
    %s187 = sphi 0, %s184
    %s188 = sphi 0, %s187
    %s204 = sphi 0, %s188
  $region4: #{feature_loss.4} parent=0 // loop_header_branch
    %16 = sbr.rel (%p14) target = $region8
  $region5: #{feature_loss.4} parent=0 // loop_body
    %s18 = ssub.s32 %s13, 1
    %s19 = ssub.s32 %s13, 2
    %s26 = sadd.s32 1, %s21
    %p27 = scmp.ge.s32.totalorder %s26, 4
    %s28 = scalar_select %p27, 0, %s26
    %s29 = sadd.s32 1, %s20
    %s30 = scalar_select %p27, %s29, %s20
    %p31 = scmp.ge.s32.totalorder %s30, 2
    %s32 = scalar_select %p31, 0, %s30
    %s33 = ssub.s32 %s20, %s32
    %s34 = ssub.s32 %s21, %s28
    %s35 = sor.u32 %s33, %s34
    %p36 = scmp.eq.s32.totalorder %s35, 0
    %s38 = sadd.s32 %s37, 1
    %s39 = scalar_select %p36, %s37, %s38
    %p42 = pneg %p36
    %p43 = scmp.eq.s32.totalorder %s13, 7
    %p44 = por %p42, %p43
    %p45 = scmp.ne.s32.totalorder %s37, %s40
    %p46 = scmp.eq.s32.totalorder %s13, 0
    %p47 = por %p45, %p46
    %p48 = scmp.ne.s32.totalorder %s37, %s40
    %p49 = scmp.eq.s32.totalorder %s18, 7
    %p50 = por %p48, %p49
    %p51 = scmp.ne.s32.totalorder %s40, %s41
    %p52 = scmp.eq.s32.totalorder %s18, 0
    %p53 = por %p51, %p52
    %p54 = scmp.ne.s32.totalorder %s40, %s41
    %p55 = scmp.eq.s32.totalorder %s19, 7
    %p56 = por %p54, %p55
    %p58 = scmp.ne.s32.totalorder %s41, %s57
    %p59 = scmp.eq.s32.totalorder %s19, 0
    %p60 = por %p58, %p59
    %s61 = ssub.s32 %s20, %s32
    %s62 = ssub.s32 %s21, %s28
    %s63 = sor.u32 %s61, %s62
    %p64 = scmp.eq.s32.totalorder %s63, 0
    %s66 = sadd.s32 %s65, 1
    %s67 = scalar_select %p64, %s65, %s66
    %p70 = pneg %p64
    %p71 = scmp.eq.s32.totalorder %s13, 7
    %p72 = por %p70, %p71
    %p73 = scmp.ne.s32.totalorder %s65, %s68
    %p74 = scmp.eq.s32.totalorder %s13, 0
    %p75 = por %p73, %p74
    %p76 = scmp.ne.s32.totalorder %s65, %s68
    %p77 = scmp.eq.s32.totalorder %s18, 7
    %p78 = por %p76, %p77
    %p79 = scmp.ne.s32.totalorder %s68, %s69
    %p80 = scmp.eq.s32.totalorder %s18, 0
    %p81 = por %p79, %p80
    %p82 = scmp.ne.s32.totalorder %s68, %s69
    %p83 = scmp.eq.s32.totalorder %s19, 7
    %p84 = por %p82, %p83
    %p86 = scmp.ne.s32.totalorder %s69, %s85
    %p87 = scmp.eq.s32.totalorder %s19, 0
    %p88 = por %p86, %p87
    %s90 = sadd.s32 %s89, 1
    %p93 = scmp.eq.s32.totalorder %s13, 7
    %p94 = scmp.ne.s32.totalorder %s89, %s91
    %p95 = scmp.eq.s32.totalorder %s13, 0
    %p96 = por %p94, %p95
    %p97 = scmp.ne.s32.totalorder %s89, %s91
    %p98 = scmp.eq.s32.totalorder %s18, 7
    %p99 = por %p97, %p98
    %p100 = scmp.ne.s32.totalorder %s91, %s92
    %p101 = scmp.eq.s32.totalorder %s18, 0
    %p102 = por %p100, %p101
    %p103 = scmp.ne.s32.totalorder %s91, %s92
    %p104 = scmp.eq.s32.totalorder %s19, 7
    %p105 = por %p103, %p104
    %p107 = scmp.ne.s32.totalorder %s92, %s106
    %p108 = scmp.eq.s32.totalorder %s19, 0
    %p109 = por %p107, %p108
    %s111 = sadd.s32 %s110, 1
    %p114 = scmp.eq.s32.totalorder %s13, 7
    %p115 = scmp.ne.s32.totalorder %s110, %s112
    %p116 = scmp.eq.s32.totalorder %s13, 0
    %p117 = por %p115, %p116
    %p118 = scmp.ne.s32.totalorder %s110, %s112
    %p119 = scmp.eq.s32.totalorder %s18, 7
    %p120 = por %p118, %p119
    %p121 = scmp.ne.s32.totalorder %s112, %s113
    %p122 = scmp.eq.s32.totalorder %s18, 0
    %p123 = por %p121, %p122
    %p124 = scmp.ne.s32.totalorder %s112, %s113
    %p125 = scmp.eq.s32.totalorder %s19, 7
    %p126 = por %p124, %p125
    %p128 = scmp.ne.s32.totalorder %s113, %s127
    %p129 = scmp.eq.s32.totalorder %s19, 0
    %p130 = por %p128, %p129
    %s132 = sadd.s32 %s131, 1
    %p135 = scmp.eq.s32.totalorder %s13, 7
    %p136 = scmp.ne.s32.totalorder %s131, %s133
    %p137 = scmp.eq.s32.totalorder %s13, 0
    %p138 = por %p136, %p137
    %p139 = scmp.ne.s32.totalorder %s131, %s133
    %p140 = scmp.eq.s32.totalorder %s18, 7
    %p141 = por %p139, %p140
    %p142 = scmp.ne.s32.totalorder %s133, %s134
    %p143 = scmp.eq.s32.totalorder %s18, 0
    %p144 = por %p142, %p143
    %p145 = scmp.ne.s32.totalorder %s133, %s134
    %p146 = scmp.eq.s32.totalorder %s19, 7
    %p147 = por %p145, %p146
    %p149 = scmp.ne.s32.totalorder %s134, %s148
    %p150 = scmp.eq.s32.totalorder %s19, 0
    %p151 = por %p149, %p150
    %s152 = ssub.s32 %s20, %s32
    %s153 = ssub.s32 %s21, %s28
    %s154 = sor.u32 %s152, %s153
    %p155 = scmp.eq.s32.totalorder %s154, 0
    %s157 = sadd.s32 %s156, 1
    %s158 = scalar_select %p155, %s156, %s157
    %p161 = pneg %p155
    %p162 = scmp.eq.s32.totalorder %s13, 7
    %p163 = por %p161, %p162
    %p164 = scmp.ne.s32.totalorder %s156, %s159
    %p165 = scmp.eq.s32.totalorder %s13, 0
    %p166 = por %p164, %p165
    %p167 = scmp.ne.s32.totalorder %s156, %s159
    %p168 = scmp.eq.s32.totalorder %s18, 7
    %p169 = por %p167, %p168
    %p170 = scmp.ne.s32.totalorder %s159, %s160
    %p171 = scmp.eq.s32.totalorder %s18, 0
    %p172 = por %p170, %p171
    %p173 = scmp.ne.s32.totalorder %s159, %s160
    %p174 = scmp.eq.s32.totalorder %s19, 7
    %p175 = por %p173, %p174
    %p177 = scmp.ne.s32.totalorder %s160, %s176
    %p178 = scmp.eq.s32.totalorder %s19, 0
    %p179 = por %p177, %p178
    %s180 = ssub.s32 %s20, %s32
    %s181 = ssub.s32 %s21, %s28
    %s182 = sor.u32 %s180, %s181
    %p183 = scmp.eq.s32.totalorder %s182, 0
    %s185 = sadd.s32 %s184, 1
    %s186 = scalar_select %p183, %s184, %s185
    %p189 = pneg %p183
    %p190 = scmp.eq.s32.totalorder %s13, 7
    %p191 = por %p189, %p190
    %p192 = scmp.ne.s32.totalorder %s184, %s187
    %p193 = scmp.eq.s32.totalorder %s13, 0
    %p194 = por %p192, %p193
    %p195 = scmp.ne.s32.totalorder %s184, %s187
    %p196 = scmp.eq.s32.totalorder %s18, 7
    %p197 = por %p195, %p196
    %p198 = scmp.ne.s32.totalorder %s187, %s188
    %p199 = scmp.eq.s32.totalorder %s18, 0
    %p200 = por %p198, %p199
    %p201 = scmp.ne.s32.totalorder %s187, %s188
    %p202 = scmp.eq.s32.totalorder %s19, 7
    %p203 = por %p201, %p202
    %p205 = scmp.ne.s32.totalorder %s188, %s204
    %p206 = scmp.eq.s32.totalorder %s19, 0
    %p207 = por %p205, %p206
    %p208 = scmp.le.s32.totalorder 1, %s13
    %p209 = scmp.lt.s32.totalorder %s13, 9
    %p210 = pnand %p208, %p209
    %p211 = pneg %p210
    // Predicated region
    $region9: #{feature_loss.4} parent=5 // pred_check
      _
    $region10: #{feature_loss.4} parent=5 // pred_check_branch
      %213 = sbr.rel (%p210) target = $region12
    $region11: #{feature_loss.4} parent=5 // pred_region
      %s214 = ssub.s32 %s13, 1
      // Predicated region
      $region13: #{feature_loss.4} parent=11 // pred_check
        %p215 = pneg %p102
      $region14: #{feature_loss.4} parent=11 // pred_check_branch
        %217 = sbr.rel (%p215) target = $region16
      $region15: #{feature_loss.4} parent=11 // pred_region
        _
      $region16: #{feature_loss.4} parent=11 // pred_fallthru
        _
      // Predicated region
      $region17: #{feature_loss.4} parent=11 // pred_check
        %p218 = pneg %p123
      $region18: #{feature_loss.4} parent=11 // pred_check_branch
        %220 = sbr.rel (%p218) target = $region20
      $region19: #{feature_loss.4} parent=11 // pred_region
        _
      $region20: #{feature_loss.4} parent=11 // pred_fallthru
        _
      // Predicated region
      $region21: #{feature_loss.4} parent=11 // pred_check
        %p221 = pneg %p144
      $region22: #{feature_loss.4} parent=11 // pred_check_branch
        %223 = sbr.rel (%p221) target = $region24
      $region23: #{feature_loss.4} parent=11 // pred_region
        _
      $region24: #{feature_loss.4} parent=11 // pred_fallthru
        _
    $region12: #{feature_loss.4} parent=5 // pred_fallthru
      _
    %p224 = scmp.lt.s32.totalorder %s13, 8
    // Predicated region
    $region25: #{feature_loss.4} parent=5 // pred_check
      %p225 = pneg %p224
    $region26: #{feature_loss.4} parent=5 // pred_check_branch
      %227 = sbr.rel (%p225) target = $region28
    $region27: #{feature_loss.4} parent=5 // pred_region
      // Predicated region
      $region29: #{feature_loss.4} parent=27 // pred_check
        %p228 = pneg %p47
      $region30: #{feature_loss.4} parent=27 // pred_check_branch
        %230 = sbr.rel (%p228) target = $region32
      $region31: #{feature_loss.4} parent=27 // pred_region
        %s231 = smul.u32 4, %s21
        %p232 = scmp.lt.s32.totalorder %s20, 1
        %s233 = scalar_select %p232, %s20, 1
        %p234 = scmp.lt.s32.totalorder %s231, 15
        %s235 = scalar_select %p234, %s231, 15
        %s236 = smul.addr %s235, 2
        %s237 = smul.addr %s233, 32
        %s238 = sadd.s32 %s236, %s237
        %s239 = smul.addr %s238, 4
        %s240 = scalar_lea.vmem %s0, %s239
        %s241 = smul.u32 4, %s21
      $region32: #{feature_loss.4} parent=27 // pred_fallthru
        _
      // Predicated region
      $region33: #{feature_loss.4} parent=27 // pred_check
        %p242 = pneg %p75
      $region34: #{feature_loss.4} parent=27 // pred_check_branch
        %244 = sbr.rel (%p242) target = $region36
      $region35: #{feature_loss.4} parent=27 // pred_region
        %s245 = smul.u32 4, %s21
        %p246 = scmp.lt.s32.totalorder %s20, 1
        %s247 = scalar_select %p246, %s20, 1
        %p248 = scmp.lt.s32.totalorder %s245, 15
        %s249 = scalar_select %p248, %s245, 15
        %s250 = smul.addr %s249, 2
        %s251 = smul.addr %s247, 32
        %s252 = sadd.s32 %s250, %s251
        %s253 = smul.addr %s252, 4
        %s254 = scalar_lea.vmem %s1, %s253
        %s255 = smul.u32 4, %s21
      $region36: #{feature_loss.4} parent=27 // pred_fallthru
        _
    $region28: #{feature_loss.4} parent=5 // pred_fallthru
      _
    %p256 = scmp.le.s32.totalorder 1, %s13
    %p257 = scmp.lt.s32.totalorder %s13, 9
    %p258 = pnand %p256, %p257
    %p259 = pneg %p258
    // Predicated region
    $region37: #{feature_loss.4} parent=5 // pred_check
      _
    $region38: #{feature_loss.4} parent=5 // pred_check_branch
      %261 = sbr.rel (%p258) target = $region40
    $region39: #{feature_loss.4} parent=5 // pred_region
      %s262 = ssub.s32 %s13, 1
      %s263 = smul.u32 4, %s23
      %p264 = scmp.lt.s32.totalorder %s22, 1
      %s265 = scalar_select %p264, %s22, 1
      %p266 = scmp.lt.s32.totalorder %s263, 15
      %s267 = scalar_select %p266, %s263, 15
      %s268 = smul.addr %s267, 2
      %s269 = smul.addr %s265, 32
      %s270 = sadd.s32 %s268, %s269
      %s271 = smul.addr %s270, 4
      %s272 = scalar_lea.vmem %s0, %s271
      %p273 = pneg %p53
      %p274 = pneg %p50
      %s275 = smul.u32 4, %s23
      %p276 = scmp.lt.s32.totalorder %s22, 1
      %s277 = scalar_select %p276, %s22, 1
      %p278 = scmp.lt.s32.totalorder %s275, 15
      %s279 = scalar_select %p278, %s275, 15
      %s280 = smul.addr %s279, 2
      %s281 = smul.addr %s277, 32
      %s282 = sadd.s32 %s280, %s281
      %s283 = smul.addr %s282, 4
      %s284 = scalar_lea.vmem %s1, %s283
      %p285 = pneg %p81
      %p286 = pneg %p78
      %p287 = pneg %p102
      %p288 = pneg %p99
      %p289 = pneg %p123
      %p290 = pneg %p120
      %p291 = pneg %p144
      %p292 = pneg %p141
      %p293 = pneg %p172
      %p294 = pneg %p169
      %s295 = smul.u32 4, %s23
      %p296 = scmp.lt.s32.totalorder %s22, 1
      %s297 = scalar_select %p296, %s22, 1
      %p298 = scmp.lt.s32.totalorder %s295, 15
      %s299 = scalar_select %p298, %s295, 15
      %s300 = smul.addr %s299, 2
      %s301 = smul.addr %s297, 32
      %s302 = sadd.s32 %s300, %s301
      %s303 = smul.addr %s302, 4
      %s304 = scalar_lea.vmem %s5, %s303
      %p305 = pneg %p200
      %p306 = pneg %p197
      %s307 = smul.u32 4, %s23
      %p308 = scmp.lt.s32.totalorder %s22, 1
      %s309 = scalar_select %p308, %s22, 1
      %p310 = scmp.lt.s32.totalorder %s307, 15
      %s311 = scalar_select %p310, %s307, 15
      %s312 = smul.addr %s311, 2
      %s313 = smul.addr %s309, 32
      %s314 = sadd.s32 %s312, %s313
      %s315 = smul.addr %s314, 4
      %s316 = scalar_lea.vmem %s6, %s315
      %s317 = smul.u32 4, %s23
      %p318 = scmp.lt.s32.totalorder %s22, 1
      %s319 = scalar_select %p318, %s22, 1
      %p320 = scmp.lt.s32.totalorder %s317, 15
      %s321 = scalar_select %p320, %s317, 15
      %s322 = smul.addr %s321, 2
      %s323 = smul.addr %s319, 32
      %s324 = sadd.s32 %s322, %s323
      %s325 = smul.addr %s324, 4
      %s326 = scalar_lea.vmem %s0, %s325
      %s327 = smul.u32 4, %s23
      %s328 = smul.u32 4, %s23
      %p329 = scmp.lt.s32.totalorder %s22, 1
      %s330 = scalar_select %p329, %s22, 1
      %p331 = scmp.lt.s32.totalorder %s328, 15
      %s332 = scalar_select %p331, %s328, 15
      %s333 = smul.addr %s332, 2
      %s334 = smul.addr %s330, 32
      %s335 = sadd.s32 %s333, %s334
      %s336 = smul.addr %s335, 4
      %s337 = scalar_lea.vmem %s1, %s336
      %s338 = smul.u32 4, %s23
      %s339 = smul.u32 4, %s23
      %p340 = scmp.lt.s32.totalorder %s22, 1
      %s341 = scalar_select %p340, %s22, 1
      %p342 = scmp.lt.s32.totalorder %s339, 15
      %s343 = scalar_select %p342, %s339, 15
      %s344 = smul.addr %s343, 2
      %s345 = smul.addr %s341, 32
      %s346 = sadd.s32 %s344, %s345
      %s347 = smul.addr %s346, 4
      %s348 = scalar_lea.vmem %s5, %s347
      %s349 = smul.u32 4, %s23
      %s350 = smul.u32 4, %s23
      %p351 = scmp.lt.s32.totalorder %s22, 1
      %s352 = scalar_select %p351, %s22, 1
      %p353 = scmp.lt.s32.totalorder %s350, 15
      %s354 = scalar_select %p353, %s350, 15
      %s355 = smul.addr %s354, 2
      %s356 = smul.addr %s352, 32
      %s357 = sadd.s32 %s355, %s356
      %s358 = smul.addr %s357, 4
      %s359 = scalar_lea.vmem %s6, %s358
      %s360 = smul.u32 4, %s23
      %v362 = vld [vmem:[%s326] sm:$0xf]
      %v363 = vld [vmem:[%s326 + $0x4] sm:$0xf]
      %v364 = vld [vmem:[%s326 + $0x8] sm:$0xf]
      %v365 = vld [vmem:[%s326 + $0xc] sm:$0xf]
      %v366 = vld [vmem:[%s326 + $0x10] sm:$0xf]
      %v367 = vld [vmem:[%s326 + $0x14] sm:$0xf]
      %v368 = vld [vmem:[%s326 + $0x18] sm:$0xf]
      %v369 = vld [vmem:[%s326 + $0x1c] sm:$0xf]
      %v370 = vld [vmem:[%s337] sm:$0xf]
      %v371 = vld [vmem:[%s337 + $0x4] sm:$0xf]
      %v372 = vld [vmem:[%s337 + $0x8] sm:$0xf]
      %v373 = vld [vmem:[%s337 + $0xc] sm:$0xf]
      %v374 = vld [vmem:[%s337 + $0x10] sm:$0xf]
      %v375 = vld [vmem:[%s337 + $0x14] sm:$0xf]
      %v376 = vld [vmem:[%s337 + $0x18] sm:$0xf]
      %v377 = vld [vmem:[%s337 + $0x1c] sm:$0xf]
      %v386 = vunpack.c.l.b16 %v362
      %v387 = vunpack.c.l.b16 %v363
      %v388 = vunpack.c.l.b16 %v364
      %v389 = vunpack.c.l.b16 %v365
      %v390 = vunpack.c.l.b16 %v366
      %v391 = vunpack.c.l.b16 %v367
      %v392 = vunpack.c.l.b16 %v368
      %v393 = vunpack.c.l.b16 %v369
      %v394 = vpack.c.b16 %v387, %v386
      %v395 = vpack.c.b16 %v389, %v388
      %v396 = vpack.c.b16 %v391, %v390
      %v397 = vpack.c.b16 %v393, %v392
      %v406 = vunpack.c.l.b16 %v370
      %v407 = vunpack.c.l.b16 %v371
      %v408 = vunpack.c.l.b16 %v372
      %v409 = vunpack.c.l.b16 %v373
      %v410 = vunpack.c.l.b16 %v374
      %v411 = vunpack.c.l.b16 %v375
      %v412 = vunpack.c.l.b16 %v376
      %v413 = vunpack.c.l.b16 %v377
      %v414 = vpack.c.b16 %v407, %v406
      %v415 = vpack.c.b16 %v409, %v408
      %v416 = vpack.c.b16 %v411, %v410
      %v417 = vpack.c.b16 %v413, %v412
      %v418 = vld [vmem:[%s2] sm:$0xf]
      %v419 = vld [vmem:[%s2 + $0x4] sm:$0xf]
      %v420 = vld [vmem:[%s2 + $0x8] sm:$0xf]
      %v421 = vld [vmem:[%s2 + $0xc] sm:$0x3]
      %v426 = vunpack.c.l.b16 %v418
      %v427 = vunpack.c.l.b16 %v419
      %v428 = vunpack.c.l.b16 %v420
      %v429 = vunpack.c.l.b16 %v421
      %v430 = vpack.c.b16 %v427, %v426
      %v431 = vpack.c.b16 %v429, %v428
      %vm433 = vcmask 220160
      %v435 = vsel %vm433, %v394, 0
      %v438 = vsel %vm433, %v395, 0
      %v441 = vsel %vm433, %v396, 0
      %v444 = vsel %vm433, %v397, 0
      %v447 = vsel %vm433, %v414, 0
      %v450 = vsel %vm433, %v415, 0
      %v453 = vsel %vm433, %v416, 0
      %v456 = vsel %vm433, %v417, 0
      %vm458 = vcmask 1044480
      %vm459 = vcmask 1045504
      %v460 = vsel %vm458, 4294967295, 65535
      %v461 = vsel %vm459, %v460, 0
      %v463 = vand.u32 %v431, %v461
      %465 = vmatprep.subr.bf16.mxu0 0
      %466 = vmatpush1.bf16.msra.mxu0 %v430
      %467 = vmatprep.subr.bf16.mxu0 0
      %468 = vmatpush1.bf16.msra.mxu0 %v463
      %469 = vmatprep.subr.bf16.mxu0 0
      %470 = vmatpush1.bf16.msra.mxu0 0
      %471 = vmatprep.subr.bf16.mxu0 0
      %472 = vmatpush1.bf16.msra.mxu0 0
      %473 = vmatprep.subr.bf16.mxu0 0
      %474 = vmatpush1.bf16.msra.mxu0 0
      %475 = vmatprep.subr.bf16.mxu0 0
      %476 = vmatpush1.bf16.msra.mxu0 0
      %477 = vmatprep.subr.bf16.mxu0 0
      %478 = vmatpush1.bf16.msra.mxu0 0
      %479 = vmatprep.subr.bf16.mxu0 0
      %480 = vmatpush1.bf16.msra.mxu0 0
      %481 = vmatprep.subr.bf16.mxu0 0
      %482 = vmatpush1.bf16.msra.mxu0 0
      %483 = vmatprep.subr.bf16.mxu0 0
      %484 = vmatpush1.bf16.msra.mxu0 0
      %485 = vmatprep.subr.bf16.mxu0 0
      %486 = vmatpush1.bf16.msra.mxu0 0
      %487 = vmatprep.subr.bf16.mxu0 0
      %488 = vmatpush1.bf16.msra.mxu0 0
      %489 = vmatprep.subr.bf16.mxu0 0
      %490 = vmatpush1.bf16.msra.mxu0 0
      %491 = vmatprep.subr.bf16.mxu0 0
      %492 = vmatpush1.bf16.msra.mxu0 0
      %493 = vmatprep.subr.bf16.mxu0 0
      %494 = vmatpush1.bf16.msra.mxu0 0
      %495 = vmatprep.subr.bf16.mxu0 0
      %496 = vmatpush1.bf16.msra.mxu0 0
      %497 = vmatprep.mubr.bf16.mxu0 0
      %498 = vmatmul.mubr.bf16.gmra.mrb[0].mxu0 %v435
      %v499 = vpop.f32.mrb[0].mxu0
      %v500 = vadd.f32 0.0, %v499
      %v501 = vpop.f32.mrb[0].mxu0
      %v502 = vpop.f32.mrb[0].mxu0
      %v503 = vadd.f32 0.0, %v502
      %v504 = vpop.f32.mrb[0].mxu0
      %505 = vmatprep.mubr.bf16.mxu0 0
      %506 = vmatmul.mubr.bf16.gmra.mrb[0].mxu0 %v438
      %v507 = vpop.f32.mrb[0].mxu0
      %v508 = vadd.f32 0.0, %v507
      %v509 = vpop.f32.mrb[0].mxu0
      %v510 = vpop.f32.mrb[0].mxu0
      %v511 = vadd.f32 0.0, %v510
      %v512 = vpop.f32.mrb[0].mxu0
      %513 = vmatprep.mubr.bf16.mxu0 0
      %514 = vmatmul.mubr.bf16.gmra.mrb[0].mxu0 %v441
      %v515 = vpop.f32.mrb[0].mxu0
      %v516 = vadd.f32 0.0, %v515
      %v517 = vpop.f32.mrb[0].mxu0
      %v518 = vpop.f32.mrb[0].mxu0
      %v519 = vadd.f32 0.0, %v518
      %v520 = vpop.f32.mrb[0].mxu0
      %521 = vmatprep.mubr.bf16.mxu0 0
      %522 = vmatmul.mubr.bf16.gmra.mrb[0].mxu0 %v444
      %v523 = vpop.f32.mrb[0].mxu0
      %v524 = vadd.f32 0.0, %v523
      %v525 = vpop.f32.mrb[0].mxu0
      %v526 = vpop.f32.mrb[0].mxu0
      %v527 = vadd.f32 0.0, %v526
      %v528 = vpop.f32.mrb[0].mxu0
      %529 = vmatprep.mubr.bf16.mxu0 0
      %530 = vmatmul.mubr.bf16.gmra.mrb[0].mxu0 %v447
      %v531 = vpop.f32.mrb[0].mxu0
      %v532 = vadd.f32 0.0, %v531
      %v533 = vpop.f32.mrb[0].mxu0
      %v534 = vpop.f32.mrb[0].mxu0
      %v535 = vadd.f32 0.0, %v534
      %v536 = vpop.f32.mrb[0].mxu0
      %537 = vmatprep.mubr.bf16.mxu0 0
      %538 = vmatmul.mubr.bf16.gmra.mrb[0].mxu0 %v450
      %v539 = vpop.f32.mrb[0].mxu0
      %v540 = vadd.f32 0.0, %v539
      %v541 = vpop.f32.mrb[0].mxu0
      %v542 = vpop.f32.mrb[0].mxu0
      %v543 = vadd.f32 0.0, %v542
      %v544 = vpop.f32.mrb[0].mxu0
      %545 = vmatprep.mubr.bf16.mxu0 0
      %546 = vmatmul.mubr.bf16.gmra.mrb[0].mxu0 %v453
      %v547 = vpop.f32.mrb[0].mxu0
      %v548 = vadd.f32 0.0, %v547
      %v549 = vpop.f32.mrb[0].mxu0
      %v550 = vpop.f32.mrb[0].mxu0
      %v551 = vadd.f32 0.0, %v550
      %v552 = vpop.f32.mrb[0].mxu0
      %553 = vmatprep.mubr.bf16.mxu0 0
      %554 = vmatmul.mubr.bf16.gmra.mrb[0].mxu0 %v456
      %v555 = vpop.f32.mrb[0].mxu0
      %v556 = vadd.f32 0.0, %v555
      %v557 = vpop.f32.mrb[0].mxu0
      %v558 = vpop.f32.mrb[0].mxu0
      %v559 = vadd.f32 0.0, %v558
      %v560 = vpop.f32.mrb[0].mxu0
      %561 = vdwg.mxu0
      %v562 = vld [vmem:[%s3] sm:$0x1]
      %v564 = vlaneseq
      %v565 = vshrl.u32 %v564, 7
      %v566 = vsub.s32 0, %v565
      %v567 = vrot.slane %v562, %v566
      %v569 = vmul.f32 %v500, %v567
      %v570 = vmul.f32 %v503, %v567
      %v571 = vmul.f32 %v508, %v567
      %v572 = vmul.f32 %v511, %v567
      %v573 = vmul.f32 %v516, %v567
      %v574 = vmul.f32 %v519, %v567
      %v575 = vmul.f32 %v524, %v567
      %v576 = vmul.f32 %v527, %v567
      %v577 = vmul.f32 %v532, %v567
      %v578 = vmul.f32 %v535, %v567
      %v579 = vmul.f32 %v540, %v567
      %v580 = vmul.f32 %v543, %v567
      %v581 = vmul.f32 %v548, %v567
      %v582 = vmul.f32 %v551, %v567
      %v583 = vmul.f32 %v556, %v567
      %v584 = vmul.f32 %v559, %v567
      %v585 = vld [vmem:[%s4] sm:$0x1]
      %v587 = vlaneseq
      %v588 = vshrl.u32 %v587, 7
      %v589 = vsub.s32 0, %v588
      %v590 = vrot.slane %v585, %v589
      %v592 = vadd.f32 %v569, %v590
      %v593 = vadd.f32 %v570, %v590
      %v594 = vadd.f32 %v571, %v590
      %v595 = vadd.f32 %v572, %v590
      %v596 = vadd.f32 %v573, %v590
      %v597 = vadd.f32 %v574, %v590
      %v598 = vadd.f32 %v575, %v590
      %v599 = vadd.f32 %v576, %v590
      %v600 = vadd.f32 %v577, %v590
      %v601 = vadd.f32 %v578, %v590
      %v602 = vadd.f32 %v579, %v590
      %v603 = vadd.f32 %v580, %v590
      %v604 = vadd.f32 %v581, %v590
      %v605 = vadd.f32 %v582, %v590
      %v606 = vadd.f32 %v583, %v590
      %v607 = vadd.f32 %v584, %v590
      %v608 = vmax.f32 %v592, 0.0
      %v609 = vmax.f32 %v593, 0.0
      %v610 = vmax.f32 %v594, 0.0
      %v611 = vmax.f32 %v595, 0.0
      %v612 = vmax.f32 %v596, 0.0
      %v613 = vmax.f32 %v597, 0.0
      %v614 = vmax.f32 %v598, 0.0
      %v615 = vmax.f32 %v599, 0.0
      %v616 = vmax.f32 %v600, 0.0
      %v617 = vmax.f32 %v601, 0.0
      %v618 = vmax.f32 %v602, 0.0
      %v619 = vmax.f32 %v603, 0.0
      %v620 = vmax.f32 %v604, 0.0
      %v621 = vmax.f32 %v605, 0.0
      %v622 = vmax.f32 %v606, 0.0
      %v623 = vmax.f32 %v607, 0.0
      %v624 = vpack.c.bf16 %v609, %v608
      %v625 = vpack.c.bf16 %v611, %v610
      %v626 = vpack.c.bf16 %v613, %v612
      %v627 = vpack.c.bf16 %v615, %v614
      %v632 = vunpack.c.l.b16 %v624
      %v633 = vunpack.c.h.b16 %v624
      %v634 = vunpack.c.l.b16 %v625
      %v635 = vunpack.c.h.b16 %v625
      %v636 = vunpack.c.l.b16 %v626
      %v637 = vunpack.c.h.b16 %v626
      %v638 = vunpack.c.l.b16 %v627
      %v639 = vunpack.c.h.b16 %v627
      %v640 = vpack.c.b16 %v632, %v632
      %v641 = vpack.c.b16 %v633, %v633
      %v642 = vpack.c.b16 %v634, %v634
      %v643 = vpack.c.b16 %v635, %v635
      %v644 = vpack.c.b16 %v636, %v636
      %v645 = vpack.c.b16 %v637, %v637
      %v646 = vpack.c.b16 %v638, %v638
      %v647 = vpack.c.b16 %v639, %v639
      %vm656 = vcmask 519168
      %657 = vst.msk [vmem:[%s348] sm:$0xf] %vm656, %v640
      %658 = vst.msk [vmem:[%s348 + $0x4] sm:$0xf] %vm656, %v641
      %659 = vst.msk [vmem:[%s348 + $0x8] sm:$0xf] %vm656, %v642
      %660 = vst.msk [vmem:[%s348 + $0xc] sm:$0xf] %vm656, %v643
      %661 = vst.msk [vmem:[%s348 + $0x10] sm:$0xf] %vm656, %v644
      %662 = vst.msk [vmem:[%s348 + $0x14] sm:$0xf] %vm656, %v645
      %663 = vst.msk [vmem:[%s348 + $0x18] sm:$0xf] %vm656, %v646
      %664 = vst.msk [vmem:[%s348 + $0x1c] sm:$0xf] %vm656, %v647
      %v665 = vpack.c.bf16 %v617, %v616
      %v666 = vpack.c.bf16 %v619, %v618
      %v667 = vpack.c.bf16 %v621, %v620
      %v668 = vpack.c.bf16 %v623, %v622
      %v673 = vunpack.c.l.b16 %v665
      %v674 = vunpack.c.h.b16 %v665
      %v675 = vunpack.c.l.b16 %v666
      %v676 = vunpack.c.h.b16 %v666
      %v677 = vunpack.c.l.b16 %v667
      %v678 = vunpack.c.h.b16 %v667
      %v679 = vunpack.c.l.b16 %v668
      %v680 = vunpack.c.h.b16 %v668
      %v681 = vpack.c.b16 %v673, %v673
      %v682 = vpack.c.b16 %v674, %v674
      %v683 = vpack.c.b16 %v675, %v675
      %v684 = vpack.c.b16 %v676, %v676
      %v685 = vpack.c.b16 %v677, %v677
      %v686 = vpack.c.b16 %v678, %v678
      %v687 = vpack.c.b16 %v679, %v679
      %v688 = vpack.c.b16 %v680, %v680
      %697 = vst.msk [vmem:[%s359] sm:$0xf] %vm656, %v681
      %698 = vst.msk [vmem:[%s359 + $0x4] sm:$0xf] %vm656, %v682
      %699 = vst.msk [vmem:[%s359 + $0x8] sm:$0xf] %vm656, %v683
      %700 = vst.msk [vmem:[%s359 + $0xc] sm:$0xf] %vm656, %v684
      %701 = vst.msk [vmem:[%s359 + $0x10] sm:$0xf] %vm656, %v685
      %702 = vst.msk [vmem:[%s359 + $0x14] sm:$0xf] %vm656, %v686
      %703 = vst.msk [vmem:[%s359 + $0x18] sm:$0xf] %vm656, %v687
      %704 = vst.msk [vmem:[%s359 + $0x1c] sm:$0xf] %vm656, %v688
      %s705 = smul.u32 4, %s23
      %p706 = scmp.lt.s32.totalorder %s22, 1
      %s707 = scalar_select %p706, %s22, 1
      %p708 = scmp.lt.s32.totalorder %s705, 15
      %s709 = scalar_select %p708, %s705, 15
      %s710 = smul.addr %s709, 2
      %s711 = smul.addr %s707, 32
      %s712 = sadd.s32 %s710, %s711
      %s713 = smul.addr %s712, 4
      %s714 = scalar_lea.vmem %s5, %s713
      %s715 = smul.u32 4, %s23
      %p716 = scmp.lt.s32.totalorder %s22, 1
      %s717 = scalar_select %p716, %s22, 1
      %p718 = scmp.lt.s32.totalorder %s715, 15
      %s719 = scalar_select %p718, %s715, 15
      %s720 = smul.addr %s719, 2
      %s721 = smul.addr %s717, 32
      %s722 = sadd.s32 %s720, %s721
      %s723 = smul.addr %s722, 4
      %s724 = scalar_lea.vmem %s6, %s723
      // Predicated region
      $region41: #{feature_loss.4} parent=39 // pred_check
        %p725 = pneg %p169
      $region42: #{feature_loss.4} parent=39 // pred_check_branch
        %727 = sbr.rel (%p725) target = $region44
      $region43: #{feature_loss.4} parent=39 // pred_region
        %s728 = smul.u32 4, %s23
      $region44: #{feature_loss.4} parent=39 // pred_fallthru
        _
      // Predicated region
      $region45: #{feature_loss.4} parent=39 // pred_check
        %p729 = pneg %p197
      $region46: #{feature_loss.4} parent=39 // pred_check_branch
        %731 = sbr.rel (%p729) target = $region48
      $region47: #{feature_loss.4} parent=39 // pred_region
        %s732 = smul.u32 4, %s23
      $region48: #{feature_loss.4} parent=39 // pred_fallthru
        _
    $region40: #{feature_loss.4} parent=5 // pred_fallthru
      _
    %p733 = scmp.le.s32.totalorder 2, %s13
    // Predicated region
    $region49: #{feature_loss.4} parent=5 // pred_check
      %p734 = pneg %p733
    $region50: #{feature_loss.4} parent=5 // pred_check_branch
      %736 = sbr.rel (%p734) target = $region52
    $region51: #{feature_loss.4} parent=5 // pred_region
      %s737 = ssub.s32 %s13, 2
      // Predicated region
      $region53: #{feature_loss.4} parent=51 // pred_check
        %p738 = pneg %p175
      $region54: #{feature_loss.4} parent=51 // pred_check_branch
        %740 = sbr.rel (%p738) target = $region56
      $region55: #{feature_loss.4} parent=51 // pred_region
        %s741 = smul.u32 4, %s25
        %p742 = scmp.lt.s32.totalorder %s24, 1
        %s743 = scalar_select %p742, %s24, 1
        %p744 = scmp.lt.s32.totalorder %s741, 15
        %s745 = scalar_select %p744, %s741, 15
        %s746 = smul.addr %s745, 2
        %s747 = smul.addr %s743, 32
        %s748 = sadd.s32 %s746, %s747
        %s749 = smul.addr %s748, 4
        %s750 = scalar_lea.vmem %s5, %s749
      $region56: #{feature_loss.4} parent=51 // pred_fallthru
        _
      // Predicated region
      $region57: #{feature_loss.4} parent=51 // pred_check
        %p751 = pneg %p203
      $region58: #{feature_loss.4} parent=51 // pred_check_branch
        %753 = sbr.rel (%p751) target = $region60
      $region59: #{feature_loss.4} parent=51 // pred_region
        %s754 = smul.u32 4, %s25
        %p755 = scmp.lt.s32.totalorder %s24, 1
        %s756 = scalar_select %p755, %s24, 1
        %p757 = scmp.lt.s32.totalorder %s754, 15
        %s758 = scalar_select %p757, %s754, 15
        %s759 = smul.addr %s758, 2
        %s760 = smul.addr %s756, 32
        %s761 = sadd.s32 %s759, %s760
        %s762 = smul.addr %s761, 4
        %s763 = scalar_lea.vmem %s6, %s762
      $region60: #{feature_loss.4} parent=51 // pred_fallthru
        _
    $region52: #{feature_loss.4} parent=5 // pred_fallthru
      _
  $region6: #{feature_loss.4} parent=0 // loop_footer
    %s17 = sadd.s32 1, %s13
  $region7: #{feature_loss.4} parent=0 // loop_footer_branch
    %12 = sbr.rel target = $region3
  $region8: #{feature_loss.4} parent=0 // loop_exit
    _

// kernel: feature_loss.6
$region0: #{feature_loss.6}
  #allocation0 [shape = 'u32[]', space=smem, size = 0x4, offset = 0x4, fixed_abs, tag = 'smem constant byte address 0x4 - core index']
  #allocation1 [shape = 'u32[144,128]{1,0:T(1,128)}', space=vmem, size = 0x12000, scoped, tag = 'internal scratch']
  %s0 = inlined_call_operand.vmem [shape: bf16[2,12,10,64], index: 0, kind: input, shape index: {}, may-alias: {0,1}]
  %s1 = inlined_call_operand.vmem [shape: bf16[2,12,10,64], index: 1, kind: input, shape index: {}, may-alias: {0,1}]
  %s2 = inlined_call_operand.vmem [shape: bf16[2,12,10,64], index: 2, kind: input, shape index: {}, may-alias: {2,3}]
  %s3 = inlined_call_operand.vmem [shape: bf16[2,12,10,64], index: 3, kind: input, shape index: {}, may-alias: {2,3}]
  %s4 = inlined_call_operand.vmem [shape: bf16[3,192,128], index: 4, kind: input, shape index: {}]
  %s5 = inlined_call_operand.vmem [shape: f32[1,128], index: 5, kind: input, shape index: {}]
  %s6 = inlined_call_operand.vmem [shape: f32[1,128], index: 6, kind: input, shape index: {}]
  %s7 = inlined_call_operand.vmem [shape: bf16[2,8,8,128], index: 7, kind: output, shape index: {0}]
  %s8 = inlined_call_operand.vmem [shape: bf16[2,8,8,128], index: 8, kind: output, shape index: {1}]
  %9 = xla_tuple %s7, %s8
  %s10 = sld [smem:[#allocation0]]
  $region69: #{feature_loss.6} parent=0
    _
  %s12 = ssub.s32 1, %s10
  %s13 = scalar_select 0, %s12, %s10
  loop: start=0, step=1, limit=6
  $region2: #{feature_loss.6} parent=0 // loop_pre_header
    _
  $region3: #{feature_loss.6} parent=0 // loop_header
    %s15 = sphi 0, %s19
    %p16 = scmp.ge.s32.totalorder %s15, 6
    %s22 = sphi 0, %s34
    %s23 = sphi 0, %s30
    %s24 = sphi 0, %s22
    %s25 = sphi 0, %s23
    %s26 = sphi 0, %s24
    %s27 = sphi 0, %s25
    %s39 = sphi 0, %s41
    %s42 = sphi 0, %s39
    %s43 = sphi 0, %s42
    %s59 = sphi 0, %s43
    %s69 = sphi 0, %s71
    %s72 = sphi 0, %s69
    %s73 = sphi 0, %s72
    %s89 = sphi 0, %s73
    %s97 = sphi 0, %s99
    %s100 = sphi 0, %s97
    %s101 = sphi 0, %s100
    %s117 = sphi 0, %s101
    %s127 = sphi 0, %s129
    %s130 = sphi 0, %s127
    %s131 = sphi 0, %s130
    %s147 = sphi 0, %s131
    %s151 = sphi 0, %s151
    %s153 = sphi 0, %s151
    %s154 = sphi 0, %s153
    %s168 = sphi 0, %s154
    %s172 = sphi 0, %s172
    %s174 = sphi 0, %s172
    %s175 = sphi 0, %s174
    %s189 = sphi 0, %s175
    %s193 = sphi 0, %s193
    %s195 = sphi 0, %s193
    %s196 = sphi 0, %s195
    %s210 = sphi 0, %s196
    %s218 = sphi 0, %s220
    %s221 = sphi 0, %s218
    %s222 = sphi 0, %s221
    %s238 = sphi 0, %s222
    %s246 = sphi 0, %s248
    %s249 = sphi 0, %s246
    %s250 = sphi 0, %s249
    %s266 = sphi 0, %s250
  $region4: #{feature_loss.6} parent=0 // loop_header_branch
    %18 = sbr.rel (%p16) target = $region8
  $region5: #{feature_loss.6} parent=0 // loop_body
    %s20 = ssub.s32 %s15, 1
    %s21 = ssub.s32 %s15, 2
    %s28 = sadd.s32 1, %s23
    %p29 = scmp.ge.s32.totalorder %s28, 2
    %s30 = scalar_select %p29, 0, %s28
    %s31 = sadd.s32 1, %s22
    %s32 = scalar_select %p29, %s31, %s22
    %p33 = scmp.ge.s32.totalorder %s32, 2
    %s34 = scalar_select %p33, 0, %s32
    %s35 = ssub.s32 %s22, %s34
    %s36 = ssub.s32 %s23, %s30
    %s37 = sor.u32 %s35, %s36
    %p38 = scmp.eq.s32.totalorder %s37, 0
    %s40 = sadd.s32 %s39, 1
    %s41 = scalar_select %p38, %s39, %s40
    %p44 = pneg %p38
    %p45 = scmp.eq.s32.totalorder %s15, 3
    %p46 = por %p44, %p45
    %p47 = scmp.ne.s32.totalorder %s39, %s42
    %p48 = scmp.eq.s32.totalorder %s15, 0
    %p49 = por %p47, %p48
    %p50 = scmp.ne.s32.totalorder %s39, %s42
    %p51 = scmp.eq.s32.totalorder %s20, 3
    %p52 = por %p50, %p51
    %p53 = scmp.ne.s32.totalorder %s42, %s43
    %p54 = scmp.eq.s32.totalorder %s20, 0
    %p55 = por %p53, %p54
    %p56 = scmp.ne.s32.totalorder %s42, %s43
    %p57 = scmp.eq.s32.totalorder %s21, 3
    %p58 = por %p56, %p57
    %p60 = scmp.ne.s32.totalorder %s43, %s59
    %p61 = scmp.eq.s32.totalorder %s21, 0
    %p62 = por %p60, %p61
    %s63 = sadd.s32 %s23, 1
    %s64 = sadd.s32 %s30, 1
    %s65 = ssub.s32 %s22, %s34
    %s66 = ssub.s32 %s63, %s64
    %s67 = sor.u32 %s65, %s66
    %p68 = scmp.eq.s32.totalorder %s67, 0
    %s70 = sadd.s32 %s69, 1
    %s71 = scalar_select %p68, %s69, %s70
    %p74 = pneg %p68
    %p75 = scmp.eq.s32.totalorder %s15, 3
    %p76 = por %p74, %p75
    %p77 = scmp.ne.s32.totalorder %s69, %s72
    %p78 = scmp.eq.s32.totalorder %s15, 0
    %p79 = por %p77, %p78
    %p80 = scmp.ne.s32.totalorder %s69, %s72
    %p81 = scmp.eq.s32.totalorder %s20, 3
    %p82 = por %p80, %p81
    %p83 = scmp.ne.s32.totalorder %s72, %s73
    %p84 = scmp.eq.s32.totalorder %s20, 0
    %p85 = por %p83, %p84
    %p86 = scmp.ne.s32.totalorder %s72, %s73
    %p87 = scmp.eq.s32.totalorder %s21, 3
    %p88 = por %p86, %p87
    %p90 = scmp.ne.s32.totalorder %s73, %s89
    %p91 = scmp.eq.s32.totalorder %s21, 0
    %p92 = por %p90, %p91
    %s93 = ssub.s32 %s22, %s34
    %s94 = ssub.s32 %s23, %s30
    %s95 = sor.u32 %s93, %s94
    %p96 = scmp.eq.s32.totalorder %s95, 0
    %s98 = sadd.s32 %s97, 1
    %s99 = scalar_select %p96, %s97, %s98
    %p102 = pneg %p96
    %p103 = scmp.eq.s32.totalorder %s15, 3
    %p104 = por %p102, %p103
    %p105 = scmp.ne.s32.totalorder %s97, %s100
    %p106 = scmp.eq.s32.totalorder %s15, 0
    %p107 = por %p105, %p106
    %p108 = scmp.ne.s32.totalorder %s97, %s100
    %p109 = scmp.eq.s32.totalorder %s20, 3
    %p110 = por %p108, %p109
    %p111 = scmp.ne.s32.totalorder %s100, %s101
    %p112 = scmp.eq.s32.totalorder %s20, 0
    %p113 = por %p111, %p112
    %p114 = scmp.ne.s32.totalorder %s100, %s101
    %p115 = scmp.eq.s32.totalorder %s21, 3
    %p116 = por %p114, %p115
    %p118 = scmp.ne.s32.totalorder %s101, %s117
    %p119 = scmp.eq.s32.totalorder %s21, 0
    %p120 = por %p118, %p119
    %s121 = sadd.s32 %s23, 1
    %s122 = sadd.s32 %s30, 1
    %s123 = ssub.s32 %s22, %s34
    %s124 = ssub.s32 %s121, %s122
    %s125 = sor.u32 %s123, %s124
    %p126 = scmp.eq.s32.totalorder %s125, 0
    %s128 = sadd.s32 %s127, 1
    %s129 = scalar_select %p126, %s127, %s128
    %p132 = pneg %p126
    %p133 = scmp.eq.s32.totalorder %s15, 3
    %p134 = por %p132, %p133
    %p135 = scmp.ne.s32.totalorder %s127, %s130
    %p136 = scmp.eq.s32.totalorder %s15, 0
    %p137 = por %p135, %p136
    %p138 = scmp.ne.s32.totalorder %s127, %s130
    %p139 = scmp.eq.s32.totalorder %s20, 3
    %p140 = por %p138, %p139
    %p141 = scmp.ne.s32.totalorder %s130, %s131
    %p142 = scmp.eq.s32.totalorder %s20, 0
    %p143 = por %p141, %p142
    %p144 = scmp.ne.s32.totalorder %s130, %s131
    %p145 = scmp.eq.s32.totalorder %s21, 3
    %p146 = por %p144, %p145
    %p148 = scmp.ne.s32.totalorder %s131, %s147
    %p149 = scmp.eq.s32.totalorder %s21, 0
    %p150 = por %p148, %p149
    %s152 = sadd.s32 %s151, 1
    %p155 = scmp.eq.s32.totalorder %s15, 3
    %p156 = scmp.ne.s32.totalorder %s151, %s153
    %p157 = scmp.eq.s32.totalorder %s15, 0
    %p158 = por %p156, %p157
    %p159 = scmp.ne.s32.totalorder %s151, %s153
    %p160 = scmp.eq.s32.totalorder %s20, 3
    %p161 = por %p159, %p160
    %p162 = scmp.ne.s32.totalorder %s153, %s154
    %p163 = scmp.eq.s32.totalorder %s20, 0
    %p164 = por %p162, %p163
    %p165 = scmp.ne.s32.totalorder %s153, %s154
    %p166 = scmp.eq.s32.totalorder %s21, 3
    %p167 = por %p165, %p166
    %p169 = scmp.ne.s32.totalorder %s154, %s168
    %p170 = scmp.eq.s32.totalorder %s21, 0
    %p171 = por %p169, %p170
    %s173 = sadd.s32 %s172, 1
    %p176 = scmp.eq.s32.totalorder %s15, 3
    %p177 = scmp.ne.s32.totalorder %s172, %s174
    %p178 = scmp.eq.s32.totalorder %s15, 0
    %p179 = por %p177, %p178
    %p180 = scmp.ne.s32.totalorder %s172, %s174
    %p181 = scmp.eq.s32.totalorder %s20, 3
    %p182 = por %p180, %p181
    %p183 = scmp.ne.s32.totalorder %s174, %s175
    %p184 = scmp.eq.s32.totalorder %s20, 0
    %p185 = por %p183, %p184
    %p186 = scmp.ne.s32.totalorder %s174, %s175
    %p187 = scmp.eq.s32.totalorder %s21, 3
    %p188 = por %p186, %p187
    %p190 = scmp.ne.s32.totalorder %s175, %s189
    %p191 = scmp.eq.s32.totalorder %s21, 0
    %p192 = por %p190, %p191
    %s194 = sadd.s32 %s193, 1
    %p197 = scmp.eq.s32.totalorder %s15, 3
    %p198 = scmp.ne.s32.totalorder %s193, %s195
    %p199 = scmp.eq.s32.totalorder %s15, 0
    %p200 = por %p198, %p199
    %p201 = scmp.ne.s32.totalorder %s193, %s195
    %p202 = scmp.eq.s32.totalorder %s20, 3
    %p203 = por %p201, %p202
    %p204 = scmp.ne.s32.totalorder %s195, %s196
    %p205 = scmp.eq.s32.totalorder %s20, 0
    %p206 = por %p204, %p205
    %p207 = scmp.ne.s32.totalorder %s195, %s196
    %p208 = scmp.eq.s32.totalorder %s21, 3
    %p209 = por %p207, %p208
    %p211 = scmp.ne.s32.totalorder %s196, %s210
    %p212 = scmp.eq.s32.totalorder %s21, 0
    %p213 = por %p211, %p212
    %s214 = ssub.s32 %s22, %s34
    %s215 = ssub.s32 %s23, %s30
    %s216 = sor.u32 %s214, %s215
    %p217 = scmp.eq.s32.totalorder %s216, 0
    %s219 = sadd.s32 %s218, 1
    %s220 = scalar_select %p217, %s218, %s219
    %p223 = pneg %p217
    %p224 = scmp.eq.s32.totalorder %s15, 3
    %p225 = por %p223, %p224
    %p226 = scmp.ne.s32.totalorder %s218, %s221
    %p227 = scmp.eq.s32.totalorder %s15, 0
    %p228 = por %p226, %p227
    %p229 = scmp.ne.s32.totalorder %s218, %s221
    %p230 = scmp.eq.s32.totalorder %s20, 3
    %p231 = por %p229, %p230
    %p232 = scmp.ne.s32.totalorder %s221, %s222
    %p233 = scmp.eq.s32.totalorder %s20, 0
    %p234 = por %p232, %p233
    %p235 = scmp.ne.s32.totalorder %s221, %s222
    %p236 = scmp.eq.s32.totalorder %s21, 3
    %p237 = por %p235, %p236
    %p239 = scmp.ne.s32.totalorder %s222, %s238
    %p240 = scmp.eq.s32.totalorder %s21, 0
    %p241 = por %p239, %p240
    %s242 = ssub.s32 %s22, %s34
    %s243 = ssub.s32 %s23, %s30
    %s244 = sor.u32 %s242, %s243
    %p245 = scmp.eq.s32.totalorder %s244, 0
    %s247 = sadd.s32 %s246, 1
    %s248 = scalar_select %p245, %s246, %s247
    %p251 = pneg %p245
    %p252 = scmp.eq.s32.totalorder %s15, 3
    %p253 = por %p251, %p252
    %p254 = scmp.ne.s32.totalorder %s246, %s249
    %p255 = scmp.eq.s32.totalorder %s15, 0
    %p256 = por %p254, %p255
    %p257 = scmp.ne.s32.totalorder %s246, %s249
    %p258 = scmp.eq.s32.totalorder %s20, 3
    %p259 = por %p257, %p258
    %p260 = scmp.ne.s32.totalorder %s249, %s250
    %p261 = scmp.eq.s32.totalorder %s20, 0
    %p262 = por %p260, %p261
    %p263 = scmp.ne.s32.totalorder %s249, %s250
    %p264 = scmp.eq.s32.totalorder %s21, 3
    %p265 = por %p263, %p264
    %p267 = scmp.ne.s32.totalorder %s250, %s266
    %p268 = scmp.eq.s32.totalorder %s21, 0
    %p269 = por %p267, %p268
    %p270 = scmp.le.s32.totalorder 1, %s15
    %p271 = scmp.lt.s32.totalorder %s15, 5
    %p272 = pnand %p270, %p271
    %p273 = pneg %p272
    // Predicated region
    $region9: #{feature_loss.6} parent=5 // pred_check
      _
    $region10: #{feature_loss.6} parent=5 // pred_check_branch
      %275 = sbr.rel (%p272) target = $region12
    $region11: #{feature_loss.6} parent=5 // pred_region
      %s276 = ssub.s32 %s15, 1
      // Predicated region
      $region13: #{feature_loss.6} parent=11 // pred_check
        %p277 = pneg %p164
      $region14: #{feature_loss.6} parent=11 // pred_check_branch
        %279 = sbr.rel (%p277) target = $region16
      $region15: #{feature_loss.6} parent=11 // pred_region
        _
      $region16: #{feature_loss.6} parent=11 // pred_fallthru
        _
      // Predicated region
      $region17: #{feature_loss.6} parent=11 // pred_check
        %p280 = pneg %p185
      $region18: #{feature_loss.6} parent=11 // pred_check_branch
        %282 = sbr.rel (%p280) target = $region20
      $region19: #{feature_loss.6} parent=11 // pred_region
        _
      $region20: #{feature_loss.6} parent=11 // pred_fallthru
        _
      // Predicated region
      $region21: #{feature_loss.6} parent=11 // pred_check
        %p283 = pneg %p206
      $region22: #{feature_loss.6} parent=11 // pred_check_branch
        %285 = sbr.rel (%p283) target = $region24
      $region23: #{feature_loss.6} parent=11 // pred_region
        _
      $region24: #{feature_loss.6} parent=11 // pred_fallthru
        _
    $region12: #{feature_loss.6} parent=5 // pred_fallthru
      _
    %p286 = scmp.lt.s32.totalorder %s15, 4
    // Predicated region
    $region25: #{feature_loss.6} parent=5 // pred_check
      %p287 = pneg %p286
    $region26: #{feature_loss.6} parent=5 // pred_check_branch
      %289 = sbr.rel (%p287) target = $region28
    $region27: #{feature_loss.6} parent=5 // pred_region
      // Predicated region
      $region29: #{feature_loss.6} parent=27 // pred_check
        %p290 = pneg %p49
      $region30: #{feature_loss.6} parent=27 // pred_check_branch
        %292 = sbr.rel (%p290) target = $region32
      $region31: #{feature_loss.6} parent=27 // pred_region
        %s293 = smul.u32 4, %s23
        %p294 = scmp.lt.s32.totalorder %s22, 1
        %s295 = scalar_select %p294, %s22, 1
        %p296 = scmp.lt.s32.totalorder %s293, 11
        %s297 = scalar_select %p296, %s293, 11
        %s298 = smul.addr %s297, 2
        %s299 = smul.addr %s295, 24
        %s300 = sadd.s32 %s298, %s299
        %s301 = smul.addr %s300, 4
        %s302 = scalar_lea.vmem %s0, %s301
        %s303 = smul.u32 4, %s23
      $region32: #{feature_loss.6} parent=27 // pred_fallthru
        _
      // Predicated region
      $region33: #{feature_loss.6} parent=27 // pred_check
        %p304 = pneg %p79
      $region34: #{feature_loss.6} parent=27 // pred_check_branch
        %306 = sbr.rel (%p304) target = $region36
      $region35: #{feature_loss.6} parent=27 // pred_region
        %s307 = sadd.s32 %s23, 1
        %s308 = smul.u32 4, %s307
        %p309 = scmp.lt.s32.totalorder %s22, 1
        %s310 = scalar_select %p309, %s22, 1
        %p311 = scmp.lt.s32.totalorder %s308, 11
        %s312 = scalar_select %p311, %s308, 11
        %s313 = smul.addr %s312, 2
        %s314 = smul.addr %s310, 24
        %s315 = sadd.s32 %s313, %s314
        %s316 = smul.addr %s315, 4
        %s317 = scalar_lea.vmem %s1, %s316
        %s318 = sadd.s32 %s23, 1
        %s319 = smul.u32 4, %s318
      $region36: #{feature_loss.6} parent=27 // pred_fallthru
        _
      // Predicated region
      $region37: #{feature_loss.6} parent=27 // pred_check
        %p320 = pneg %p107
      $region38: #{feature_loss.6} parent=27 // pred_check_branch
        %322 = sbr.rel (%p320) target = $region40
      $region39: #{feature_loss.6} parent=27 // pred_region
        %s323 = smul.u32 4, %s23
        %p324 = scmp.lt.s32.totalorder %s22, 1
        %s325 = scalar_select %p324, %s22, 1
        %p326 = scmp.lt.s32.totalorder %s323, 11
        %s327 = scalar_select %p326, %s323, 11
        %s328 = smul.addr %s327, 2
        %s329 = smul.addr %s325, 24
        %s330 = sadd.s32 %s328, %s329
        %s331 = smul.addr %s330, 4
        %s332 = scalar_lea.vmem %s2, %s331
        %s333 = smul.u32 4, %s23
      $region40: #{feature_loss.6} parent=27 // pred_fallthru
        _
      // Predicated region
      $region41: #{feature_loss.6} parent=27 // pred_check
        %p334 = pneg %p137
      $region42: #{feature_loss.6} parent=27 // pred_check_branch
        %336 = sbr.rel (%p334) target = $region44
      $region43: #{feature_loss.6} parent=27 // pred_region
        %s337 = sadd.s32 %s23, 1
        %s338 = smul.u32 4, %s337
        %p339 = scmp.lt.s32.totalorder %s22, 1
        %s340 = scalar_select %p339, %s22, 1
        %p341 = scmp.lt.s32.totalorder %s338, 11
        %s342 = scalar_select %p341, %s338, 11
        %s343 = smul.addr %s342, 2
        %s344 = smul.addr %s340, 24
        %s345 = sadd.s32 %s343, %s344
        %s346 = smul.addr %s345, 4
        %s347 = scalar_lea.vmem %s3, %s346
        %s348 = sadd.s32 %s23, 1
        %s349 = smul.u32 4, %s348
      $region44: #{feature_loss.6} parent=27 // pred_fallthru
        _
    $region28: #{feature_loss.6} parent=5 // pred_fallthru
      _
    %p350 = scmp.le.s32.totalorder 1, %s15
    %p351 = scmp.lt.s32.totalorder %s15, 5
    %p352 = pnand %p350, %p351
    %p353 = pneg %p352
    // Predicated region
    $region45: #{feature_loss.6} parent=5 // pred_check
      _
    $region46: #{feature_loss.6} parent=5 // pred_check_branch
      %355 = sbr.rel (%p352) target = $region48
    $region47: #{feature_loss.6} parent=5 // pred_region
      %s356 = ssub.s32 %s15, 1
      %s357 = smul.u32 4, %s25
      %p358 = scmp.lt.s32.totalorder %s24, 1
      %s359 = scalar_select %p358, %s24, 1
      %p360 = scmp.lt.s32.totalorder %s357, 11
      %s361 = scalar_select %p360, %s357, 11
      %s362 = smul.addr %s361, 2
      %s363 = smul.addr %s359, 24
      %s364 = sadd.s32 %s362, %s363
      %s365 = smul.addr %s364, 4
      %s366 = scalar_lea.vmem %s0, %s365
      %p367 = pneg %p55
      %p368 = pneg %p52
      %s369 = sadd.s32 %s25, 1
      %s370 = smul.u32 4, %s369
      %p371 = scmp.lt.s32.totalorder %s24, 1
      %s372 = scalar_select %p371, %s24, 1
      %p373 = scmp.lt.s32.totalorder %s370, 11
      %s374 = scalar_select %p373, %s370, 11
      %s375 = smul.addr %s374, 2
      %s376 = smul.addr %s372, 24
      %s377 = sadd.s32 %s375, %s376
      %s378 = smul.addr %s377, 4
      %s379 = scalar_lea.vmem %s1, %s378
      %p380 = pneg %p85
      %p381 = pneg %p82
      %s382 = smul.u32 4, %s25
      %p383 = scmp.lt.s32.totalorder %s24, 1
      %s384 = scalar_select %p383, %s24, 1
      %p385 = scmp.lt.s32.totalorder %s382, 11
      %s386 = scalar_select %p385, %s382, 11
      %s387 = smul.addr %s386, 2
      %s388 = smul.addr %s384, 24
      %s389 = sadd.s32 %s387, %s388
      %s390 = smul.addr %s389, 4
      %s391 = scalar_lea.vmem %s2, %s390
      %p392 = pneg %p113
      %p393 = pneg %p110
      %s394 = sadd.s32 %s25, 1
      %s395 = smul.u32 4, %s394
      %p396 = scmp.lt.s32.totalorder %s24, 1
      %s397 = scalar_select %p396, %s24, 1
      %p398 = scmp.lt.s32.totalorder %s395, 11
      %s399 = scalar_select %p398, %s395, 11
      %s400 = smul.addr %s399, 2
      %s401 = smul.addr %s397, 24
      %s402 = sadd.s32 %s400, %s401
      %s403 = smul.addr %s402, 4
      %s404 = scalar_lea.vmem %s3, %s403
      %p405 = pneg %p143
      %p406 = pneg %p140
      %p407 = pneg %p164
      %p408 = pneg %p161
      %p409 = pneg %p185
      %p410 = pneg %p182
      %p411 = pneg %p206
      %p412 = pneg %p203
      %p413 = pneg %p234
      %p414 = pneg %p231
      %s415 = smul.u32 4, %s25
      %p416 = scmp.lt.s32.totalorder %s24, 1
      %s417 = scalar_select %p416, %s24, 1
      %p418 = scmp.lt.s32.totalorder %s415, 7
      %s419 = scalar_select %p418, %s415, 7
      %s420 = smul.addr %s417, 8
      %s421 = sadd.s32 %s419, %s420
      %s422 = smul.addr %s421, 4
      %s423 = scalar_lea.vmem %s7, %s422
      %p424 = pneg %p262
      %p425 = pneg %p259
      %s426 = smul.u32 4, %s25
      %p427 = scmp.lt.s32.totalorder %s24, 1
      %s428 = scalar_select %p427, %s24, 1
      %p429 = scmp.lt.s32.totalorder %s426, 7
      %s430 = scalar_select %p429, %s426, 7
      %s431 = smul.addr %s428, 8
      %s432 = sadd.s32 %s430, %s431
      %s433 = smul.addr %s432, 4
      %s434 = scalar_lea.vmem %s8, %s433
      %s435 = smul.u32 4, %s25
      %p436 = scmp.lt.s32.totalorder %s24, 1
      %s437 = scalar_select %p436, %s24, 1
      %p438 = scmp.lt.s32.totalorder %s435, 11
      %s439 = scalar_select %p438, %s435, 11
      %s440 = smul.addr %s439, 2
      %s441 = smul.addr %s437, 24
      %s442 = sadd.s32 %s440, %s441
      %s443 = smul.addr %s442, 4
      %s444 = scalar_lea.vmem %s0, %s443
      %s445 = smul.u32 4, %s25
      %s446 = sadd.s32 %s25, 1
      %s447 = smul.u32 4, %s446
      %p448 = scmp.lt.s32.totalorder %s24, 1
      %s449 = scalar_select %p448, %s24, 1
      %p450 = scmp.lt.s32.totalorder %s447, 11
      %s451 = scalar_select %p450, %s447, 11
      %s452 = smul.addr %s451, 2
      %s453 = smul.addr %s449, 24
      %s454 = sadd.s32 %s452, %s453
      %s455 = smul.addr %s454, 4
      %s456 = scalar_lea.vmem %s1, %s455
      %s457 = sadd.s32 %s25, 1
      %s458 = smul.u32 4, %s457
      %s459 = smul.u32 4, %s25
      %p460 = scmp.lt.s32.totalorder %s24, 1
      %s461 = scalar_select %p460, %s24, 1
      %p462 = scmp.lt.s32.totalorder %s459, 11
      %s463 = scalar_select %p462, %s459, 11
      %s464 = smul.addr %s463, 2
      %s465 = smul.addr %s461, 24
      %s466 = sadd.s32 %s464, %s465
      %s467 = smul.addr %s466, 4
      %s468 = scalar_lea.vmem %s2, %s467
      %s469 = smul.u32 4, %s25
      %s470 = sadd.s32 %s25, 1
      %s471 = smul.u32 4, %s470
      %p472 = scmp.lt.s32.totalorder %s24, 1
      %s473 = scalar_select %p472, %s24, 1
      %p474 = scmp.lt.s32.totalorder %s471, 11
      %s475 = scalar_select %p474, %s471, 11
      %s476 = smul.addr %s475, 2
      %s477 = smul.addr %s473, 24
      %s478 = sadd.s32 %s476, %s477
      %s479 = smul.addr %s478, 4
      %s480 = scalar_lea.vmem %s3, %s479
      %s481 = sadd.s32 %s25, 1
      %s482 = smul.u32 4, %s481
      %s483 = smul.u32 4, %s25
      %p484 = scmp.lt.s32.totalorder %s24, 1
      %s485 = scalar_select %p484, %s24, 1
      %p486 = scmp.lt.s32.totalorder %s483, 7
      %s487 = scalar_select %p486, %s483, 7
      %s488 = smul.addr %s485, 8
      %s489 = sadd.s32 %s487, %s488
      %s490 = smul.addr %s489, 4
      %s491 = scalar_lea.vmem %s7, %s490
      %s492 = smul.u32 4, %s25
      %s493 = smul.u32 4, %s25
      %p494 = scmp.lt.s32.totalorder %s24, 1
      %s495 = scalar_select %p494, %s24, 1
      %p496 = scmp.lt.s32.totalorder %s493, 7
      %s497 = scalar_select %p496, %s493, 7
      %s498 = smul.addr %s495, 8
      %s499 = sadd.s32 %s497, %s498
      %s500 = smul.addr %s499, 4
      %s501 = scalar_lea.vmem %s8, %s500
      %s502 = smul.u32 4, %s25
      %v504 = vld [vmem:[%s444] sm:$0xf]
      %v505 = vld [vmem:[%s444 + $0x4] sm:$0x1]
      %v506 = vld [vmem:[%s444 + $0x8] sm:$0xf]
      %v507 = vld [vmem:[%s444 + $0xc] sm:$0x1]
      %v508 = vld [vmem:[%s444 + $0x10] sm:$0xf]
      %v509 = vld [vmem:[%s444 + $0x14] sm:$0x1]
      %v510 = vld [vmem:[%s444 + $0x18] sm:$0xf]
      %v511 = vld [vmem:[%s444 + $0x1c] sm:$0x1]
      %v512 = vld [vmem:[%s456] sm:$0xf]
      %v513 = vld [vmem:[%s456 + $0x4] sm:$0x1]
      %v514 = vld [vmem:[%s456 + $0x8] sm:$0xf]
      %v515 = vld [vmem:[%s456 + $0xc] sm:$0x1]
      %v516 = vld [vmem:[%s468] sm:$0xf]
      %v517 = vld [vmem:[%s468 + $0x4] sm:$0x1]
      %v518 = vld [vmem:[%s468 + $0x8] sm:$0xf]
      %v519 = vld [vmem:[%s468 + $0xc] sm:$0x1]
      %v520 = vld [vmem:[%s468 + $0x10] sm:$0xf]
      %v521 = vld [vmem:[%s468 + $0x14] sm:$0x1]
      %v522 = vld [vmem:[%s468 + $0x18] sm:$0xf]
      %v523 = vld [vmem:[%s468 + $0x1c] sm:$0x1]
      %v524 = vld [vmem:[%s480] sm:$0xf]
      %v525 = vld [vmem:[%s480 + $0x4] sm:$0x1]
      %v526 = vld [vmem:[%s480 + $0x8] sm:$0xf]
      %v527 = vld [vmem:[%s480 + $0xc] sm:$0x1]
      %v536 = vunpack.c.l.b16 %v504
      %v537 = vunpack.c.l.b16 %v505
      %v538 = vunpack.c.l.b16 %v506
      %v539 = vunpack.c.l.b16 %v507
      %v540 = vunpack.c.l.b16 %v508
      %v541 = vunpack.c.l.b16 %v509
      %v542 = vunpack.c.l.b16 %v510
      %v543 = vunpack.c.l.b16 %v511
      %v544 = vpack.c.b16 %v537, %v536
      %v545 = vpack.c.b16 %v539, %v538
      %v546 = vpack.c.b16 %v541, %v540
      %v547 = vpack.c.b16 %v543, %v542
      %v549 = vshrl.u32 %v544, 16
      %v551 = vshll.u32 %v544, 16
      %v553 = vrot.slane %v551, 1
      %v554 = vor.u32 %v549, %v553
      %v556 = vshrl.u32 %v545, 16
      %v558 = vshll.u32 %v545, 16
      %v560 = vrot.slane %v558, 1
      %v561 = vor.u32 %v556, %v560
      %v563 = vshrl.u32 %v546, 16
      %v565 = vshll.u32 %v546, 16
      %v567 = vrot.slane %v565, 1
      %v568 = vor.u32 %v563, %v567
      %v570 = vshrl.u32 %v547, 16
      %v572 = vshll.u32 %v547, 16
      %v574 = vrot.slane %v572, 1
      %v575 = vor.u32 %v570, %v574
      %576 = vrot.lane.b32.xlu0 %v554, 64
      %v577 = vpop.permute.xlu0 %576
      %578 = vrot.lane.b32.xlu0 %v561, 64
      %v579 = vpop.permute.xlu0 %578
      %580 = vrot.lane.b32.xlu0 %v568, 64
      %v581 = vpop.permute.xlu0 %580
      %582 = vrot.lane.b32.xlu0 %v575, 64
      %v583 = vpop.permute.xlu0 %582
      %v584 = vrot.slane %v544, 1
      %v585 = vrot.slane %v545, 1
      %v586 = vrot.slane %v546, 1
      %v587 = vrot.slane %v547, 1
      %vm588 = vcmask 523264
      %v591 = vsel %vm588, %v504, %v577
      %v594 = vsel %vm588, %v506, %v579
      %v597 = vsel %vm588, %v508, %v581
      %v600 = vsel %vm588, %v510, %v583
      %v605 = vunpack.c.l.b16 %v591
      %v606 = vunpack.c.l.b16 %v584
      %v607 = vunpack.c.l.b16 %v594
      %v608 = vunpack.c.l.b16 %v585
      %v609 = vunpack.c.l.b16 %v597
      %v610 = vunpack.c.l.b16 %v586
      %v611 = vunpack.c.l.b16 %v600
      %v612 = vunpack.c.l.b16 %v587
      %v621 = vunpack.c.l.b16 %v516
      %v622 = vunpack.c.l.b16 %v517
      %v623 = vunpack.c.l.b16 %v518
      %v624 = vunpack.c.l.b16 %v519
      %v625 = vunpack.c.l.b16 %v520
      %v626 = vunpack.c.l.b16 %v521
      %v627 = vunpack.c.l.b16 %v522
      %v628 = vunpack.c.l.b16 %v523
      %v629 = vpack.c.b16 %v622, %v621
      %v630 = vpack.c.b16 %v624, %v623
      %v631 = vpack.c.b16 %v626, %v625
      %v632 = vpack.c.b16 %v628, %v627
      %v634 = vshrl.u32 %v629, 16
      %v636 = vshll.u32 %v629, 16
      %v638 = vrot.slane %v636, 1
      %v639 = vor.u32 %v634, %v638
      %v641 = vshrl.u32 %v630, 16
      %v643 = vshll.u32 %v630, 16
      %v645 = vrot.slane %v643, 1
      %v646 = vor.u32 %v641, %v645
      %v648 = vshrl.u32 %v631, 16
      %v650 = vshll.u32 %v631, 16
      %v652 = vrot.slane %v650, 1
      %v653 = vor.u32 %v648, %v652
      %v655 = vshrl.u32 %v632, 16
      %v657 = vshll.u32 %v632, 16
      %v659 = vrot.slane %v657, 1
      %v660 = vor.u32 %v655, %v659
      %661 = vrot.lane.b32.xlu0 %v639, 64
      %v662 = vpop.permute.xlu0 %661
      %663 = vrot.lane.b32.xlu0 %v646, 64
      %v664 = vpop.permute.xlu0 %663
      %665 = vrot.lane.b32.xlu0 %v653, 64
      %v666 = vpop.permute.xlu0 %665
      %667 = vrot.lane.b32.xlu0 %v660, 64
      %v668 = vpop.permute.xlu0 %667
      %v669 = vrot.slane %v629, 1
      %v670 = vrot.slane %v630, 1
      %v671 = vrot.slane %v631, 1
      %v672 = vrot.slane %v632, 1
      %v675 = vsel %vm588, %v516, %v662
      %v678 = vsel %vm588, %v518, %v664
      %v681 = vsel %vm588, %v520, %v666
      %v684 = vsel %vm588, %v522, %v668
      %v689 = vunpack.c.l.b16 %v675
      %v690 = vunpack.c.l.b16 %v669
      %v691 = vunpack.c.l.b16 %v678
      %v692 = vunpack.c.l.b16 %v670
      %v693 = vunpack.c.l.b16 %v681
      %v694 = vunpack.c.l.b16 %v671
      %v695 = vunpack.c.l.b16 %v684
      %v696 = vunpack.c.l.b16 %v672
      %v697 = vpack.c.b16 %v607, %v605
      %v698 = vpack.c.b16 %v608, %v606
      %v699 = vpack.c.b16 %v611, %v609
      %v700 = vpack.c.b16 %v612, %v610
      %v703 = vpack.c.b16 %v691, %v689
      %v704 = vpack.c.b16 %v692, %v690
      %v705 = vpack.c.b16 %v695, %v693
      %v706 = vpack.c.b16 %v696, %v694
      %v709 = vld [vmem:[%s4] sm:$0xf]
      %v710 = vld [vmem:[%s4 + $0x4] sm:$0xf]
      %v711 = vld [vmem:[%s4 + $0x8] sm:$0xf]
      %v712 = vld [vmem:[%s4 + $0xc] sm:$0xf]
      %v713 = vld [vmem:[%s4 + $0x10] sm:$0xf]
      %v714 = vld [vmem:[%s4 + $0x14] sm:$0xf]
      %v715 = vld [vmem:[%s4 + $0x18] sm:$0xf]
      %v716 = vld [vmem:[%s4 + $0x1c] sm:$0xf]
      %v717 = vld [vmem:[%s4 + $0x20] sm:$0xf]
      %v718 = vld [vmem:[%s4 + $0x24] sm:$0xf]
      %v719 = vld [vmem:[%s4 + $0x28] sm:$0xf]
      %v720 = vld [vmem:[%s4 + $0x2c] sm:$0xf]
      %v721 = vld [vmem:[%s4 + $0x30] sm:$0xf]
      %v722 = vld [vmem:[%s4 + $0x34] sm:$0xf]
      %v723 = vld [vmem:[%s4 + $0x38] sm:$0xf]
      %v724 = vld [vmem:[%s4 + $0x3c] sm:$0xf]
      %v725 = vld [vmem:[%s4 + $0x40] sm:$0xf]
      %v726 = vld [vmem:[%s4 + $0x44] sm:$0xf]
      %v727 = vld [vmem:[%s4 + $0x48] sm:$0xf]
      %v728 = vld [vmem:[%s4 + $0x4c] sm:$0xf]
      %v729 = vld [vmem:[%s4 + $0x50] sm:$0xf]
      %v730 = vld [vmem:[%s4 + $0x54] sm:$0xf]
      %v731 = vld [vmem:[%s4 + $0x58] sm:$0xf]
      %v732 = vld [vmem:[%s4 + $0x5c] sm:$0xf]
      %v735 = vunpack.c.l.b16 %v512
      %v736 = vunpack.c.l.b16 %v513
      %v737 = vpack.c.b16 %v736, %v735
      %v739 = vshrl.u32 %v737, 16
      %v741 = vshll.u32 %v737, 16
      %v743 = vrot.slane %v741, 1
      %v744 = vor.u32 %v739, %v743
      %745 = vrot.lane.b32.xlu0 %v744, 64
      %v746 = vpop.permute.xlu0 %745
      %v747 = vrot.slane %v737, 1
      %v750 = vsel %vm588, %v512, %v746
      %v752 = vunpack.c.l.b16 %v750
      %v753 = vunpack.c.l.b16 %v747
      %v756 = vunpack.c.l.b16 %v524
      %v757 = vunpack.c.l.b16 %v525
      %v758 = vpack.c.b16 %v757, %v756
      %v760 = vshrl.u32 %v758, 16
      %v762 = vshll.u32 %v758, 16
      %v764 = vrot.slane %v762, 1
      %v765 = vor.u32 %v760, %v764
      %766 = vrot.lane.b32.xlu0 %v765, 64
      %v767 = vpop.permute.xlu0 %766
      %v768 = vrot.slane %v758, 1
      %v771 = vsel %vm588, %v524, %v767
      %v773 = vunpack.c.l.b16 %v771
      %v774 = vunpack.c.l.b16 %v768
      %v775 = vpack.c.b16 %v609, %v607
      %v776 = vpack.c.b16 %v610, %v608
      %v777 = vpack.c.b16 %v752, %v611
      %v778 = vpack.c.b16 %v753, %v612
      %v781 = vpack.c.b16 %v693, %v691
      %v782 = vpack.c.b16 %v694, %v692
      %v783 = vpack.c.b16 %v773, %v695
      %v784 = vpack.c.b16 %v774, %v696
      %s787 = scalar_lea.vmem %s4, 96
      %v788 = vld [vmem:[%s787] sm:$0xf]
      %v789 = vld [vmem:[%s787 + $0x4] sm:$0xf]
      %v790 = vld [vmem:[%s787 + $0x8] sm:$0xf]
      %v791 = vld [vmem:[%s787 + $0xc] sm:$0xf]
      %v792 = vld [vmem:[%s787 + $0x10] sm:$0xf]
      %v793 = vld [vmem:[%s787 + $0x14] sm:$0xf]
      %v794 = vld [vmem:[%s787 + $0x18] sm:$0xf]
      %v795 = vld [vmem:[%s787 + $0x1c] sm:$0xf]
      %v796 = vld [vmem:[%s787 + $0x20] sm:$0xf]
      %v797 = vld [vmem:[%s787 + $0x24] sm:$0xf]
      %v798 = vld [vmem:[%s787 + $0x28] sm:$0xf]
      %v799 = vld [vmem:[%s787 + $0x2c] sm:$0xf]
      %v800 = vld [vmem:[%s787 + $0x30] sm:$0xf]
      %v801 = vld [vmem:[%s787 + $0x34] sm:$0xf]
      %v802 = vld [vmem:[%s787 + $0x38] sm:$0xf]
      %v803 = vld [vmem:[%s787 + $0x3c] sm:$0xf]
      %v804 = vld [vmem:[%s787 + $0x40] sm:$0xf]
      %v805 = vld [vmem:[%s787 + $0x44] sm:$0xf]
      %v806 = vld [vmem:[%s787 + $0x48] sm:$0xf]
      %v807 = vld [vmem:[%s787 + $0x4c] sm:$0xf]
      %v808 = vld [vmem:[%s787 + $0x50] sm:$0xf]
      %v809 = vld [vmem:[%s787 + $0x54] sm:$0xf]
      %v810 = vld [vmem:[%s787 + $0x58] sm:$0xf]
      %v811 = vld [vmem:[%s787 + $0x5c] sm:$0xf]
      %v836 = vunpack.c.l.b16 %v788
      %v837 = vunpack.c.l.b16 %v789
      %v838 = vunpack.c.l.b16 %v790
      %v839 = vunpack.c.l.b16 %v791
      %v840 = vunpack.c.l.b16 %v792
      %v841 = vunpack.c.l.b16 %v793
      %v842 = vunpack.c.l.b16 %v794
      %v843 = vunpack.c.l.b16 %v795
      %v844 = vunpack.c.l.b16 %v796
      %v845 = vunpack.c.l.b16 %v797
      %v846 = vunpack.c.l.b16 %v798
      %v847 = vunpack.c.l.b16 %v799
      %v848 = vunpack.c.l.b16 %v800
      %v849 = vunpack.c.l.b16 %v801
      %v850 = vunpack.c.l.b16 %v802
      %v851 = vunpack.c.l.b16 %v803
      %v852 = vunpack.c.l.b16 %v804
      %v853 = vunpack.c.l.b16 %v805
      %v854 = vunpack.c.l.b16 %v806
      %v855 = vunpack.c.l.b16 %v807
      %v856 = vunpack.c.l.b16 %v808
      %v857 = vunpack.c.l.b16 %v809
      %v858 = vunpack.c.l.b16 %v810
      %v859 = vunpack.c.l.b16 %v811
      %v860 = vpack.c.b16 %v837, %v836
      %v861 = vpack.c.b16 %v839, %v838
      %v862 = vpack.c.b16 %v841, %v840
      %v863 = vpack.c.b16 %v843, %v842
      %v864 = vpack.c.b16 %v845, %v844
      %v865 = vpack.c.b16 %v847, %v846
      %v866 = vpack.c.b16 %v849, %v848
      %v867 = vpack.c.b16 %v851, %v850
      %v868 = vpack.c.b16 %v853, %v852
      %v869 = vpack.c.b16 %v855, %v854
      %v870 = vpack.c.b16 %v857, %v856
      %v871 = vpack.c.b16 %v859, %v858
      %v885 = vsel %vm588, %v776, 0
      %v888 = vsel %vm588, %v778, 0
      %v891 = vsel %vm588, %v782, 0
      %v894 = vsel %vm588, %v784, 0
      %896 = vmatprep.subr.bf16.mxu0 0
      %897 = vmatpush1.bf16.msra.mxu0 %v860
      %898 = vmatprep.subr.bf16.mxu0 0
      %899 = vmatpush1.bf16.msra.mxu0 %v861
      %900 = vmatprep.subr.bf16.mxu0 0
      %901 = vmatpush1.bf16.msra.mxu0 %v862
      %902 = vmatprep.subr.bf16.mxu0 0
      %903 = vmatpush1.bf16.msra.mxu0 %v863
      %904 = vmatprep.subr.bf16.mxu0 0
      %905 = vmatpush1.bf16.msra.mxu0 %v864
      %906 = vmatprep.subr.bf16.mxu0 0
      %907 = vmatpush1.bf16.msra.mxu0 %v865
      %908 = vmatprep.subr.bf16.mxu0 0
      %909 = vmatpush1.bf16.msra.mxu0 %v866
      %910 = vmatprep.subr.bf16.mxu0 0
      %911 = vmatpush1.bf16.msra.mxu0 %v867
      %912 = vmatprep.subr.bf16.mxu0 0
      %913 = vmatpush1.bf16.msra.mxu0 %v868
      %914 = vmatprep.subr.bf16.mxu0 0
      %915 = vmatpush1.bf16.msra.mxu0 %v869
      %916 = vmatprep.subr.bf16.mxu0 0
      %917 = vmatpush1.bf16.msra.mxu0 %v870
      %918 = vmatprep.subr.bf16.mxu0 0
      %919 = vmatpush1.bf16.msra.mxu0 %v871
      %920 = vmatprep.subr.bf16.mxu0 0
      %921 = vmatpush1.bf16.msra.mxu0 0
      %922 = vmatprep.subr.bf16.mxu0 0
      %923 = vmatpush1.bf16.msra.mxu0 0
      %924 = vmatprep.subr.bf16.mxu0 0
      %925 = vmatpush1.bf16.msra.mxu0 0
      %926 = vmatprep.subr.bf16.mxu0 0
      %927 = vmatpush1.bf16.msra.mxu0 0
      %928 = vmatprep.mubr.bf16.mxu0 %v885
      %929 = vmatmul.mubr.bf16.gmra.mrb[0].mxu0 %v775
      %v930 = vpop.f32.mrb[0].mxu0
      %v931 = vadd.f32 0.0, %v930
      %v932 = vpop.f32.mrb[0].mxu0
      %v933 = vpop.f32.mrb[0].mxu0
      %v934 = vadd.f32 0.0, %v933
      %v935 = vpop.f32.mrb[0].mxu0
      %936 = vmatprep.mubr.bf16.mxu0 %v888
      %937 = vmatmul.mubr.bf16.gmra.mrb[0].mxu0 %v777
      %v938 = vpop.f32.mrb[0].mxu0
      %v939 = vadd.f32 0.0, %v938
      %v940 = vpop.f32.mrb[0].mxu0
      %v941 = vpop.f32.mrb[0].mxu0
      %v942 = vadd.f32 0.0, %v941
      %v943 = vpop.f32.mrb[0].mxu0
      %944 = vmatprep.mubr.bf16.mxu0 %v891
      %945 = vmatmul.mubr.bf16.gmra.mrb[0].mxu0 %v781
      %v946 = vpop.f32.mrb[0].mxu0
      %v947 = vadd.f32 0.0, %v946
      %v948 = vpop.f32.mrb[0].mxu0
      %v949 = vpop.f32.mrb[0].mxu0
      %v950 = vadd.f32 0.0, %v949
      %v951 = vpop.f32.mrb[0].mxu0
      %952 = vmatprep.mubr.bf16.mxu0 %v894
      %953 = vmatmul.mubr.bf16.gmra.mrb[0].mxu0 %v783
      %v954 = vpop.f32.mrb[0].mxu0
      %v955 = vadd.f32 0.0, %v954
      %v956 = vpop.f32.mrb[0].mxu0
      %v957 = vpop.f32.mrb[0].mxu0
      %v958 = vadd.f32 0.0, %v957
      %v959 = vpop.f32.mrb[0].mxu0
      %960 = vdwg.mxu0
      %v985 = vunpack.c.l.b16 %v709
      %v986 = vunpack.c.l.b16 %v710
      %v987 = vunpack.c.l.b16 %v711
      %v988 = vunpack.c.l.b16 %v712
      %v989 = vunpack.c.l.b16 %v713
      %v990 = vunpack.c.l.b16 %v714
      %v991 = vunpack.c.l.b16 %v715
      %v992 = vunpack.c.l.b16 %v716
      %v993 = vunpack.c.l.b16 %v717
      %v994 = vunpack.c.l.b16 %v718
      %v995 = vunpack.c.l.b16 %v719
      %v996 = vunpack.c.l.b16 %v720
      %v997 = vunpack.c.l.b16 %v721
      %v998 = vunpack.c.l.b16 %v722
      %v999 = vunpack.c.l.b16 %v723
      %v1000 = vunpack.c.l.b16 %v724
      %v1001 = vunpack.c.l.b16 %v725
      %v1002 = vunpack.c.l.b16 %v726
      %v1003 = vunpack.c.l.b16 %v727
      %v1004 = vunpack.c.l.b16 %v728
      %v1005 = vunpack.c.l.b16 %v729
      %v1006 = vunpack.c.l.b16 %v730
      %v1007 = vunpack.c.l.b16 %v731
      %v1008 = vunpack.c.l.b16 %v732
      %v1009 = vpack.c.b16 %v986, %v985
      %v1010 = vpack.c.b16 %v988, %v987
      %v1011 = vpack.c.b16 %v990, %v989
      %v1012 = vpack.c.b16 %v992, %v991
      %v1013 = vpack.c.b16 %v994, %v993
      %v1014 = vpack.c.b16 %v996, %v995
      %v1015 = vpack.c.b16 %v998, %v997
      %v1016 = vpack.c.b16 %v1000, %v999
      %v1017 = vpack.c.b16 %v1002, %v1001
      %v1018 = vpack.c.b16 %v1004, %v1003
      %v1019 = vpack.c.b16 %v1006, %v1005
      %v1020 = vpack.c.b16 %v1008, %v1007
      %v1034 = vsel %vm588, %v698, 0
      %v1037 = vsel %vm588, %v700, 0
      %v1040 = vsel %vm588, %v704, 0
      %v1043 = vsel %vm588, %v706, 0
      %1045 = vmatprep.subr.bf16.mxu0 0
      %1046 = vmatpush1.bf16.msra.mxu0 %v1009
      %1047 = vmatprep.subr.bf16.mxu0 0
      %1048 = vmatpush1.bf16.msra.mxu0 %v1010
      %1049 = vmatprep.subr.bf16.mxu0 0
      %1050 = vmatpush1.bf16.msra.mxu0 %v1011
      %1051 = vmatprep.subr.bf16.mxu0 0
      %1052 = vmatpush1.bf16.msra.mxu0 %v1012
      %1053 = vmatprep.subr.bf16.mxu0 0
      %1054 = vmatpush1.bf16.msra.mxu0 %v1013
      %1055 = vmatprep.subr.bf16.mxu0 0
      %1056 = vmatpush1.bf16.msra.mxu0 %v1014
      %1057 = vmatprep.subr.bf16.mxu0 0
      %1058 = vmatpush1.bf16.msra.mxu0 %v1015
      %1059 = vmatprep.subr.bf16.mxu0 0
      %1060 = vmatpush1.bf16.msra.mxu0 %v1016
      %1061 = vmatprep.subr.bf16.mxu0 0
      %1062 = vmatpush1.bf16.msra.mxu0 %v1017
      %1063 = vmatprep.subr.bf16.mxu0 0
      %1064 = vmatpush1.bf16.msra.mxu0 %v1018
      %1065 = vmatprep.subr.bf16.mxu0 0
      %1066 = vmatpush1.bf16.msra.mxu0 %v1019
      %1067 = vmatprep.subr.bf16.mxu0 0
      %1068 = vmatpush1.bf16.msra.mxu0 %v1020
      %1069 = vmatprep.subr.bf16.mxu0 0
      %1070 = vmatpush1.bf16.msra.mxu0 0
      %1071 = vmatprep.subr.bf16.mxu0 0
      %1072 = vmatpush1.bf16.msra.mxu0 0
      %1073 = vmatprep.subr.bf16.mxu0 0
      %1074 = vmatpush1.bf16.msra.mxu0 0
      %1075 = vmatprep.subr.bf16.mxu0 0
      %1076 = vmatpush1.bf16.msra.mxu0 0
      %1077 = vmatprep.mubr.bf16.mxu0 %v1034
      %1078 = vmatmul.mubr.bf16.gmra.mrb[0].mxu0 %v697
      %v1079 = vpop.f32.mrb[0].mxu0
      %v1080 = vadd.f32 %v931, %v1079
      %v1081 = vpop.f32.mrb[0].mxu0
      %v1082 = vpop.f32.mrb[0].mxu0
      %v1083 = vadd.f32 %v934, %v1082
      %v1084 = vpop.f32.mrb[0].mxu0
      %1085 = vmatprep.mubr.bf16.mxu0 %v1037
      %1086 = vmatmul.mubr.bf16.gmra.mrb[0].mxu0 %v699
      %v1087 = vpop.f32.mrb[0].mxu0
      %v1088 = vadd.f32 %v939, %v1087
      %v1089 = vpop.f32.mrb[0].mxu0
      %v1090 = vpop.f32.mrb[0].mxu0
      %v1091 = vadd.f32 %v942, %v1090
      %v1092 = vpop.f32.mrb[0].mxu0
      %1093 = vmatprep.mubr.bf16.mxu0 %v1040
      %1094 = vmatmul.mubr.bf16.gmra.mrb[0].mxu0 %v703
      %v1095 = vpop.f32.mrb[0].mxu0
      %v1096 = vadd.f32 %v947, %v1095
      %v1097 = vpop.f32.mrb[0].mxu0
      %v1098 = vpop.f32.mrb[0].mxu0
      %v1099 = vadd.f32 %v950, %v1098
      %v1100 = vpop.f32.mrb[0].mxu0
      %1101 = vmatprep.mubr.bf16.mxu0 %v1043
      %1102 = vmatmul.mubr.bf16.gmra.mrb[0].mxu0 %v705
      %v1103 = vpop.f32.mrb[0].mxu0
      %v1104 = vadd.f32 %v955, %v1103
      %v1105 = vpop.f32.mrb[0].mxu0
      %v1106 = vpop.f32.mrb[0].mxu0
      %v1107 = vadd.f32 %v958, %v1106
      %v1108 = vpop.f32.mrb[0].mxu0
      %1109 = vdwg.mxu0
      %v1112 = vunpack.c.l.b16 %v514
      %v1113 = vunpack.c.l.b16 %v515
      %v1114 = vpack.c.b16 %v1113, %v1112
      %v1116 = vshrl.u32 %v1114, 16
      %v1118 = vshll.u32 %v1114, 16
      %v1120 = vrot.slane %v1118, 1
      %v1121 = vor.u32 %v1116, %v1120
      %1122 = vrot.lane.b32.xlu0 %v1121, 64
      %v1123 = vpop.permute.xlu0 %1122
      %v1124 = vrot.slane %v1114, 1
      %v1127 = vsel %vm588, %v514, %v1123
      %v1129 = vunpack.c.l.b16 %v1127
      %v1130 = vunpack.c.l.b16 %v1124
      %v1133 = vunpack.c.l.b16 %v526
      %v1134 = vunpack.c.l.b16 %v527
      %v1135 = vpack.c.b16 %v1134, %v1133
      %v1137 = vshrl.u32 %v1135, 16
      %v1139 = vshll.u32 %v1135, 16
      %v1141 = vrot.slane %v1139, 1
      %v1142 = vor.u32 %v1137, %v1141
      %1143 = vrot.lane.b32.xlu0 %v1142, 64
      %v1144 = vpop.permute.xlu0 %1143
      %v1145 = vrot.slane %v1135, 1
      %v1148 = vsel %vm588, %v526, %v1144
      %v1150 = vunpack.c.l.b16 %v1148
      %v1151 = vunpack.c.l.b16 %v1145
      %v1152 = vpack.c.b16 %v1129, %v752
      %v1153 = vpack.c.b16 %v1130, %v753
      %v1155 = vpack.c.b16 %v1150, %v773
      %v1156 = vpack.c.b16 %v1151, %v774
      %s1158 = scalar_lea.vmem %s4, 192
      %v1159 = vld [vmem:[%s1158] sm:$0xf]
      %v1160 = vld [vmem:[%s1158 + $0x4] sm:$0xf]
      %v1161 = vld [vmem:[%s1158 + $0x8] sm:$0xf]
      %v1162 = vld [vmem:[%s1158 + $0xc] sm:$0xf]
      %v1163 = vld [vmem:[%s1158 + $0x10] sm:$0xf]
      %v1164 = vld [vmem:[%s1158 + $0x14] sm:$0xf]
      %v1165 = vld [vmem:[%s1158 + $0x18] sm:$0xf]
      %v1166 = vld [vmem:[%s1158 + $0x1c] sm:$0xf]
      %v1167 = vld [vmem:[%s1158 + $0x20] sm:$0xf]
      %v1168 = vld [vmem:[%s1158 + $0x24] sm:$0xf]
      %v1169 = vld [vmem:[%s1158 + $0x28] sm:$0xf]
      %v1170 = vld [vmem:[%s1158 + $0x2c] sm:$0xf]
      %v1171 = vld [vmem:[%s1158 + $0x30] sm:$0xf]
      %v1172 = vld [vmem:[%s1158 + $0x34] sm:$0xf]
      %v1173 = vld [vmem:[%s1158 + $0x38] sm:$0xf]
      %v1174 = vld [vmem:[%s1158 + $0x3c] sm:$0xf]
      %v1175 = vld [vmem:[%s1158 + $0x40] sm:$0xf]
      %v1176 = vld [vmem:[%s1158 + $0x44] sm:$0xf]
      %v1177 = vld [vmem:[%s1158 + $0x48] sm:$0xf]
      %v1178 = vld [vmem:[%s1158 + $0x4c] sm:$0xf]
      %v1179 = vld [vmem:[%s1158 + $0x50] sm:$0xf]
      %v1180 = vld [vmem:[%s1158 + $0x54] sm:$0xf]
      %v1181 = vld [vmem:[%s1158 + $0x58] sm:$0xf]
      %v1182 = vld [vmem:[%s1158 + $0x5c] sm:$0xf]
      %v1207 = vunpack.c.l.b16 %v1159
      %v1208 = vunpack.c.l.b16 %v1160
      %v1209 = vunpack.c.l.b16 %v1161
      %v1210 = vunpack.c.l.b16 %v1162
      %v1211 = vunpack.c.l.b16 %v1163
      %v1212 = vunpack.c.l.b16 %v1164
      %v1213 = vunpack.c.l.b16 %v1165
      %v1214 = vunpack.c.l.b16 %v1166
      %v1215 = vunpack.c.l.b16 %v1167
      %v1216 = vunpack.c.l.b16 %v1168
      %v1217 = vunpack.c.l.b16 %v1169
      %v1218 = vunpack.c.l.b16 %v1170
      %v1219 = vunpack.c.l.b16 %v1171
      %v1220 = vunpack.c.l.b16 %v1172
      %v1221 = vunpack.c.l.b16 %v1173
      %v1222 = vunpack.c.l.b16 %v1174
      %v1223 = vunpack.c.l.b16 %v1175
      %v1224 = vunpack.c.l.b16 %v1176
      %v1225 = vunpack.c.l.b16 %v1177
      %v1226 = vunpack.c.l.b16 %v1178
      %v1227 = vunpack.c.l.b16 %v1179
      %v1228 = vunpack.c.l.b16 %v1180
      %v1229 = vunpack.c.l.b16 %v1181
      %v1230 = vunpack.c.l.b16 %v1182
      %v1231 = vpack.c.b16 %v1208, %v1207
      %v1232 = vpack.c.b16 %v1210, %v1209
      %v1233 = vpack.c.b16 %v1212, %v1211
      %v1234 = vpack.c.b16 %v1214, %v1213
      %v1235 = vpack.c.b16 %v1216, %v1215
      %v1236 = vpack.c.b16 %v1218, %v1217
      %v1237 = vpack.c.b16 %v1220, %v1219
      %v1238 = vpack.c.b16 %v1222, %v1221
      %v1239 = vpack.c.b16 %v1224, %v1223
      %v1240 = vpack.c.b16 %v1226, %v1225
      %v1241 = vpack.c.b16 %v1228, %v1227
      %v1242 = vpack.c.b16 %v1230, %v1229
      %v1256 = vsel %vm588, %v1153, 0
      %v1259 = vsel %vm588, %v1156, 0
      %1261 = vmatprep.subr.bf16.mxu0 0
      %1262 = vmatpush1.bf16.msra.mxu0 %v1231
      %1263 = vmatprep.subr.bf16.mxu0 0
      %1264 = vmatpush1.bf16.msra.mxu0 %v1232
      %1265 = vmatprep.subr.bf16.mxu0 0
      %1266 = vmatpush1.bf16.msra.mxu0 %v1233
      %1267 = vmatprep.subr.bf16.mxu0 0
      %1268 = vmatpush1.bf16.msra.mxu0 %v1234
      %1269 = vmatprep.subr.bf16.mxu0 0
      %1270 = vmatpush1.bf16.msra.mxu0 %v1235
      %1271 = vmatprep.subr.bf16.mxu0 0
      %1272 = vmatpush1.bf16.msra.mxu0 %v1236
      %1273 = vmatprep.subr.bf16.mxu0 0
      %1274 = vmatpush1.bf16.msra.mxu0 %v1237
      %1275 = vmatprep.subr.bf16.mxu0 0
      %1276 = vmatpush1.bf16.msra.mxu0 %v1238
      %1277 = vmatprep.subr.bf16.mxu0 0
      %1278 = vmatpush1.bf16.msra.mxu0 %v1239
      %1279 = vmatprep.subr.bf16.mxu0 0
      %1280 = vmatpush1.bf16.msra.mxu0 %v1240
      %1281 = vmatprep.subr.bf16.mxu0 0
      %1282 = vmatpush1.bf16.msra.mxu0 %v1241
      %1283 = vmatprep.subr.bf16.mxu0 0
      %1284 = vmatpush1.bf16.msra.mxu0 %v1242
      %1285 = vmatprep.subr.bf16.mxu0 0
      %1286 = vmatpush1.bf16.msra.mxu0 0
      %1287 = vmatprep.subr.bf16.mxu0 0
      %1288 = vmatpush1.bf16.msra.mxu0 0
      %1289 = vmatprep.subr.bf16.mxu0 0
      %1290 = vmatpush1.bf16.msra.mxu0 0
      %1291 = vmatprep.subr.bf16.mxu0 0
      %1292 = vmatpush1.bf16.msra.mxu0 0
      %1293 = vmatprep.mubr.bf16.mxu0 %v1037
      %1294 = vmatmul.mubr.bf16.gmra.mrb[0].mxu0 %v699
      %v1295 = vpop.f32.mrb[0].mxu0
      %v1296 = vadd.f32 0.0, %v1295
      %v1297 = vpop.f32.mrb[0].mxu0
      %v1298 = vpop.f32.mrb[0].mxu0
      %v1299 = vadd.f32 0.0, %v1298
      %v1300 = vpop.f32.mrb[0].mxu0
      %1301 = vmatprep.mubr.bf16.mxu0 %v1256
      %1302 = vmatmul.mubr.bf16.gmra.mrb[0].mxu0 %v1152
      %v1303 = vpop.f32.mrb[0].mxu0
      %v1304 = vadd.f32 0.0, %v1303
      %v1305 = vpop.f32.mrb[0].mxu0
      %v1306 = vpop.f32.mrb[0].mxu0
      %v1307 = vadd.f32 0.0, %v1306
      %v1308 = vpop.f32.mrb[0].mxu0
      %1309 = vmatprep.mubr.bf16.mxu0 %v1043
      %1310 = vmatmul.mubr.bf16.gmra.mrb[0].mxu0 %v705
      %v1311 = vpop.f32.mrb[0].mxu0
      %v1312 = vadd.f32 0.0, %v1311
      %v1313 = vpop.f32.mrb[0].mxu0
      %v1314 = vpop.f32.mrb[0].mxu0
      %v1315 = vadd.f32 0.0, %v1314
      %v1316 = vpop.f32.mrb[0].mxu0
      %1317 = vmatprep.mubr.bf16.mxu0 %v1259
      %1318 = vmatmul.mubr.bf16.gmra.mrb[0].mxu0 %v1155
      %v1319 = vpop.f32.mrb[0].mxu0
      %v1320 = vadd.f32 0.0, %v1319
      %v1321 = vpop.f32.mrb[0].mxu0
      %v1322 = vpop.f32.mrb[0].mxu0
      %v1323 = vadd.f32 0.0, %v1322
      %v1324 = vpop.f32.mrb[0].mxu0
      %1325 = vdwg.mxu0
      %v1326 = vadd.f32 %v1080, %v1296
      %v1327 = vadd.f32 %v1083, %v1299
      %v1328 = vadd.f32 %v1088, %v1304
      %v1329 = vadd.f32 %v1091, %v1307
      %v1330 = vadd.f32 %v1096, %v1312
      %v1331 = vadd.f32 %v1099, %v1315
      %v1332 = vadd.f32 %v1104, %v1320
      %v1333 = vadd.f32 %v1107, %v1323
      %v1334 = vld [vmem:[%s5] sm:$0x1]
      %v1335 = vld [vmem:[%s6] sm:$0x1]
      %v1337 = vlaneseq
      %v1338 = vshrl.u32 %v1337, 7
      %v1339 = vsub.s32 0, %v1338
      %v1340 = vrot.slane %v1334, %v1339
      %v1342 = vmul.f32 %v1326, %v1340
      %v1343 = vmul.f32 %v1327, %v1340
      %v1344 = vmul.f32 %v1328, %v1340
      %v1345 = vmul.f32 %v1329, %v1340
      %v1347 = vlaneseq
      %v1348 = vshrl.u32 %v1347, 7
      %v1349 = vsub.s32 0, %v1348
      %v1350 = vrot.slane %v1335, %v1349
      %v1352 = vadd.f32 %v1342, %v1350
      %v1353 = vadd.f32 %v1343, %v1350
      %v1354 = vadd.f32 %v1344, %v1350
      %v1355 = vadd.f32 %v1345, %v1350
      %v1356 = vmax.f32 %v1352, 0.0
      %v1357 = vmax.f32 %v1353, 0.0
      %v1358 = vmax.f32 %v1354, 0.0
      %v1359 = vmax.f32 %v1355, 0.0
      %v1360 = vpack.c.bf16 %v1356, %v1356
      %v1361 = vpack.c.bf16 %v1357, %v1357
      %v1362 = vpack.c.bf16 %v1358, %v1358
      %v1363 = vpack.c.bf16 %v1359, %v1359
      %1364 = vst [vmem:[%s491] sm:$0xf] %v1360
      %1365 = vst [vmem:[%s491 + $0x4] sm:$0xf] %v1361
      %1366 = vst [vmem:[%s491 + $0x8] sm:$0xf] %v1362
      %1367 = vst [vmem:[%s491 + $0xc] sm:$0xf] %v1363
      %v1368 = vmul.f32 %v1330, %v1340
      %v1369 = vmul.f32 %v1331, %v1340
      %v1370 = vmul.f32 %v1332, %v1340
      %v1371 = vmul.f32 %v1333, %v1340
      %v1372 = vadd.f32 %v1368, %v1350
      %v1373 = vadd.f32 %v1369, %v1350
      %v1374 = vadd.f32 %v1370, %v1350
      %v1375 = vadd.f32 %v1371, %v1350
      %v1376 = vmax.f32 %v1372, 0.0
      %v1377 = vmax.f32 %v1373, 0.0
      %v1378 = vmax.f32 %v1374, 0.0
      %v1379 = vmax.f32 %v1375, 0.0
      %v1380 = vpack.c.bf16 %v1376, %v1376
      %v1381 = vpack.c.bf16 %v1377, %v1377
      %v1382 = vpack.c.bf16 %v1378, %v1378
      %v1383 = vpack.c.bf16 %v1379, %v1379
      %1384 = vst [vmem:[%s501] sm:$0xf] %v1380
      %1385 = vst [vmem:[%s501 + $0x4] sm:$0xf] %v1381
      %1386 = vst [vmem:[%s501 + $0x8] sm:$0xf] %v1382
      %1387 = vst [vmem:[%s501 + $0xc] sm:$0xf] %v1383
      %s1388 = smul.u32 4, %s25
      %p1389 = scmp.lt.s32.totalorder %s24, 1
      %s1390 = scalar_select %p1389, %s24, 1
      %p1391 = scmp.lt.s32.totalorder %s1388, 7
      %s1392 = scalar_select %p1391, %s1388, 7
      %s1393 = smul.addr %s1390, 8
      %s1394 = sadd.s32 %s1392, %s1393
      %s1395 = smul.addr %s1394, 4
      %s1396 = scalar_lea.vmem %s7, %s1395
      %s1397 = smul.u32 4, %s25
      %p1398 = scmp.lt.s32.totalorder %s24, 1
      %s1399 = scalar_select %p1398, %s24, 1
      %p1400 = scmp.lt.s32.totalorder %s1397, 7
      %s1401 = scalar_select %p1400, %s1397, 7
      %s1402 = smul.addr %s1399, 8
      %s1403 = sadd.s32 %s1401, %s1402
      %s1404 = smul.addr %s1403, 4
      %s1405 = scalar_lea.vmem %s8, %s1404
      // Predicated region
      $region49: #{feature_loss.6} parent=47 // pred_check
        %p1406 = pneg %p231
      $region50: #{feature_loss.6} parent=47 // pred_check_branch
        %1408 = sbr.rel (%p1406) target = $region52
      $region51: #{feature_loss.6} parent=47 // pred_region
        %s1409 = smul.u32 4, %s25
      $region52: #{feature_loss.6} parent=47 // pred_fallthru
        _
      // Predicated region
      $region53: #{feature_loss.6} parent=47 // pred_check
        %p1410 = pneg %p259
      $region54: #{feature_loss.6} parent=47 // pred_check_branch
        %1412 = sbr.rel (%p1410) target = $region56
      $region55: #{feature_loss.6} parent=47 // pred_region
        %s1413 = smul.u32 4, %s25
      $region56: #{feature_loss.6} parent=47 // pred_fallthru
        _
    $region48: #{feature_loss.6} parent=5 // pred_fallthru
      _
    %p1414 = scmp.le.s32.totalorder 2, %s15
    // Predicated region
    $region57: #{feature_loss.6} parent=5 // pred_check
      %p1415 = pneg %p1414
    $region58: #{feature_loss.6} parent=5 // pred_check_branch
      %1417 = sbr.rel (%p1415) target = $region60
    $region59: #{feature_loss.6} parent=5 // pred_region
      %s1418 = ssub.s32 %s15, 2
      // Predicated region
      $region61: #{feature_loss.6} parent=59 // pred_check
        %p1419 = pneg %p237
      $region62: #{feature_loss.6} parent=59 // pred_check_branch
        %1421 = sbr.rel (%p1419) target = $region64
      $region63: #{feature_loss.6} parent=59 // pred_region
        %s1422 = smul.u32 4, %s27
        %p1423 = scmp.lt.s32.totalorder %s26, 1
        %s1424 = scalar_select %p1423, %s26, 1
        %p1425 = scmp.lt.s32.totalorder %s1422, 7
        %s1426 = scalar_select %p1425, %s1422, 7
        %s1427 = smul.addr %s1424, 8
        %s1428 = sadd.s32 %s1426, %s1427
        %s1429 = smul.addr %s1428, 4
        %s1430 = scalar_lea.vmem %s7, %s1429
      $region64: #{feature_loss.6} parent=59 // pred_fallthru
        _
      // Predicated region
      $region65: #{feature_loss.6} parent=59 // pred_check
        %p1431 = pneg %p265
      $region66: #{feature_loss.6} parent=59 // pred_check_branch
        %1433 = sbr.rel (%p1431) target = $region68
      $region67: #{feature_loss.6} parent=59 // pred_region
        %s1434 = smul.u32 4, %s27
        %p1435 = scmp.lt.s32.totalorder %s26, 1
        %s1436 = scalar_select %p1435, %s26, 1
        %p1437 = scmp.lt.s32.totalorder %s1434, 7
        %s1438 = scalar_select %p1437, %s1434, 7
        %s1439 = smul.addr %s1436, 8
        %s1440 = sadd.s32 %s1438, %s1439
        %s1441 = smul.addr %s1440, 4
        %s1442 = scalar_lea.vmem %s8, %s1441
      $region68: #{feature_loss.6} parent=59 // pred_fallthru
        _
    $region60: #{feature_loss.6} parent=5 // pred_fallthru
      _
  $region6: #{feature_loss.6} parent=0 // loop_footer
    %s19 = sadd.s32 1, %s15
  $region7: #{feature_loss.6} parent=0 // loop_footer_branch
    %14 = sbr.rel target = $region3
  $region8: #{feature_loss.6} parent=0 // loop_exit
    _

// kernel: feature_loss.5
$region0: #{feature_loss.5}
  #allocation0 [shape = 'u32[]', space=smem, size = 0x4, offset = 0x4, fixed_abs, tag = 'smem constant byte address 0x4 - core index']
  #allocation1 [shape = 'u32[144,128]{1,0:T(1,128)}', space=vmem, size = 0x12000, scoped, tag = 'internal scratch']
  #allocation2 [shape = 'f32[2,16,64]{2,1,0:T(8,128)}', space=vmem, size = 0x4000, scoped, tag = 'scratch operand']
  %s0 = inlined_call_operand.vmem [shape: bf16[2,20,18,64], index: 0, kind: input, shape index: {}, may-alias: {0,1}]
  %s1 = inlined_call_operand.vmem [shape: bf16[2,20,18,64], index: 1, kind: input, shape index: {}, may-alias: {0,1}]
  %s2 = inlined_call_operand.vmem [shape: bf16[2,20,18,64], index: 2, kind: input, shape index: {}, may-alias: {2,3}]
  %s3 = inlined_call_operand.vmem [shape: bf16[2,20,18,64], index: 3, kind: input, shape index: {}, may-alias: {2,3}]
  %s4 = inlined_call_operand.vmem [shape: bf16[3,192,64], index: 4, kind: input, shape index: {}]
  %s5 = inlined_call_operand.vmem [shape: f32[1,64], index: 5, kind: input, shape index: {}]
  %s6 = inlined_call_operand.vmem [shape: f32[1,64], index: 6, kind: input, shape index: {}]
  %s7 = inlined_call_operand.vmem [shape: bf16[2,8,8,64], index: 7, kind: output, shape index: {0}]
  %s8 = inlined_call_operand.vmem [shape: bf16[2,8,8,64], index: 8, kind: output, shape index: {1}]
  %s9 = inlined_call_operand.vmem [shape: f32[2,4,1,1], index: 9, kind: output, shape index: {2}]
  %10 = xla_tuple %s7, %s8, %s9
  %s11 = sld [smem:[#allocation0]]
  $region77: #{feature_loss.5} parent=0
    _
  %s13 = ssub.s32 1, %s11
  %s14 = scalar_select 0, %s13, %s11
  loop: start=0, step=1, limit=10
  $region2: #{feature_loss.5} parent=0 // loop_pre_header
    _
  $region3: #{feature_loss.5} parent=0 // loop_header
    %s16 = sphi 0, %s20
    %p17 = scmp.ge.s32.totalorder %s16, 10
    %s23 = sphi 0, %s35
    %s24 = sphi 0, %s31
    %s25 = sphi 0, %s23
    %s26 = sphi 0, %s24
    %s27 = sphi 0, %s25
    %s28 = sphi 0, %s26
    %s40 = sphi 0, %s42
    %s43 = sphi 0, %s40
    %s44 = sphi 0, %s43
    %s60 = sphi 0, %s44
    %s70 = sphi 0, %s72
    %s73 = sphi 0, %s70
    %s74 = sphi 0, %s73
    %s90 = sphi 0, %s74
    %s98 = sphi 0, %s100
    %s101 = sphi 0, %s98
    %s102 = sphi 0, %s101
    %s118 = sphi 0, %s102
    %s128 = sphi 0, %s130
    %s131 = sphi 0, %s128
    %s132 = sphi 0, %s131
    %s148 = sphi 0, %s132
    %s152 = sphi 0, %s152
    %s154 = sphi 0, %s152
    %s155 = sphi 0, %s154
    %s169 = sphi 0, %s155
    %s173 = sphi 0, %s173
    %s175 = sphi 0, %s173
    %s176 = sphi 0, %s175
    %s190 = sphi 0, %s176
    %s194 = sphi 0, %s194
    %s196 = sphi 0, %s194
    %s197 = sphi 0, %s196
    %s211 = sphi 0, %s197
    %s219 = sphi 0, %s221
    %s222 = sphi 0, %s219
    %s223 = sphi 0, %s222
    %s239 = sphi 0, %s223
    %s247 = sphi 0, %s249
    %s250 = sphi 0, %s247
    %s251 = sphi 0, %s250
    %s267 = sphi 0, %s251
    %s275 = sphi 0, %s277
    %s278 = sphi 0, %s275
    %s279 = sphi 0, %s278
    %s295 = sphi 0, %s279
  $region4: #{feature_loss.5} parent=0 // loop_header_branch
    %19 = sbr.rel (%p17) target = $region8
  $region5: #{feature_loss.5} parent=0 // loop_body
    %s21 = ssub.s32 %s16, 1
    %s22 = ssub.s32 %s16, 2
    %s29 = sadd.s32 1, %s24
    %p30 = scmp.ge.s32.totalorder %s29, 4
    %s31 = scalar_select %p30, 0, %s29
    %s32 = sadd.s32 1, %s23
    %s33 = scalar_select %p30, %s32, %s23
    %p34 = scmp.ge.s32.totalorder %s33, 2
    %s35 = scalar_select %p34, 0, %s33
    %s36 = ssub.s32 %s23, %s35
    %s37 = ssub.s32 %s24, %s31
    %s38 = sor.u32 %s36, %s37
    %p39 = scmp.eq.s32.totalorder %s38, 0
    %s41 = sadd.s32 %s40, 1
    %s42 = scalar_select %p39, %s40, %s41
    %p45 = pneg %p39
    %p46 = scmp.eq.s32.totalorder %s16, 7
    %p47 = por %p45, %p46
    %p48 = scmp.ne.s32.totalorder %s40, %s43
    %p49 = scmp.eq.s32.totalorder %s16, 0
    %p50 = por %p48, %p49
    %p51 = scmp.ne.s32.totalorder %s40, %s43
    %p52 = scmp.eq.s32.totalorder %s21, 7
    %p53 = por %p51, %p52
    %p54 = scmp.ne.s32.totalorder %s43, %s44
    %p55 = scmp.eq.s32.totalorder %s21, 0
    %p56 = por %p54, %p55
    %p57 = scmp.ne.s32.totalorder %s43, %s44
    %p58 = scmp.eq.s32.totalorder %s22, 7
    %p59 = por %p57, %p58
    %p61 = scmp.ne.s32.totalorder %s44, %s60
    %p62 = scmp.eq.s32.totalorder %s22, 0
    %p63 = por %p61, %p62
    %s64 = sadd.s32 %s24, 1
    %s65 = sadd.s32 %s31, 1
    %s66 = ssub.s32 %s23, %s35
    %s67 = ssub.s32 %s64, %s65
    %s68 = sor.u32 %s66, %s67
    %p69 = scmp.eq.s32.totalorder %s68, 0
    %s71 = sadd.s32 %s70, 1
    %s72 = scalar_select %p69, %s70, %s71
    %p75 = pneg %p69
    %p76 = scmp.eq.s32.totalorder %s16, 7
    %p77 = por %p75, %p76
    %p78 = scmp.ne.s32.totalorder %s70, %s73
    %p79 = scmp.eq.s32.totalorder %s16, 0
    %p80 = por %p78, %p79
    %p81 = scmp.ne.s32.totalorder %s70, %s73
    %p82 = scmp.eq.s32.totalorder %s21, 7
    %p83 = por %p81, %p82
    %p84 = scmp.ne.s32.totalorder %s73, %s74
    %p85 = scmp.eq.s32.totalorder %s21, 0
    %p86 = por %p84, %p85
    %p87 = scmp.ne.s32.totalorder %s73, %s74
    %p88 = scmp.eq.s32.totalorder %s22, 7
    %p89 = por %p87, %p88
    %p91 = scmp.ne.s32.totalorder %s74, %s90
    %p92 = scmp.eq.s32.totalorder %s22, 0
    %p93 = por %p91, %p92
    %s94 = ssub.s32 %s23, %s35
    %s95 = ssub.s32 %s24, %s31
    %s96 = sor.u32 %s94, %s95
    %p97 = scmp.eq.s32.totalorder %s96, 0
    %s99 = sadd.s32 %s98, 1
    %s100 = scalar_select %p97, %s98, %s99
    %p103 = pneg %p97
    %p104 = scmp.eq.s32.totalorder %s16, 7
    %p105 = por %p103, %p104
    %p106 = scmp.ne.s32.totalorder %s98, %s101
    %p107 = scmp.eq.s32.totalorder %s16, 0
    %p108 = por %p106, %p107
    %p109 = scmp.ne.s32.totalorder %s98, %s101
    %p110 = scmp.eq.s32.totalorder %s21, 7
    %p111 = por %p109, %p110
    %p112 = scmp.ne.s32.totalorder %s101, %s102
    %p113 = scmp.eq.s32.totalorder %s21, 0
    %p114 = por %p112, %p113
    %p115 = scmp.ne.s32.totalorder %s101, %s102
    %p116 = scmp.eq.s32.totalorder %s22, 7
    %p117 = por %p115, %p116
    %p119 = scmp.ne.s32.totalorder %s102, %s118
    %p120 = scmp.eq.s32.totalorder %s22, 0
    %p121 = por %p119, %p120
    %s122 = sadd.s32 %s24, 1
    %s123 = sadd.s32 %s31, 1
    %s124 = ssub.s32 %s23, %s35
    %s125 = ssub.s32 %s122, %s123
    %s126 = sor.u32 %s124, %s125
    %p127 = scmp.eq.s32.totalorder %s126, 0
    %s129 = sadd.s32 %s128, 1
    %s130 = scalar_select %p127, %s128, %s129
    %p133 = pneg %p127
    %p134 = scmp.eq.s32.totalorder %s16, 7
    %p135 = por %p133, %p134
    %p136 = scmp.ne.s32.totalorder %s128, %s131
    %p137 = scmp.eq.s32.totalorder %s16, 0
    %p138 = por %p136, %p137
    %p139 = scmp.ne.s32.totalorder %s128, %s131
    %p140 = scmp.eq.s32.totalorder %s21, 7
    %p141 = por %p139, %p140
    %p142 = scmp.ne.s32.totalorder %s131, %s132
    %p143 = scmp.eq.s32.totalorder %s21, 0
    %p144 = por %p142, %p143
    %p145 = scmp.ne.s32.totalorder %s131, %s132
    %p146 = scmp.eq.s32.totalorder %s22, 7
    %p147 = por %p145, %p146
    %p149 = scmp.ne.s32.totalorder %s132, %s148
    %p150 = scmp.eq.s32.totalorder %s22, 0
    %p151 = por %p149, %p150
    %s153 = sadd.s32 %s152, 1
    %p156 = scmp.eq.s32.totalorder %s16, 7
    %p157 = scmp.ne.s32.totalorder %s152, %s154
    %p158 = scmp.eq.s32.totalorder %s16, 0
    %p159 = por %p157, %p158
    %p160 = scmp.ne.s32.totalorder %s152, %s154
    %p161 = scmp.eq.s32.totalorder %s21, 7
    %p162 = por %p160, %p161
    %p163 = scmp.ne.s32.totalorder %s154, %s155
    %p164 = scmp.eq.s32.totalorder %s21, 0
    %p165 = por %p163, %p164
    %p166 = scmp.ne.s32.totalorder %s154, %s155
    %p167 = scmp.eq.s32.totalorder %s22, 7
    %p168 = por %p166, %p167
    %p170 = scmp.ne.s32.totalorder %s155, %s169
    %p171 = scmp.eq.s32.totalorder %s22, 0
    %p172 = por %p170, %p171
    %s174 = sadd.s32 %s173, 1
    %p177 = scmp.eq.s32.totalorder %s16, 7
    %p178 = scmp.ne.s32.totalorder %s173, %s175
    %p179 = scmp.eq.s32.totalorder %s16, 0
    %p180 = por %p178, %p179
    %p181 = scmp.ne.s32.totalorder %s173, %s175
    %p182 = scmp.eq.s32.totalorder %s21, 7
    %p183 = por %p181, %p182
    %p184 = scmp.ne.s32.totalorder %s175, %s176
    %p185 = scmp.eq.s32.totalorder %s21, 0
    %p186 = por %p184, %p185
    %p187 = scmp.ne.s32.totalorder %s175, %s176
    %p188 = scmp.eq.s32.totalorder %s22, 7
    %p189 = por %p187, %p188
    %p191 = scmp.ne.s32.totalorder %s176, %s190
    %p192 = scmp.eq.s32.totalorder %s22, 0
    %p193 = por %p191, %p192
    %s195 = sadd.s32 %s194, 1
    %p198 = scmp.eq.s32.totalorder %s16, 7
    %p199 = scmp.ne.s32.totalorder %s194, %s196
    %p200 = scmp.eq.s32.totalorder %s16, 0
    %p201 = por %p199, %p200
    %p202 = scmp.ne.s32.totalorder %s194, %s196
    %p203 = scmp.eq.s32.totalorder %s21, 7
    %p204 = por %p202, %p203
    %p205 = scmp.ne.s32.totalorder %s196, %s197
    %p206 = scmp.eq.s32.totalorder %s21, 0
    %p207 = por %p205, %p206
    %p208 = scmp.ne.s32.totalorder %s196, %s197
    %p209 = scmp.eq.s32.totalorder %s22, 7
    %p210 = por %p208, %p209
    %p212 = scmp.ne.s32.totalorder %s197, %s211
    %p213 = scmp.eq.s32.totalorder %s22, 0
    %p214 = por %p212, %p213
    %s215 = ssub.s32 %s23, %s35
    %s216 = ssub.s32 %s24, %s31
    %s217 = sor.u32 %s215, %s216
    %p218 = scmp.eq.s32.totalorder %s217, 0
    %s220 = sadd.s32 %s219, 1
    %s221 = scalar_select %p218, %s219, %s220
    %p224 = pneg %p218
    %p225 = scmp.eq.s32.totalorder %s16, 7
    %p226 = por %p224, %p225
    %p227 = scmp.ne.s32.totalorder %s219, %s222
    %p228 = scmp.eq.s32.totalorder %s16, 0
    %p229 = por %p227, %p228
    %p230 = scmp.ne.s32.totalorder %s219, %s222
    %p231 = scmp.eq.s32.totalorder %s21, 7
    %p232 = por %p230, %p231
    %p233 = scmp.ne.s32.totalorder %s222, %s223
    %p234 = scmp.eq.s32.totalorder %s21, 0
    %p235 = por %p233, %p234
    %p236 = scmp.ne.s32.totalorder %s222, %s223
    %p237 = scmp.eq.s32.totalorder %s22, 7
    %p238 = por %p236, %p237
    %p240 = scmp.ne.s32.totalorder %s223, %s239
    %p241 = scmp.eq.s32.totalorder %s22, 0
    %p242 = por %p240, %p241
    %s243 = ssub.s32 %s23, %s35
    %s244 = ssub.s32 %s24, %s31
    %s245 = sor.u32 %s243, %s244
    %p246 = scmp.eq.s32.totalorder %s245, 0
    %s248 = sadd.s32 %s247, 1
    %s249 = scalar_select %p246, %s247, %s248
    %p252 = pneg %p246
    %p253 = scmp.eq.s32.totalorder %s16, 7
    %p254 = por %p252, %p253
    %p255 = scmp.ne.s32.totalorder %s247, %s250
    %p256 = scmp.eq.s32.totalorder %s16, 0
    %p257 = por %p255, %p256
    %p258 = scmp.ne.s32.totalorder %s247, %s250
    %p259 = scmp.eq.s32.totalorder %s21, 7
    %p260 = por %p258, %p259
    %p261 = scmp.ne.s32.totalorder %s250, %s251
    %p262 = scmp.eq.s32.totalorder %s21, 0
    %p263 = por %p261, %p262
    %p264 = scmp.ne.s32.totalorder %s250, %s251
    %p265 = scmp.eq.s32.totalorder %s22, 7
    %p266 = por %p264, %p265
    %p268 = scmp.ne.s32.totalorder %s251, %s267
    %p269 = scmp.eq.s32.totalorder %s22, 0
    %p270 = por %p268, %p269
    %s271 = ssub.s32 %s23, %s35
    %s272 = ssub.s32 %s24, %s31
    %s273 = sor.u32 %s271, %s272
    %p274 = scmp.eq.s32.totalorder %s273, 0
    %s276 = sadd.s32 %s275, 1
    %s277 = scalar_select %p274, %s275, %s276
    %p280 = pneg %p274
    %p281 = scmp.eq.s32.totalorder %s16, 7
    %p282 = por %p280, %p281
    %p283 = scmp.ne.s32.totalorder %s275, %s278
    %p284 = scmp.eq.s32.totalorder %s16, 0
    %p285 = por %p283, %p284
    %p286 = scmp.ne.s32.totalorder %s275, %s278
    %p287 = scmp.eq.s32.totalorder %s21, 7
    %p288 = por %p286, %p287
    %p289 = scmp.ne.s32.totalorder %s278, %s279
    %p290 = scmp.eq.s32.totalorder %s21, 0
    %p291 = por %p289, %p290
    %p292 = scmp.ne.s32.totalorder %s278, %s279
    %p293 = scmp.eq.s32.totalorder %s22, 7
    %p294 = por %p292, %p293
    %p296 = scmp.ne.s32.totalorder %s279, %s295
    %p297 = scmp.eq.s32.totalorder %s22, 0
    %p298 = por %p296, %p297
    %p299 = scmp.le.s32.totalorder 1, %s16
    %p300 = scmp.lt.s32.totalorder %s16, 9
    %p301 = pnand %p299, %p300
    %p302 = pneg %p301
    // Predicated region
    $region9: #{feature_loss.5} parent=5 // pred_check
      _
    $region10: #{feature_loss.5} parent=5 // pred_check_branch
      %304 = sbr.rel (%p301) target = $region12
    $region11: #{feature_loss.5} parent=5 // pred_region
      %s305 = ssub.s32 %s16, 1
      // Predicated region
      $region13: #{feature_loss.5} parent=11 // pred_check
        %p306 = pneg %p165
      $region14: #{feature_loss.5} parent=11 // pred_check_branch
        %308 = sbr.rel (%p306) target = $region16
      $region15: #{feature_loss.5} parent=11 // pred_region
        _
      $region16: #{feature_loss.5} parent=11 // pred_fallthru
        _
      // Predicated region
      $region17: #{feature_loss.5} parent=11 // pred_check
        %p309 = pneg %p186
      $region18: #{feature_loss.5} parent=11 // pred_check_branch
        %311 = sbr.rel (%p309) target = $region20
      $region19: #{feature_loss.5} parent=11 // pred_region
        _
      $region20: #{feature_loss.5} parent=11 // pred_fallthru
        _
      // Predicated region
      $region21: #{feature_loss.5} parent=11 // pred_check
        %p312 = pneg %p207
      $region22: #{feature_loss.5} parent=11 // pred_check_branch
        %314 = sbr.rel (%p312) target = $region24
      $region23: #{feature_loss.5} parent=11 // pred_region
        _
      $region24: #{feature_loss.5} parent=11 // pred_fallthru
        _
    $region12: #{feature_loss.5} parent=5 // pred_fallthru
      _
    %p315 = scmp.lt.s32.totalorder %s16, 8
    // Predicated region
    $region25: #{feature_loss.5} parent=5 // pred_check
      %p316 = pneg %p315
    $region26: #{feature_loss.5} parent=5 // pred_check_branch
      %318 = sbr.rel (%p316) target = $region28
    $region27: #{feature_loss.5} parent=5 // pred_region
      // Predicated region
      $region29: #{feature_loss.5} parent=27 // pred_check
        %p319 = pneg %p50
      $region30: #{feature_loss.5} parent=27 // pred_check_branch
        %321 = sbr.rel (%p319) target = $region32
      $region31: #{feature_loss.5} parent=27 // pred_region
        %s322 = smul.u32 4, %s24
        %p323 = scmp.lt.s32.totalorder %s23, 1
        %s324 = scalar_select %p323, %s23, 1
        %p325 = scmp.lt.s32.totalorder %s322, 19
        %s326 = scalar_select %p325, %s322, 19
        %s327 = smul.addr %s326, 3
        %s328 = smul.addr %s324, 60
        %s329 = sadd.s32 %s327, %s328
        %s330 = smul.addr %s329, 4
        %s331 = scalar_lea.vmem %s0, %s330
        %s332 = smul.u32 4, %s24
      $region32: #{feature_loss.5} parent=27 // pred_fallthru
        _
      // Predicated region
      $region33: #{feature_loss.5} parent=27 // pred_check
        %p333 = pneg %p80
      $region34: #{feature_loss.5} parent=27 // pred_check_branch
        %335 = sbr.rel (%p333) target = $region36
      $region35: #{feature_loss.5} parent=27 // pred_region
        %s336 = sadd.s32 %s24, 1
        %s337 = smul.u32 4, %s336
        %p338 = scmp.lt.s32.totalorder %s23, 1
        %s339 = scalar_select %p338, %s23, 1
        %p340 = scmp.lt.s32.totalorder %s337, 19
        %s341 = scalar_select %p340, %s337, 19
        %s342 = smul.addr %s341, 3
        %s343 = smul.addr %s339, 60
        %s344 = sadd.s32 %s342, %s343
        %s345 = smul.addr %s344, 4
        %s346 = scalar_lea.vmem %s1, %s345
        %s347 = sadd.s32 %s24, 1
        %s348 = smul.u32 4, %s347
      $region36: #{feature_loss.5} parent=27 // pred_fallthru
        _
      // Predicated region
      $region37: #{feature_loss.5} parent=27 // pred_check
        %p349 = pneg %p108
      $region38: #{feature_loss.5} parent=27 // pred_check_branch
        %351 = sbr.rel (%p349) target = $region40
      $region39: #{feature_loss.5} parent=27 // pred_region
        %s352 = smul.u32 4, %s24
        %p353 = scmp.lt.s32.totalorder %s23, 1
        %s354 = scalar_select %p353, %s23, 1
        %p355 = scmp.lt.s32.totalorder %s352, 19
        %s356 = scalar_select %p355, %s352, 19
        %s357 = smul.addr %s356, 3
        %s358 = smul.addr %s354, 60
        %s359 = sadd.s32 %s357, %s358
        %s360 = smul.addr %s359, 4
        %s361 = scalar_lea.vmem %s2, %s360
        %s362 = smul.u32 4, %s24
      $region40: #{feature_loss.5} parent=27 // pred_fallthru
        _
      // Predicated region
      $region41: #{feature_loss.5} parent=27 // pred_check
        %p363 = pneg %p138
      $region42: #{feature_loss.5} parent=27 // pred_check_branch
        %365 = sbr.rel (%p363) target = $region44
      $region43: #{feature_loss.5} parent=27 // pred_region
        %s366 = sadd.s32 %s24, 1
        %s367 = smul.u32 4, %s366
        %p368 = scmp.lt.s32.totalorder %s23, 1
        %s369 = scalar_select %p368, %s23, 1
        %p370 = scmp.lt.s32.totalorder %s367, 19
        %s371 = scalar_select %p370, %s367, 19
        %s372 = smul.addr %s371, 3
        %s373 = smul.addr %s369, 60
        %s374 = sadd.s32 %s372, %s373
        %s375 = smul.addr %s374, 4
        %s376 = scalar_lea.vmem %s3, %s375
        %s377 = sadd.s32 %s24, 1
        %s378 = smul.u32 4, %s377
      $region44: #{feature_loss.5} parent=27 // pred_fallthru
        _
    $region28: #{feature_loss.5} parent=5 // pred_fallthru
      _
    %p379 = scmp.le.s32.totalorder 1, %s16
    %p380 = scmp.lt.s32.totalorder %s16, 9
    %p381 = pnand %p379, %p380
    %p382 = pneg %p381
    // Predicated region
    $region45: #{feature_loss.5} parent=5 // pred_check
      _
    $region46: #{feature_loss.5} parent=5 // pred_check_branch
      %384 = sbr.rel (%p381) target = $region48
    $region47: #{feature_loss.5} parent=5 // pred_region
      %s385 = ssub.s32 %s16, 1
      %s386 = smul.u32 4, %s26
      %p387 = scmp.lt.s32.totalorder %s25, 1
      %s388 = scalar_select %p387, %s25, 1
      %p389 = scmp.lt.s32.totalorder %s386, 19
      %s390 = scalar_select %p389, %s386, 19
      %s391 = smul.addr %s390, 3
      %s392 = smul.addr %s388, 60
      %s393 = sadd.s32 %s391, %s392
      %s394 = smul.addr %s393, 4
      %s395 = scalar_lea.vmem %s0, %s394
      %p396 = pneg %p56
      %p397 = pneg %p53
      %s398 = sadd.s32 %s26, 1
      %s399 = smul.u32 4, %s398
      %p400 = scmp.lt.s32.totalorder %s25, 1
      %s401 = scalar_select %p400, %s25, 1
      %p402 = scmp.lt.s32.totalorder %s399, 19
      %s403 = scalar_select %p402, %s399, 19
      %s404 = smul.addr %s403, 3
      %s405 = smul.addr %s401, 60
      %s406 = sadd.s32 %s404, %s405
      %s407 = smul.addr %s406, 4
      %s408 = scalar_lea.vmem %s1, %s407
      %p409 = pneg %p86
      %p410 = pneg %p83
      %s411 = smul.u32 4, %s26
      %p412 = scmp.lt.s32.totalorder %s25, 1
      %s413 = scalar_select %p412, %s25, 1
      %p414 = scmp.lt.s32.totalorder %s411, 19
      %s415 = scalar_select %p414, %s411, 19
      %s416 = smul.addr %s415, 3
      %s417 = smul.addr %s413, 60
      %s418 = sadd.s32 %s416, %s417
      %s419 = smul.addr %s418, 4
      %s420 = scalar_lea.vmem %s2, %s419
      %p421 = pneg %p114
      %p422 = pneg %p111
      %s423 = sadd.s32 %s26, 1
      %s424 = smul.u32 4, %s423
      %p425 = scmp.lt.s32.totalorder %s25, 1
      %s426 = scalar_select %p425, %s25, 1
      %p427 = scmp.lt.s32.totalorder %s424, 19
      %s428 = scalar_select %p427, %s424, 19
      %s429 = smul.addr %s428, 3
      %s430 = smul.addr %s426, 60
      %s431 = sadd.s32 %s429, %s430
      %s432 = smul.addr %s431, 4
      %s433 = scalar_lea.vmem %s3, %s432
      %p434 = pneg %p144
      %p435 = pneg %p141
      %p436 = pneg %p165
      %p437 = pneg %p162
      %p438 = pneg %p186
      %p439 = pneg %p183
      %p440 = pneg %p207
      %p441 = pneg %p204
      %p442 = pneg %p235
      %p443 = pneg %p232
      %s444 = smul.u32 2, %s26
      %p445 = scmp.lt.s32.totalorder %s25, 1
      %s446 = scalar_select %p445, %s25, 1
      %p447 = scmp.lt.s32.totalorder %s444, 7
      %s448 = scalar_select %p447, %s444, 7
      %s449 = smul.addr %s446, 8
      %s450 = sadd.s32 %s448, %s449
      %s451 = smul.addr %s450, 4
      %s452 = scalar_lea.vmem %s7, %s451
      %p453 = pneg %p263
      %p454 = pneg %p260
      %s455 = smul.u32 2, %s26
      %p456 = scmp.lt.s32.totalorder %s25, 1
      %s457 = scalar_select %p456, %s25, 1
      %p458 = scmp.lt.s32.totalorder %s455, 7
      %s459 = scalar_select %p458, %s455, 7
      %s460 = smul.addr %s457, 8
      %s461 = sadd.s32 %s459, %s460
      %s462 = smul.addr %s461, 4
      %s463 = scalar_lea.vmem %s8, %s462
      %p464 = pneg %p291
      %p465 = pneg %p288
      %p466 = scmp.lt.s32.totalorder %s25, 1
      %s467 = scalar_select %p466, %s25, 1
      %p468 = scmp.lt.s32.totalorder %s26, 3
      %s469 = scalar_select %p468, %s26, 3
      %s470 = smul.addr %s467, 4
      %s471 = sadd.s32 %s469, %s470
      %s472 = scalar_lea.vmem %s9, %s471
      %s473 = smul.u32 4, %s26
      %p474 = scmp.lt.s32.totalorder %s25, 1
      %s475 = scalar_select %p474, %s25, 1
      %p476 = scmp.lt.s32.totalorder %s473, 19
      %s477 = scalar_select %p476, %s473, 19
      %s478 = smul.addr %s477, 3
      %s479 = smul.addr %s475, 60
      %s480 = sadd.s32 %s478, %s479
      %s481 = smul.addr %s480, 4
      %s482 = scalar_lea.vmem %s0, %s481
      %s483 = smul.u32 4, %s26
      %s484 = sadd.s32 %s26, 1
      %s485 = smul.u32 4, %s484
      %p486 = scmp.lt.s32.totalorder %s25, 1
      %s487 = scalar_select %p486, %s25, 1
      %p488 = scmp.lt.s32.totalorder %s485, 19
      %s489 = scalar_select %p488, %s485, 19
      %s490 = smul.addr %s489, 3
      %s491 = smul.addr %s487, 60
      %s492 = sadd.s32 %s490, %s491
      %s493 = smul.addr %s492, 4
      %s494 = scalar_lea.vmem %s1, %s493
      %s495 = sadd.s32 %s26, 1
      %s496 = smul.u32 4, %s495
      %s497 = smul.u32 4, %s26
      %p498 = scmp.lt.s32.totalorder %s25, 1
      %s499 = scalar_select %p498, %s25, 1
      %p500 = scmp.lt.s32.totalorder %s497, 19
      %s501 = scalar_select %p500, %s497, 19
      %s502 = smul.addr %s501, 3
      %s503 = smul.addr %s499, 60
      %s504 = sadd.s32 %s502, %s503
      %s505 = smul.addr %s504, 4
      %s506 = scalar_lea.vmem %s2, %s505
      %s507 = smul.u32 4, %s26
      %s508 = sadd.s32 %s26, 1
      %s509 = smul.u32 4, %s508
      %p510 = scmp.lt.s32.totalorder %s25, 1
      %s511 = scalar_select %p510, %s25, 1
      %p512 = scmp.lt.s32.totalorder %s509, 19
      %s513 = scalar_select %p512, %s509, 19
      %s514 = smul.addr %s513, 3
      %s515 = smul.addr %s511, 60
      %s516 = sadd.s32 %s514, %s515
      %s517 = smul.addr %s516, 4
      %s518 = scalar_lea.vmem %s3, %s517
      %s519 = sadd.s32 %s26, 1
      %s520 = smul.u32 4, %s519
      %s521 = smul.u32 2, %s26
      %p522 = scmp.lt.s32.totalorder %s25, 1
      %s523 = scalar_select %p522, %s25, 1
      %p524 = scmp.lt.s32.totalorder %s521, 7
      %s525 = scalar_select %p524, %s521, 7
      %s526 = smul.addr %s523, 8
      %s527 = sadd.s32 %s525, %s526
      %s528 = smul.addr %s527, 4
      %s529 = scalar_lea.vmem %s7, %s528
      %s530 = smul.u32 2, %s26
      %s531 = smul.u32 2, %s26
      %p532 = scmp.lt.s32.totalorder %s25, 1
      %s533 = scalar_select %p532, %s25, 1
      %p534 = scmp.lt.s32.totalorder %s531, 7
      %s535 = scalar_select %p534, %s531, 7
      %s536 = smul.addr %s533, 8
      %s537 = sadd.s32 %s535, %s536
      %s538 = smul.addr %s537, 4
      %s539 = scalar_lea.vmem %s8, %s538
      %s540 = smul.u32 2, %s26
      %p541 = scmp.lt.s32.totalorder %s25, 1
      %s542 = scalar_select %p541, %s25, 1
      %p543 = scmp.lt.s32.totalorder %s26, 3
      %s544 = scalar_select %p543, %s26, 3
      %s545 = smul.addr %s542, 4
      %s546 = sadd.s32 %s544, %s545
      %s547 = scalar_lea.vmem %s9, %s546
      %v549 = vld [vmem:[%s482] sm:$0xf]
      %v550 = vld [vmem:[%s482 + $0x4] sm:$0xf]
      %v551 = vld [vmem:[%s482 + $0x8] sm:$0x1]
      %v552 = vld [vmem:[%s482 + $0xc] sm:$0xf]
      %v553 = vld [vmem:[%s482 + $0x10] sm:$0xf]
      %v554 = vld [vmem:[%s482 + $0x14] sm:$0x1]
      %v555 = vld [vmem:[%s482 + $0x18] sm:$0xf]
      %v556 = vld [vmem:[%s482 + $0x1c] sm:$0xf]
      %v557 = vld [vmem:[%s482 + $0x20] sm:$0x1]
      %v558 = vld [vmem:[%s482 + $0x24] sm:$0xf]
      %v559 = vld [vmem:[%s482 + $0x28] sm:$0xf]
      %v560 = vld [vmem:[%s482 + $0x2c] sm:$0x1]
      %v561 = vld [vmem:[%s494] sm:$0xf]
      %v562 = vld [vmem:[%s494 + $0x4] sm:$0xf]
      %v563 = vld [vmem:[%s494 + $0x8] sm:$0x1]
      %v564 = vld [vmem:[%s494 + $0xc] sm:$0xf]
      %v565 = vld [vmem:[%s494 + $0x10] sm:$0xf]
      %v566 = vld [vmem:[%s494 + $0x14] sm:$0x1]
      %v567 = vld [vmem:[%s506] sm:$0xf]
      %v568 = vld [vmem:[%s506 + $0x4] sm:$0xf]
      %v569 = vld [vmem:[%s506 + $0x8] sm:$0x1]
      %v570 = vld [vmem:[%s506 + $0xc] sm:$0xf]
      %v571 = vld [vmem:[%s506 + $0x10] sm:$0xf]
      %v572 = vld [vmem:[%s506 + $0x14] sm:$0x1]
      %v573 = vld [vmem:[%s506 + $0x18] sm:$0xf]
      %v574 = vld [vmem:[%s506 + $0x1c] sm:$0xf]
      %v575 = vld [vmem:[%s506 + $0x20] sm:$0x1]
      %v576 = vld [vmem:[%s506 + $0x24] sm:$0xf]
      %v577 = vld [vmem:[%s506 + $0x28] sm:$0xf]
      %v578 = vld [vmem:[%s506 + $0x2c] sm:$0x1]
      %v579 = vld [vmem:[%s518] sm:$0xf]
      %v580 = vld [vmem:[%s518 + $0x4] sm:$0xf]
      %v581 = vld [vmem:[%s518 + $0x8] sm:$0x1]
      %v582 = vld [vmem:[%s518 + $0xc] sm:$0xf]
      %v583 = vld [vmem:[%s518 + $0x10] sm:$0xf]
      %v584 = vld [vmem:[%s518 + $0x14] sm:$0x1]
      %v593 = vunpack.c.l.b16 %v549
      %v594 = vunpack.c.l.b16 %v550
      %v595 = vunpack.c.l.b16 %v552
      %v596 = vunpack.c.l.b16 %v553
      %v597 = vunpack.c.l.b16 %v555
      %v598 = vunpack.c.l.b16 %v556
      %v599 = vunpack.c.l.b16 %v558
      %v600 = vunpack.c.l.b16 %v559
      %v601 = vpack.c.b16 %v594, %v593
      %v602 = vpack.c.b16 %v596, %v595
      %v603 = vpack.c.b16 %v598, %v597
      %v604 = vpack.c.b16 %v600, %v599
      %v609 = vunpack.c.l.b16 %v551
      %v610 = vunpack.c.l.b16 %v554
      %v611 = vunpack.c.l.b16 %v557
      %v612 = vunpack.c.l.b16 %v560
      %v613 = vpack.c.b16 %v609, %v609
      %v614 = vpack.c.b16 %v610, %v610
      %v615 = vpack.c.b16 %v611, %v611
      %v616 = vpack.c.b16 %v612, %v612
      %vm617 = vsmask.f32 7424
      %v619 = vshrl.u32 %v601, 16
      %v621 = vshll.u32 %v601, 16
      %v623 = vrot.slane %v621, 1
      %v624 = vor.u32 %v619, %v623
      %v626 = vshll.u32 %v613, 16
      %v628 = vrot.slane %v626, 1
      %v629 = vsel %vm617, %v624, %v628
      %v631 = vshrl.u32 %v602, 16
      %v633 = vshll.u32 %v602, 16
      %v635 = vrot.slane %v633, 1
      %v636 = vor.u32 %v631, %v635
      %v638 = vshll.u32 %v614, 16
      %v640 = vrot.slane %v638, 1
      %v641 = vsel %vm617, %v636, %v640
      %v643 = vshrl.u32 %v603, 16
      %v645 = vshll.u32 %v603, 16
      %v647 = vrot.slane %v645, 1
      %v648 = vor.u32 %v643, %v647
      %v650 = vshll.u32 %v615, 16
      %v652 = vrot.slane %v650, 1
      %v653 = vsel %vm617, %v648, %v652
      %v655 = vshrl.u32 %v604, 16
      %v657 = vshll.u32 %v604, 16
      %v659 = vrot.slane %v657, 1
      %v660 = vor.u32 %v655, %v659
      %v662 = vshll.u32 %v616, 16
      %v664 = vrot.slane %v662, 1
      %v665 = vsel %vm617, %v660, %v664
      %666 = vrot.lane.b32.xlu0 %v629, 64
      %v667 = vpop.permute.xlu0 %666
      %668 = vrot.lane.b32.xlu0 %v641, 64
      %v669 = vpop.permute.xlu0 %668
      %670 = vrot.lane.b32.xlu0 %v653, 64
      %v671 = vpop.permute.xlu0 %670
      %672 = vrot.lane.b32.xlu0 %v665, 64
      %v673 = vpop.permute.xlu0 %672
      %vm674 = vcmask 1046528
      %v675 = vrot.slane %v601, 1
      %v676 = vrot.slane %v613, 1
      %v677 = vsel %vm674, %v675, %v676
      %v678 = vrot.slane %v602, 1
      %v679 = vrot.slane %v614, 1
      %v680 = vsel %vm674, %v678, %v679
      %v681 = vrot.slane %v603, 1
      %v682 = vrot.slane %v615, 1
      %v683 = vsel %vm674, %v681, %v682
      %v684 = vrot.slane %v604, 1
      %v685 = vrot.slane %v616, 1
      %v686 = vsel %vm674, %v684, %v685
      %vm687 = vcmask 523264
      %v689 = vsel %vm687, %v601, %v667
      %v692 = vsel %vm687, %v602, %v669
      %v695 = vsel %vm687, %v603, %v671
      %v698 = vsel %vm687, %v604, %v673
      %v708 = vunpack.c.l.b16 %v567
      %v709 = vunpack.c.l.b16 %v568
      %v710 = vunpack.c.l.b16 %v570
      %v711 = vunpack.c.l.b16 %v571
      %v712 = vunpack.c.l.b16 %v573
      %v713 = vunpack.c.l.b16 %v574
      %v714 = vunpack.c.l.b16 %v576
      %v715 = vunpack.c.l.b16 %v577
      %v716 = vpack.c.b16 %v709, %v708
      %v717 = vpack.c.b16 %v711, %v710
      %v718 = vpack.c.b16 %v713, %v712
      %v719 = vpack.c.b16 %v715, %v714
      %v724 = vunpack.c.l.b16 %v569
      %v725 = vunpack.c.l.b16 %v572
      %v726 = vunpack.c.l.b16 %v575
      %v727 = vunpack.c.l.b16 %v578
      %v728 = vpack.c.b16 %v724, %v724
      %v729 = vpack.c.b16 %v725, %v725
      %v730 = vpack.c.b16 %v726, %v726
      %v731 = vpack.c.b16 %v727, %v727
      %v733 = vshrl.u32 %v716, 16
      %v735 = vshll.u32 %v716, 16
      %v737 = vrot.slane %v735, 1
      %v738 = vor.u32 %v733, %v737
      %v740 = vshll.u32 %v728, 16
      %v742 = vrot.slane %v740, 1
      %v743 = vsel %vm617, %v738, %v742
      %v745 = vshrl.u32 %v717, 16
      %v747 = vshll.u32 %v717, 16
      %v749 = vrot.slane %v747, 1
      %v750 = vor.u32 %v745, %v749
      %v752 = vshll.u32 %v729, 16
      %v754 = vrot.slane %v752, 1
      %v755 = vsel %vm617, %v750, %v754
      %v757 = vshrl.u32 %v718, 16
      %v759 = vshll.u32 %v718, 16
      %v761 = vrot.slane %v759, 1
      %v762 = vor.u32 %v757, %v761
      %v764 = vshll.u32 %v730, 16
      %v766 = vrot.slane %v764, 1
      %v767 = vsel %vm617, %v762, %v766
      %v769 = vshrl.u32 %v719, 16
      %v771 = vshll.u32 %v719, 16
      %v773 = vrot.slane %v771, 1
      %v774 = vor.u32 %v769, %v773
      %v776 = vshll.u32 %v731, 16
      %v778 = vrot.slane %v776, 1
      %v779 = vsel %vm617, %v774, %v778
      %780 = vrot.lane.b32.xlu0 %v743, 64
      %v781 = vpop.permute.xlu0 %780
      %782 = vrot.lane.b32.xlu0 %v755, 64
      %v783 = vpop.permute.xlu0 %782
      %784 = vrot.lane.b32.xlu0 %v767, 64
      %v785 = vpop.permute.xlu0 %784
      %786 = vrot.lane.b32.xlu0 %v779, 64
      %v787 = vpop.permute.xlu0 %786
      %v788 = vrot.slane %v716, 1
      %v789 = vrot.slane %v728, 1
      %v790 = vsel %vm674, %v788, %v789
      %v791 = vrot.slane %v717, 1
      %v792 = vrot.slane %v729, 1
      %v793 = vsel %vm674, %v791, %v792
      %v794 = vrot.slane %v718, 1
      %v795 = vrot.slane %v730, 1
      %v796 = vsel %vm674, %v794, %v795
      %v797 = vrot.slane %v719, 1
      %v798 = vrot.slane %v731, 1
      %v799 = vsel %vm674, %v797, %v798
      %v801 = vsel %vm687, %v716, %v781
      %v804 = vsel %vm687, %v717, %v783
      %v807 = vsel %vm687, %v718, %v785
      %v810 = vsel %vm687, %v719, %v787
      %v812 = vld [vmem:[%s4] sm:$0xf]
      %v813 = vld [vmem:[%s4 + $0x4] sm:$0xf]
      %v814 = vld [vmem:[%s4 + $0x8] sm:$0xf]
      %v815 = vld [vmem:[%s4 + $0xc] sm:$0xf]
      %v816 = vld [vmem:[%s4 + $0x10] sm:$0xf]
      %v817 = vld [vmem:[%s4 + $0x14] sm:$0xf]
      %v818 = vld [vmem:[%s4 + $0x18] sm:$0xf]
      %v819 = vld [vmem:[%s4 + $0x1c] sm:$0xf]
      %v820 = vld [vmem:[%s4 + $0x20] sm:$0xf]
      %v821 = vld [vmem:[%s4 + $0x24] sm:$0xf]
      %v822 = vld [vmem:[%s4 + $0x28] sm:$0xf]
      %v823 = vld [vmem:[%s4 + $0x2c] sm:$0xf]
      %v824 = vld [vmem:[%s4 + $0x30] sm:$0xf]
      %v825 = vld [vmem:[%s4 + $0x34] sm:$0xf]
      %v826 = vld [vmem:[%s4 + $0x38] sm:$0xf]
      %v827 = vld [vmem:[%s4 + $0x3c] sm:$0xf]
      %v828 = vld [vmem:[%s4 + $0x40] sm:$0xf]
      %v829 = vld [vmem:[%s4 + $0x44] sm:$0xf]
      %v830 = vld [vmem:[%s4 + $0x48] sm:$0xf]
      %v831 = vld [vmem:[%s4 + $0x4c] sm:$0xf]
      %v832 = vld [vmem:[%s4 + $0x50] sm:$0xf]
      %v833 = vld [vmem:[%s4 + $0x54] sm:$0xf]
      %v834 = vld [vmem:[%s4 + $0x58] sm:$0xf]
      %v835 = vld [vmem:[%s4 + $0x5c] sm:$0xf]
      %v838 = vunpack.c.l.b16 %v561
      %v839 = vunpack.c.l.b16 %v562
      %v840 = vpack.c.b16 %v839, %v838
      %v842 = vunpack.c.l.b16 %v563
      %v843 = vpack.c.b16 %v842, %v842
      %v845 = vshrl.u32 %v840, 16
      %v847 = vshll.u32 %v840, 16
      %v849 = vrot.slane %v847, 1
      %v850 = vor.u32 %v845, %v849
      %v852 = vshll.u32 %v843, 16
      %v854 = vrot.slane %v852, 1
      %v855 = vsel %vm617, %v850, %v854
      %856 = vrot.lane.b32.xlu0 %v855, 64
      %v857 = vpop.permute.xlu0 %856
      %v858 = vrot.slane %v840, 1
      %v859 = vrot.slane %v843, 1
      %v860 = vsel %vm674, %v858, %v859
      %v862 = vsel %vm687, %v840, %v857
      %v866 = vunpack.c.l.b16 %v579
      %v867 = vunpack.c.l.b16 %v580
      %v868 = vpack.c.b16 %v867, %v866
      %v870 = vunpack.c.l.b16 %v581
      %v871 = vpack.c.b16 %v870, %v870
      %v873 = vshrl.u32 %v868, 16
      %v875 = vshll.u32 %v868, 16
      %v877 = vrot.slane %v875, 1
      %v878 = vor.u32 %v873, %v877
      %v880 = vshll.u32 %v871, 16
      %v882 = vrot.slane %v880, 1
      %v883 = vsel %vm617, %v878, %v882
      %884 = vrot.lane.b32.xlu0 %v883, 64
      %v885 = vpop.permute.xlu0 %884
      %v886 = vrot.slane %v868, 1
      %v887 = vrot.slane %v871, 1
      %v888 = vsel %vm674, %v886, %v887
      %v890 = vsel %vm687, %v868, %v885
      %s892 = scalar_lea.vmem %s4, 96
      %v893 = vld [vmem:[%s892] sm:$0xf]
      %v894 = vld [vmem:[%s892 + $0x4] sm:$0xf]
      %v895 = vld [vmem:[%s892 + $0x8] sm:$0xf]
      %v896 = vld [vmem:[%s892 + $0xc] sm:$0xf]
      %v897 = vld [vmem:[%s892 + $0x10] sm:$0xf]
      %v898 = vld [vmem:[%s892 + $0x14] sm:$0xf]
      %v899 = vld [vmem:[%s892 + $0x18] sm:$0xf]
      %v900 = vld [vmem:[%s892 + $0x1c] sm:$0xf]
      %v901 = vld [vmem:[%s892 + $0x20] sm:$0xf]
      %v902 = vld [vmem:[%s892 + $0x24] sm:$0xf]
      %v903 = vld [vmem:[%s892 + $0x28] sm:$0xf]
      %v904 = vld [vmem:[%s892 + $0x2c] sm:$0xf]
      %v905 = vld [vmem:[%s892 + $0x30] sm:$0xf]
      %v906 = vld [vmem:[%s892 + $0x34] sm:$0xf]
      %v907 = vld [vmem:[%s892 + $0x38] sm:$0xf]
      %v908 = vld [vmem:[%s892 + $0x3c] sm:$0xf]
      %v909 = vld [vmem:[%s892 + $0x40] sm:$0xf]
      %v910 = vld [vmem:[%s892 + $0x44] sm:$0xf]
      %v911 = vld [vmem:[%s892 + $0x48] sm:$0xf]
      %v912 = vld [vmem:[%s892 + $0x4c] sm:$0xf]
      %v913 = vld [vmem:[%s892 + $0x50] sm:$0xf]
      %v914 = vld [vmem:[%s892 + $0x54] sm:$0xf]
      %v915 = vld [vmem:[%s892 + $0x58] sm:$0xf]
      %v916 = vld [vmem:[%s892 + $0x5c] sm:$0xf]
      %v941 = vunpack.c.l.b16 %v893
      %v942 = vunpack.c.l.b16 %v894
      %v943 = vunpack.c.l.b16 %v895
      %v944 = vunpack.c.l.b16 %v896
      %v945 = vunpack.c.l.b16 %v897
      %v946 = vunpack.c.l.b16 %v898
      %v947 = vunpack.c.l.b16 %v899
      %v948 = vunpack.c.l.b16 %v900
      %v949 = vunpack.c.l.b16 %v901
      %v950 = vunpack.c.l.b16 %v902
      %v951 = vunpack.c.l.b16 %v903
      %v952 = vunpack.c.l.b16 %v904
      %v953 = vunpack.c.l.b16 %v905
      %v954 = vunpack.c.l.b16 %v906
      %v955 = vunpack.c.l.b16 %v907
      %v956 = vunpack.c.l.b16 %v908
      %v957 = vunpack.c.l.b16 %v909
      %v958 = vunpack.c.l.b16 %v910
      %v959 = vunpack.c.l.b16 %v911
      %v960 = vunpack.c.l.b16 %v912
      %v961 = vunpack.c.l.b16 %v913
      %v962 = vunpack.c.l.b16 %v914
      %v963 = vunpack.c.l.b16 %v915
      %v964 = vunpack.c.l.b16 %v916
      %v965 = vpack.c.b16 %v942, %v941
      %v966 = vpack.c.b16 %v944, %v943
      %v967 = vpack.c.b16 %v946, %v945
      %v968 = vpack.c.b16 %v948, %v947
      %v969 = vpack.c.b16 %v950, %v949
      %v970 = vpack.c.b16 %v952, %v951
      %v971 = vpack.c.b16 %v954, %v953
      %v972 = vpack.c.b16 %v956, %v955
      %v973 = vpack.c.b16 %v958, %v957
      %v974 = vpack.c.b16 %v960, %v959
      %v975 = vpack.c.b16 %v962, %v961
      %v976 = vpack.c.b16 %v964, %v963
      %v990 = vsel %vm687, %v680, 0
      %v993 = vsel %vm687, %v683, 0
      %v996 = vsel %vm687, %v686, 0
      %v999 = vsel %vm687, %v860, 0
      %v1002 = vsel %vm687, %v793, 0
      %v1005 = vsel %vm687, %v796, 0
      %v1008 = vsel %vm687, %v799, 0
      %v1011 = vsel %vm687, %v888, 0
      %1013 = vmatprep.subr.bf16.mxu0 0
      %1014 = vmatpush1.bf16.msra.mxu0 %v965
      %1015 = vmatprep.subr.bf16.mxu0 0
      %1016 = vmatpush1.bf16.msra.mxu0 %v966
      %1017 = vmatprep.subr.bf16.mxu0 0
      %1018 = vmatpush1.bf16.msra.mxu0 %v967
      %1019 = vmatprep.subr.bf16.mxu0 0
      %1020 = vmatpush1.bf16.msra.mxu0 %v968
      %1021 = vmatprep.subr.bf16.mxu0 0
      %1022 = vmatpush1.bf16.msra.mxu0 %v969
      %1023 = vmatprep.subr.bf16.mxu0 0
      %1024 = vmatpush1.bf16.msra.mxu0 %v970
      %1025 = vmatprep.subr.bf16.mxu0 0
      %1026 = vmatpush1.bf16.msra.mxu0 %v971
      %1027 = vmatprep.subr.bf16.mxu0 0
      %1028 = vmatpush1.bf16.msra.mxu0 %v972
      %1029 = vmatprep.subr.bf16.mxu0 0
      %1030 = vmatpush1.bf16.msra.mxu0 %v973
      %1031 = vmatprep.subr.bf16.mxu0 0
      %1032 = vmatpush1.bf16.msra.mxu0 %v974
      %1033 = vmatprep.subr.bf16.mxu0 0
      %1034 = vmatpush1.bf16.msra.mxu0 %v975
      %1035 = vmatprep.subr.bf16.mxu0 0
      %1036 = vmatpush1.bf16.msra.mxu0 %v976
      %1037 = vmatprep.subr.bf16.mxu0 0
      %1038 = vmatpush1.bf16.msra.mxu0 0
      %1039 = vmatprep.subr.bf16.mxu0 0
      %1040 = vmatpush1.bf16.msra.mxu0 0
      %1041 = vmatprep.subr.bf16.mxu0 0
      %1042 = vmatpush1.bf16.msra.mxu0 0
      %1043 = vmatprep.subr.bf16.mxu0 0
      %1044 = vmatpush1.bf16.msra.mxu0 0
      %1045 = vmatprep.mubr.bf16.mxu0 %v990
      %1046 = vmatmul.mubr.bf16.gmra.mrb[0].mxu0 %v692
      %v1047 = vpop.f32.mrb[0].mxu0
      %v1048 = vadd.f32 0.0, %v1047
      %v1049 = vpop.f32.mrb[0].mxu0
      %v1050 = vpop.f32.mrb[0].mxu0
      %v1051 = vadd.f32 0.0, %v1050
      %v1052 = vpop.f32.mrb[0].mxu0
      %1053 = vmatprep.mubr.bf16.mxu0 %v993
      %1054 = vmatmul.mubr.bf16.gmra.mrb[0].mxu0 %v695
      %v1055 = vpop.f32.mrb[0].mxu0
      %v1056 = vadd.f32 0.0, %v1055
      %v1057 = vpop.f32.mrb[0].mxu0
      %v1058 = vpop.f32.mrb[0].mxu0
      %v1059 = vadd.f32 0.0, %v1058
      %v1060 = vpop.f32.mrb[0].mxu0
      %1061 = vmatprep.mubr.bf16.mxu0 %v996
      %1062 = vmatmul.mubr.bf16.gmra.mrb[0].mxu0 %v698
      %v1063 = vpop.f32.mrb[0].mxu0
      %v1064 = vadd.f32 0.0, %v1063
      %v1065 = vpop.f32.mrb[0].mxu0
      %v1066 = vpop.f32.mrb[0].mxu0
      %v1067 = vadd.f32 0.0, %v1066
      %v1068 = vpop.f32.mrb[0].mxu0
      %1069 = vmatprep.mubr.bf16.mxu0 %v999
      %1070 = vmatmul.mubr.bf16.gmra.mrb[0].mxu0 %v862
      %v1071 = vpop.f32.mrb[0].mxu0
      %v1072 = vadd.f32 0.0, %v1071
      %v1073 = vpop.f32.mrb[0].mxu0
      %v1074 = vpop.f32.mrb[0].mxu0
      %v1075 = vadd.f32 0.0, %v1074
      %v1076 = vpop.f32.mrb[0].mxu0
      %1077 = vmatprep.mubr.bf16.mxu0 %v1002
      %1078 = vmatmul.mubr.bf16.gmra.mrb[0].mxu0 %v804
      %v1079 = vpop.f32.mrb[0].mxu0
      %v1080 = vadd.f32 0.0, %v1079
      %v1081 = vpop.f32.mrb[0].mxu0
      %v1082 = vpop.f32.mrb[0].mxu0
      %v1083 = vadd.f32 0.0, %v1082
      %v1084 = vpop.f32.mrb[0].mxu0
      %1085 = vmatprep.mubr.bf16.mxu0 %v1005
      %1086 = vmatmul.mubr.bf16.gmra.mrb[0].mxu0 %v807
      %v1087 = vpop.f32.mrb[0].mxu0
      %v1088 = vadd.f32 0.0, %v1087
      %v1089 = vpop.f32.mrb[0].mxu0
      %v1090 = vpop.f32.mrb[0].mxu0
      %v1091 = vadd.f32 0.0, %v1090
      %v1092 = vpop.f32.mrb[0].mxu0
      %1093 = vmatprep.mubr.bf16.mxu0 %v1008
      %1094 = vmatmul.mubr.bf16.gmra.mrb[0].mxu0 %v810
      %v1095 = vpop.f32.mrb[0].mxu0
      %v1096 = vadd.f32 0.0, %v1095
      %v1097 = vpop.f32.mrb[0].mxu0
      %v1098 = vpop.f32.mrb[0].mxu0
      %v1099 = vadd.f32 0.0, %v1098
      %v1100 = vpop.f32.mrb[0].mxu0
      %1101 = vmatprep.mubr.bf16.mxu0 %v1011
      %1102 = vmatmul.mubr.bf16.gmra.mrb[0].mxu0 %v890
      %v1103 = vpop.f32.mrb[0].mxu0
      %v1104 = vadd.f32 0.0, %v1103
      %v1105 = vpop.f32.mrb[0].mxu0
      %v1106 = vpop.f32.mrb[0].mxu0
      %v1107 = vadd.f32 0.0, %v1106
      %v1108 = vpop.f32.mrb[0].mxu0
      %1109 = vdwg.mxu0
      %v1134 = vunpack.c.l.b16 %v812
      %v1135 = vunpack.c.l.b16 %v813
      %v1136 = vunpack.c.l.b16 %v814
      %v1137 = vunpack.c.l.b16 %v815
      %v1138 = vunpack.c.l.b16 %v816
      %v1139 = vunpack.c.l.b16 %v817
      %v1140 = vunpack.c.l.b16 %v818
      %v1141 = vunpack.c.l.b16 %v819
      %v1142 = vunpack.c.l.b16 %v820
      %v1143 = vunpack.c.l.b16 %v821
      %v1144 = vunpack.c.l.b16 %v822
      %v1145 = vunpack.c.l.b16 %v823
      %v1146 = vunpack.c.l.b16 %v824
      %v1147 = vunpack.c.l.b16 %v825
      %v1148 = vunpack.c.l.b16 %v826
      %v1149 = vunpack.c.l.b16 %v827
      %v1150 = vunpack.c.l.b16 %v828
      %v1151 = vunpack.c.l.b16 %v829
      %v1152 = vunpack.c.l.b16 %v830
      %v1153 = vunpack.c.l.b16 %v831
      %v1154 = vunpack.c.l.b16 %v832
      %v1155 = vunpack.c.l.b16 %v833
      %v1156 = vunpack.c.l.b16 %v834
      %v1157 = vunpack.c.l.b16 %v835
      %v1158 = vpack.c.b16 %v1135, %v1134
      %v1159 = vpack.c.b16 %v1137, %v1136
      %v1160 = vpack.c.b16 %v1139, %v1138
      %v1161 = vpack.c.b16 %v1141, %v1140
      %v1162 = vpack.c.b16 %v1143, %v1142
      %v1163 = vpack.c.b16 %v1145, %v1144
      %v1164 = vpack.c.b16 %v1147, %v1146
      %v1165 = vpack.c.b16 %v1149, %v1148
      %v1166 = vpack.c.b16 %v1151, %v1150
      %v1167 = vpack.c.b16 %v1153, %v1152
      %v1168 = vpack.c.b16 %v1155, %v1154
      %v1169 = vpack.c.b16 %v1157, %v1156
      %v1183 = vsel %vm687, %v677, 0
      %v1186 = vsel %vm687, %v790, 0
      %1188 = vmatprep.subr.bf16.mxu0 0
      %1189 = vmatpush1.bf16.msra.mxu0 %v1158
      %1190 = vmatprep.subr.bf16.mxu0 0
      %1191 = vmatpush1.bf16.msra.mxu0 %v1159
      %1192 = vmatprep.subr.bf16.mxu0 0
      %1193 = vmatpush1.bf16.msra.mxu0 %v1160
      %1194 = vmatprep.subr.bf16.mxu0 0
      %1195 = vmatpush1.bf16.msra.mxu0 %v1161
      %1196 = vmatprep.subr.bf16.mxu0 0
      %1197 = vmatpush1.bf16.msra.mxu0 %v1162
      %1198 = vmatprep.subr.bf16.mxu0 0
      %1199 = vmatpush1.bf16.msra.mxu0 %v1163
      %1200 = vmatprep.subr.bf16.mxu0 0
      %1201 = vmatpush1.bf16.msra.mxu0 %v1164
      %1202 = vmatprep.subr.bf16.mxu0 0
      %1203 = vmatpush1.bf16.msra.mxu0 %v1165
      %1204 = vmatprep.subr.bf16.mxu0 0
      %1205 = vmatpush1.bf16.msra.mxu0 %v1166
      %1206 = vmatprep.subr.bf16.mxu0 0
      %1207 = vmatpush1.bf16.msra.mxu0 %v1167
      %1208 = vmatprep.subr.bf16.mxu0 0
      %1209 = vmatpush1.bf16.msra.mxu0 %v1168
      %1210 = vmatprep.subr.bf16.mxu0 0
      %1211 = vmatpush1.bf16.msra.mxu0 %v1169
      %1212 = vmatprep.subr.bf16.mxu0 0
      %1213 = vmatpush1.bf16.msra.mxu0 0
      %1214 = vmatprep.subr.bf16.mxu0 0
      %1215 = vmatpush1.bf16.msra.mxu0 0
      %1216 = vmatprep.subr.bf16.mxu0 0
      %1217 = vmatpush1.bf16.msra.mxu0 0
      %1218 = vmatprep.subr.bf16.mxu0 0
      %1219 = vmatpush1.bf16.msra.mxu0 0
      %1220 = vmatprep.mubr.bf16.mxu0 %v1183
      %1221 = vmatmul.mubr.bf16.gmra.mrb[0].mxu0 %v689
      %v1222 = vpop.f32.mrb[0].mxu0
      %v1223 = vadd.f32 %v1048, %v1222
      %v1224 = vpop.f32.mrb[0].mxu0
      %v1225 = vpop.f32.mrb[0].mxu0
      %v1226 = vadd.f32 %v1051, %v1225
      %v1227 = vpop.f32.mrb[0].mxu0
      %1228 = vmatprep.mubr.bf16.mxu0 %v990
      %1229 = vmatmul.mubr.bf16.gmra.mrb[0].mxu0 %v692
      %v1230 = vpop.f32.mrb[0].mxu0
      %v1231 = vadd.f32 %v1056, %v1230
      %v1232 = vpop.f32.mrb[0].mxu0
      %v1233 = vpop.f32.mrb[0].mxu0
      %v1234 = vadd.f32 %v1059, %v1233
      %v1235 = vpop.f32.mrb[0].mxu0
      %1236 = vmatprep.mubr.bf16.mxu0 %v993
      %1237 = vmatmul.mubr.bf16.gmra.mrb[0].mxu0 %v695
      %v1238 = vpop.f32.mrb[0].mxu0
      %v1239 = vadd.f32 %v1064, %v1238
      %v1240 = vpop.f32.mrb[0].mxu0
      %v1241 = vpop.f32.mrb[0].mxu0
      %v1242 = vadd.f32 %v1067, %v1241
      %v1243 = vpop.f32.mrb[0].mxu0
      %1244 = vmatprep.mubr.bf16.mxu0 %v996
      %1245 = vmatmul.mubr.bf16.gmra.mrb[0].mxu0 %v698
      %v1246 = vpop.f32.mrb[0].mxu0
      %v1247 = vadd.f32 %v1072, %v1246
      %v1248 = vpop.f32.mrb[0].mxu0
      %v1249 = vpop.f32.mrb[0].mxu0
      %v1250 = vadd.f32 %v1075, %v1249
      %v1251 = vpop.f32.mrb[0].mxu0
      %1252 = vmatprep.mubr.bf16.mxu0 %v1186
      %1253 = vmatmul.mubr.bf16.gmra.mrb[0].mxu0 %v801
      %v1254 = vpop.f32.mrb[0].mxu0
      %v1255 = vadd.f32 %v1080, %v1254
      %v1256 = vpop.f32.mrb[0].mxu0
      %v1257 = vpop.f32.mrb[0].mxu0
      %v1258 = vadd.f32 %v1083, %v1257
      %v1259 = vpop.f32.mrb[0].mxu0
      %1260 = vmatprep.mubr.bf16.mxu0 %v1002
      %1261 = vmatmul.mubr.bf16.gmra.mrb[0].mxu0 %v804
      %v1262 = vpop.f32.mrb[0].mxu0
      %v1263 = vadd.f32 %v1088, %v1262
      %v1264 = vpop.f32.mrb[0].mxu0
      %v1265 = vpop.f32.mrb[0].mxu0
      %v1266 = vadd.f32 %v1091, %v1265
      %v1267 = vpop.f32.mrb[0].mxu0
      %1268 = vmatprep.mubr.bf16.mxu0 %v1005
      %1269 = vmatmul.mubr.bf16.gmra.mrb[0].mxu0 %v807
      %v1270 = vpop.f32.mrb[0].mxu0
      %v1271 = vadd.f32 %v1096, %v1270
      %v1272 = vpop.f32.mrb[0].mxu0
      %v1273 = vpop.f32.mrb[0].mxu0
      %v1274 = vadd.f32 %v1099, %v1273
      %v1275 = vpop.f32.mrb[0].mxu0
      %1276 = vmatprep.mubr.bf16.mxu0 %v1008
      %1277 = vmatmul.mubr.bf16.gmra.mrb[0].mxu0 %v810
      %v1278 = vpop.f32.mrb[0].mxu0
      %v1279 = vadd.f32 %v1104, %v1278
      %v1280 = vpop.f32.mrb[0].mxu0
      %v1281 = vpop.f32.mrb[0].mxu0
      %v1282 = vadd.f32 %v1107, %v1281
      %v1283 = vpop.f32.mrb[0].mxu0
      %1284 = vdwg.mxu0
      %v1287 = vunpack.c.l.b16 %v564
      %v1288 = vunpack.c.l.b16 %v565
      %v1289 = vpack.c.b16 %v1288, %v1287
      %v1291 = vunpack.c.l.b16 %v566
      %v1292 = vpack.c.b16 %v1291, %v1291
      %v1294 = vshrl.u32 %v1289, 16
      %v1296 = vshll.u32 %v1289, 16
      %v1298 = vrot.slane %v1296, 1
      %v1299 = vor.u32 %v1294, %v1298
      %v1301 = vshll.u32 %v1292, 16
      %v1303 = vrot.slane %v1301, 1
      %v1304 = vsel %vm617, %v1299, %v1303
      %1305 = vrot.lane.b32.xlu0 %v1304, 64
      %v1306 = vpop.permute.xlu0 %1305
      %v1307 = vrot.slane %v1289, 1
      %v1308 = vrot.slane %v1292, 1
      %v1309 = vsel %vm674, %v1307, %v1308
      %v1311 = vsel %vm687, %v1289, %v1306
      %v1315 = vunpack.c.l.b16 %v582
      %v1316 = vunpack.c.l.b16 %v583
      %v1317 = vpack.c.b16 %v1316, %v1315
      %v1319 = vunpack.c.l.b16 %v584
      %v1320 = vpack.c.b16 %v1319, %v1319
      %v1322 = vshrl.u32 %v1317, 16
      %v1324 = vshll.u32 %v1317, 16
      %v1326 = vrot.slane %v1324, 1
      %v1327 = vor.u32 %v1322, %v1326
      %v1329 = vshll.u32 %v1320, 16
      %v1331 = vrot.slane %v1329, 1
      %v1332 = vsel %vm617, %v1327, %v1331
      %1333 = vrot.lane.b32.xlu0 %v1332, 64
      %v1334 = vpop.permute.xlu0 %1333
      %v1335 = vrot.slane %v1317, 1
      %v1336 = vrot.slane %v1320, 1
      %v1337 = vsel %vm674, %v1335, %v1336
      %v1339 = vsel %vm687, %v1317, %v1334
      %s1341 = scalar_lea.vmem %s4, 192
      %v1342 = vld [vmem:[%s1341] sm:$0xf]
      %v1343 = vld [vmem:[%s1341 + $0x4] sm:$0xf]
      %v1344 = vld [vmem:[%s1341 + $0x8] sm:$0xf]
      %v1345 = vld [vmem:[%s1341 + $0xc] sm:$0xf]
      %v1346 = vld [vmem:[%s1341 + $0x10] sm:$0xf]
      %v1347 = vld [vmem:[%s1341 + $0x14] sm:$0xf]
      %v1348 = vld [vmem:[%s1341 + $0x18] sm:$0xf]
      %v1349 = vld [vmem:[%s1341 + $0x1c] sm:$0xf]
      %v1350 = vld [vmem:[%s1341 + $0x20] sm:$0xf]
      %v1351 = vld [vmem:[%s1341 + $0x24] sm:$0xf]
      %v1352 = vld [vmem:[%s1341 + $0x28] sm:$0xf]
      %v1353 = vld [vmem:[%s1341 + $0x2c] sm:$0xf]
      %v1354 = vld [vmem:[%s1341 + $0x30] sm:$0xf]
      %v1355 = vld [vmem:[%s1341 + $0x34] sm:$0xf]
      %v1356 = vld [vmem:[%s1341 + $0x38] sm:$0xf]
      %v1357 = vld [vmem:[%s1341 + $0x3c] sm:$0xf]
      %v1358 = vld [vmem:[%s1341 + $0x40] sm:$0xf]
      %v1359 = vld [vmem:[%s1341 + $0x44] sm:$0xf]
      %v1360 = vld [vmem:[%s1341 + $0x48] sm:$0xf]
      %v1361 = vld [vmem:[%s1341 + $0x4c] sm:$0xf]
      %v1362 = vld [vmem:[%s1341 + $0x50] sm:$0xf]
      %v1363 = vld [vmem:[%s1341 + $0x54] sm:$0xf]
      %v1364 = vld [vmem:[%s1341 + $0x58] sm:$0xf]
      %v1365 = vld [vmem:[%s1341 + $0x5c] sm:$0xf]
      %v1390 = vunpack.c.l.b16 %v1342
      %v1391 = vunpack.c.l.b16 %v1343
      %v1392 = vunpack.c.l.b16 %v1344
      %v1393 = vunpack.c.l.b16 %v1345
      %v1394 = vunpack.c.l.b16 %v1346
      %v1395 = vunpack.c.l.b16 %v1347
      %v1396 = vunpack.c.l.b16 %v1348
      %v1397 = vunpack.c.l.b16 %v1349
      %v1398 = vunpack.c.l.b16 %v1350
      %v1399 = vunpack.c.l.b16 %v1351
      %v1400 = vunpack.c.l.b16 %v1352
      %v1401 = vunpack.c.l.b16 %v1353
      %v1402 = vunpack.c.l.b16 %v1354
      %v1403 = vunpack.c.l.b16 %v1355
      %v1404 = vunpack.c.l.b16 %v1356
      %v1405 = vunpack.c.l.b16 %v1357
      %v1406 = vunpack.c.l.b16 %v1358
      %v1407 = vunpack.c.l.b16 %v1359
      %v1408 = vunpack.c.l.b16 %v1360
      %v1409 = vunpack.c.l.b16 %v1361
      %v1410 = vunpack.c.l.b16 %v1362
      %v1411 = vunpack.c.l.b16 %v1363
      %v1412 = vunpack.c.l.b16 %v1364
      %v1413 = vunpack.c.l.b16 %v1365
      %v1414 = vpack.c.b16 %v1391, %v1390
      %v1415 = vpack.c.b16 %v1393, %v1392
      %v1416 = vpack.c.b16 %v1395, %v1394
      %v1417 = vpack.c.b16 %v1397, %v1396
      %v1418 = vpack.c.b16 %v1399, %v1398
      %v1419 = vpack.c.b16 %v1401, %v1400
      %v1420 = vpack.c.b16 %v1403, %v1402
      %v1421 = vpack.c.b16 %v1405, %v1404
      %v1422 = vpack.c.b16 %v1407, %v1406
      %v1423 = vpack.c.b16 %v1409, %v1408
      %v1424 = vpack.c.b16 %v1411, %v1410
      %v1425 = vpack.c.b16 %v1413, %v1412
      %v1439 = vsel %vm687, %v1309, 0
      %v1442 = vsel %vm687, %v1337, 0
      %1444 = vmatprep.subr.bf16.mxu0 0
      %1445 = vmatpush1.bf16.msra.mxu0 %v1414
      %1446 = vmatprep.subr.bf16.mxu0 0
      %1447 = vmatpush1.bf16.msra.mxu0 %v1415
      %1448 = vmatprep.subr.bf16.mxu0 0
      %1449 = vmatpush1.bf16.msra.mxu0 %v1416
      %1450 = vmatprep.subr.bf16.mxu0 0
      %1451 = vmatpush1.bf16.msra.mxu0 %v1417
      %1452 = vmatprep.subr.bf16.mxu0 0
      %1453 = vmatpush1.bf16.msra.mxu0 %v1418
      %1454 = vmatprep.subr.bf16.mxu0 0
      %1455 = vmatpush1.bf16.msra.mxu0 %v1419
      %1456 = vmatprep.subr.bf16.mxu0 0
      %1457 = vmatpush1.bf16.msra.mxu0 %v1420
      %1458 = vmatprep.subr.bf16.mxu0 0
      %1459 = vmatpush1.bf16.msra.mxu0 %v1421
      %1460 = vmatprep.subr.bf16.mxu0 0
      %1461 = vmatpush1.bf16.msra.mxu0 %v1422
      %1462 = vmatprep.subr.bf16.mxu0 0
      %1463 = vmatpush1.bf16.msra.mxu0 %v1423
      %1464 = vmatprep.subr.bf16.mxu0 0
      %1465 = vmatpush1.bf16.msra.mxu0 %v1424
      %1466 = vmatprep.subr.bf16.mxu0 0
      %1467 = vmatpush1.bf16.msra.mxu0 %v1425
      %1468 = vmatprep.subr.bf16.mxu0 0
      %1469 = vmatpush1.bf16.msra.mxu0 0
      %1470 = vmatprep.subr.bf16.mxu0 0
      %1471 = vmatpush1.bf16.msra.mxu0 0
      %1472 = vmatprep.subr.bf16.mxu0 0
      %1473 = vmatpush1.bf16.msra.mxu0 0
      %1474 = vmatprep.subr.bf16.mxu0 0
      %1475 = vmatpush1.bf16.msra.mxu0 0
      %1476 = vmatprep.mubr.bf16.mxu0 %v993
      %1477 = vmatmul.mubr.bf16.gmra.mrb[0].mxu0 %v695
      %v1478 = vpop.f32.mrb[0].mxu0
      %v1479 = vadd.f32 0.0, %v1478
      %v1480 = vpop.f32.mrb[0].mxu0
      %v1481 = vpop.f32.mrb[0].mxu0
      %v1482 = vadd.f32 0.0, %v1481
      %v1483 = vpop.f32.mrb[0].mxu0
      %1484 = vmatprep.mubr.bf16.mxu0 %v996
      %1485 = vmatmul.mubr.bf16.gmra.mrb[0].mxu0 %v698
      %v1486 = vpop.f32.mrb[0].mxu0
      %v1487 = vadd.f32 0.0, %v1486
      %v1488 = vpop.f32.mrb[0].mxu0
      %v1489 = vpop.f32.mrb[0].mxu0
      %v1490 = vadd.f32 0.0, %v1489
      %v1491 = vpop.f32.mrb[0].mxu0
      %1492 = vmatprep.mubr.bf16.mxu0 %v999
      %1493 = vmatmul.mubr.bf16.gmra.mrb[0].mxu0 %v862
      %v1494 = vpop.f32.mrb[0].mxu0
      %v1495 = vadd.f32 0.0, %v1494
      %v1496 = vpop.f32.mrb[0].mxu0
      %v1497 = vpop.f32.mrb[0].mxu0
      %v1498 = vadd.f32 0.0, %v1497
      %v1499 = vpop.f32.mrb[0].mxu0
      %1500 = vmatprep.mubr.bf16.mxu0 %v1439
      %1501 = vmatmul.mubr.bf16.gmra.mrb[0].mxu0 %v1311
      %v1502 = vpop.f32.mrb[0].mxu0
      %v1503 = vadd.f32 0.0, %v1502
      %v1504 = vpop.f32.mrb[0].mxu0
      %v1505 = vpop.f32.mrb[0].mxu0
      %v1506 = vadd.f32 0.0, %v1505
      %v1507 = vpop.f32.mrb[0].mxu0
      %1508 = vmatprep.mubr.bf16.mxu0 %v1005
      %1509 = vmatmul.mubr.bf16.gmra.mrb[0].mxu0 %v807
      %v1510 = vpop.f32.mrb[0].mxu0
      %v1511 = vadd.f32 0.0, %v1510
      %v1512 = vpop.f32.mrb[0].mxu0
      %v1513 = vpop.f32.mrb[0].mxu0
      %v1514 = vadd.f32 0.0, %v1513
      %v1515 = vpop.f32.mrb[0].mxu0
      %1516 = vmatprep.mubr.bf16.mxu0 %v1008
      %1517 = vmatmul.mubr.bf16.gmra.mrb[0].mxu0 %v810
      %v1518 = vpop.f32.mrb[0].mxu0
      %v1519 = vadd.f32 0.0, %v1518
      %v1520 = vpop.f32.mrb[0].mxu0
      %v1521 = vpop.f32.mrb[0].mxu0
      %v1522 = vadd.f32 0.0, %v1521
      %v1523 = vpop.f32.mrb[0].mxu0
      %1524 = vmatprep.mubr.bf16.mxu0 %v1011
      %1525 = vmatmul.mubr.bf16.gmra.mrb[0].mxu0 %v890
      %v1526 = vpop.f32.mrb[0].mxu0
      %v1527 = vadd.f32 0.0, %v1526
      %v1528 = vpop.f32.mrb[0].mxu0
      %v1529 = vpop.f32.mrb[0].mxu0
      %v1530 = vadd.f32 0.0, %v1529
      %v1531 = vpop.f32.mrb[0].mxu0
      %1532 = vmatprep.mubr.bf16.mxu0 %v1442
      %1533 = vmatmul.mubr.bf16.gmra.mrb[0].mxu0 %v1339
      %v1534 = vpop.f32.mrb[0].mxu0
      %v1535 = vadd.f32 0.0, %v1534
      %v1536 = vpop.f32.mrb[0].mxu0
      %v1537 = vpop.f32.mrb[0].mxu0
      %v1538 = vadd.f32 0.0, %v1537
      %v1539 = vpop.f32.mrb[0].mxu0
      %1540 = vdwg.mxu0
      %v1541 = vadd.f32 %v1223, %v1479
      %v1542 = vadd.f32 %v1226, %v1482
      %v1543 = vadd.f32 %v1231, %v1487
      %v1544 = vadd.f32 %v1234, %v1490
      %v1545 = vadd.f32 %v1239, %v1495
      %v1546 = vadd.f32 %v1242, %v1498
      %v1547 = vadd.f32 %v1247, %v1503
      %v1548 = vadd.f32 %v1250, %v1506
      %v1549 = vadd.f32 %v1255, %v1511
      %v1550 = vadd.f32 %v1258, %v1514
      %v1551 = vadd.f32 %v1263, %v1519
      %v1552 = vadd.f32 %v1266, %v1522
      %v1553 = vadd.f32 %v1271, %v1527
      %v1554 = vadd.f32 %v1274, %v1530
      %v1555 = vadd.f32 %v1279, %v1535
      %v1556 = vadd.f32 %v1282, %v1538
      %v1557 = vld [vmem:[%s5] sm:$0x1]
      %v1558 = vld [vmem:[%s6] sm:$0x1]
      %v1560 = vlaneseq
      %v1561 = vshrl.u32 %v1560, 7
      %v1562 = vsub.s32 0, %v1561
      %v1563 = vrot.slane %v1557, %v1562
      %v1565 = vmul.f32 %v1541, %v1563
      %v1566 = vmul.f32 %v1542, %v1563
      %v1567 = vmul.f32 %v1543, %v1563
      %v1568 = vmul.f32 %v1544, %v1563
      %v1569 = vmul.f32 %v1545, %v1563
      %v1570 = vmul.f32 %v1546, %v1563
      %v1571 = vmul.f32 %v1547, %v1563
      %v1572 = vmul.f32 %v1548, %v1563
      %v1574 = vlaneseq
      %v1575 = vshrl.u32 %v1574, 7
      %v1576 = vsub.s32 0, %v1575
      %v1577 = vrot.slane %v1558, %v1576
      %v1579 = vadd.f32 %v1565, %v1577
      %v1580 = vadd.f32 %v1566, %v1577
      %v1581 = vadd.f32 %v1567, %v1577
      %v1582 = vadd.f32 %v1568, %v1577
      %v1583 = vadd.f32 %v1569, %v1577
      %v1584 = vadd.f32 %v1570, %v1577
      %v1585 = vadd.f32 %v1571, %v1577
      %v1586 = vadd.f32 %v1572, %v1577
      %v1587 = vmul.f32 %v1549, %v1563
      %v1588 = vmul.f32 %v1550, %v1563
      %v1589 = vmul.f32 %v1551, %v1563
      %v1590 = vmul.f32 %v1552, %v1563
      %v1591 = vmul.f32 %v1553, %v1563
      %v1592 = vmul.f32 %v1554, %v1563
      %v1593 = vmul.f32 %v1555, %v1563
      %v1594 = vmul.f32 %v1556, %v1563
      %v1595 = vadd.f32 %v1587, %v1577
      %v1596 = vadd.f32 %v1588, %v1577
      %v1597 = vadd.f32 %v1589, %v1577
      %v1598 = vadd.f32 %v1590, %v1577
      %v1599 = vadd.f32 %v1591, %v1577
      %v1600 = vadd.f32 %v1592, %v1577
      %v1601 = vadd.f32 %v1593, %v1577
      %v1602 = vadd.f32 %v1594, %v1577
      %v1603 = vsub.f32 %v1579, %v1595
      %v1604 = vsub.f32 %v1580, %v1596
      %v1605 = vsub.f32 %v1581, %v1597
      %v1606 = vsub.f32 %v1582, %v1598
      %v1607 = vsub.f32 %v1583, %v1599
      %v1608 = vsub.f32 %v1584, %v1600
      %v1609 = vsub.f32 %v1585, %v1601
      %v1610 = vsub.f32 %v1586, %v1602
      %v1611 = vand.u32 2147483647, %v1603
      %v1612 = vand.u32 2147483647, %v1604
      %v1613 = vand.u32 2147483647, %v1605
      %v1614 = vand.u32 2147483647, %v1606
      %v1615 = vand.u32 2147483647, %v1607
      %v1616 = vand.u32 2147483647, %v1608
      %v1617 = vand.u32 2147483647, %v1609
      %v1618 = vand.u32 2147483647, %v1610
      %v1619 = vsel %vm687, %v1611, 0.0
      %v1620 = vsel %vm687, %v1612, 0.0
      %v1621 = vadd.f32 %v1619, %v1620
      %v1622 = vsel %vm687, %v1613, 0.0
      %v1623 = vadd.f32 %v1621, %v1622
      %v1624 = vsel %vm687, %v1614, 0.0
      %v1625 = vadd.f32 %v1623, %v1624
      %v1626 = vsel %vm687, %v1615, 0.0
      %v1627 = vadd.f32 %v1625, %v1626
      %v1628 = vsel %vm687, %v1616, 0.0
      %v1629 = vadd.f32 %v1627, %v1628
      %v1630 = vsel %vm687, %v1617, 0.0
      %v1631 = vadd.f32 %v1629, %v1630
      %v1632 = vsel %vm687, %v1618, 0.0
      %v1633 = vadd.f32 %v1631, %v1632
      %v1634 = vrot.slane %v1633, 4
      %v1635 = vadd.f32 %v1633, %v1634
      %v1636 = vrot.slane %v1635, 2
      %v1637 = vadd.f32 %v1635, %v1636
      %v1638 = vrot.slane %v1637, 1
      %v1639 = vadd.f32 %v1637, %v1638
      %v1640 = vsel %vm687, %v1639, 0.0
      %1641 = vadd.xlane.f32.xlu0 %v1640
      %v1642 = vpop.xlane.xlu0 %1641
      %vm1643 = vcmask 0
      %1644 = vst.msk [vmem:[%s547] sm:$0x1] %vm1643, %v1642
      %v1645 = vmax.f32 %v1579, 0.0
      %v1646 = vmax.f32 %v1580, 0.0
      %v1647 = vmax.f32 %v1581, 0.0
      %v1648 = vmax.f32 %v1582, 0.0
      %v1649 = vmax.f32 %v1583, 0.0
      %v1650 = vmax.f32 %v1584, 0.0
      %v1651 = vmax.f32 %v1585, 0.0
      %v1652 = vmax.f32 %v1586, 0.0
      %v1653 = vsel %vm687, %v1645, -inf
      %v1654 = vsel %vm687, %v1647, -inf
      %v1655 = vmax.f32 %v1653, %v1654
      %v1656 = vsel %vm687, %v1646, -inf
      %v1657 = vsel %vm687, %v1648, -inf
      %v1658 = vmax.f32 %v1656, %v1657
      %v1659 = vsel %vm687, %v1649, -inf
      %v1660 = vsel %vm687, %v1651, -inf
      %v1661 = vmax.f32 %v1659, %v1660
      %v1662 = vsel %vm687, %v1650, -inf
      %v1663 = vsel %vm687, %v1652, -inf
      %v1664 = vmax.f32 %v1662, %v1663
      %1665 = vst.msk [vmem:[#allocation2] sm:$0xff] %vm687, %v1655
      %1666 = vst.msk [vmem:[#allocation2 + $0x8] sm:$0xff] %vm687, %v1658
      %1667 = vst.msk [vmem:[#allocation2 + $0x10] sm:$0xff] %vm687, %v1661
      %1668 = vst.msk [vmem:[#allocation2 + $0x18] sm:$0xff] %vm687, %v1664
      %v1669 = vld [vmem:[#allocation2] ss:$2 sm:$0xff]
      %s1670 = scalar_lea.vmem [#allocation2], 16
      %v1671 = vld [vmem:[%s1670] ss:$2 sm:$0xff]
      %s1672 = scalar_lea.vmem [#allocation2], 1
      %v1673 = vld [vmem:[%s1672] ss:$2 sm:$0xff]
      %s1674 = scalar_lea.vmem [#allocation2], 17
      %v1675 = vld [vmem:[%s1674] ss:$2 sm:$0xff]
      %v1676 = vmax.f32 %v1669, %v1673
      %v1677 = vmax.f32 %v1671, %v1675
      %v1678 = vpack.c.bf16 %v1676, %v1676
      %v1679 = vpack.c.bf16 %v1677, %v1677
      %vm1680 = vcmask 519168
      %1681 = vst.msk [vmem:[%s529] sm:$0xf] %vm1680, %v1678
      %1682 = vst.msk [vmem:[%s529 + $0x4] sm:$0xf] %vm1680, %v1679
      %v1683 = vmax.f32 %v1595, 0.0
      %v1684 = vmax.f32 %v1596, 0.0
      %v1685 = vmax.f32 %v1597, 0.0
      %v1686 = vmax.f32 %v1598, 0.0
      %v1687 = vmax.f32 %v1599, 0.0
      %v1688 = vmax.f32 %v1600, 0.0
      %v1689 = vmax.f32 %v1601, 0.0
      %v1690 = vmax.f32 %v1602, 0.0
      %v1691 = vsel %vm687, %v1683, -inf
      %v1692 = vsel %vm687, %v1685, -inf
      %v1693 = vmax.f32 %v1691, %v1692
      %v1694 = vsel %vm687, %v1684, -inf
      %v1695 = vsel %vm687, %v1686, -inf
      %v1696 = vmax.f32 %v1694, %v1695
      %v1697 = vsel %vm687, %v1687, -inf
      %v1698 = vsel %vm687, %v1689, -inf
      %v1699 = vmax.f32 %v1697, %v1698
      %v1700 = vsel %vm687, %v1688, -inf
      %v1701 = vsel %vm687, %v1690, -inf
      %v1702 = vmax.f32 %v1700, %v1701
      %1703 = vst.msk [vmem:[#allocation2] sm:$0xff] %vm687, %v1693
      %1704 = vst.msk [vmem:[#allocation2 + $0x8] sm:$0xff] %vm687, %v1696
      %1705 = vst.msk [vmem:[#allocation2 + $0x10] sm:$0xff] %vm687, %v1699
      %1706 = vst.msk [vmem:[#allocation2 + $0x18] sm:$0xff] %vm687, %v1702
      %v1707 = vld [vmem:[#allocation2] ss:$2 sm:$0xff]
      %v1708 = vld [vmem:[%s1670] ss:$2 sm:$0xff]
      %v1709 = vld [vmem:[%s1672] ss:$2 sm:$0xff]
      %v1710 = vld [vmem:[%s1674] ss:$2 sm:$0xff]
      %v1711 = vmax.f32 %v1707, %v1709
      %v1712 = vmax.f32 %v1708, %v1710
      %v1713 = vpack.c.bf16 %v1711, %v1711
      %v1714 = vpack.c.bf16 %v1712, %v1712
      %1715 = vst.msk [vmem:[%s539] sm:$0xf] %vm1680, %v1713
      %1716 = vst.msk [vmem:[%s539 + $0x4] sm:$0xf] %vm1680, %v1714
      %s1717 = smul.u32 2, %s26
      %p1718 = scmp.lt.s32.totalorder %s25, 1
      %s1719 = scalar_select %p1718, %s25, 1
      %p1720 = scmp.lt.s32.totalorder %s1717, 7
      %s1721 = scalar_select %p1720, %s1717, 7
      %s1722 = smul.addr %s1719, 8
      %s1723 = sadd.s32 %s1721, %s1722
      %s1724 = smul.addr %s1723, 4
      %s1725 = scalar_lea.vmem %s7, %s1724
      %s1726 = smul.u32 2, %s26
      %p1727 = scmp.lt.s32.totalorder %s25, 1
      %s1728 = scalar_select %p1727, %s25, 1
      %p1729 = scmp.lt.s32.totalorder %s1726, 7
      %s1730 = scalar_select %p1729, %s1726, 7
      %s1731 = smul.addr %s1728, 8
      %s1732 = sadd.s32 %s1730, %s1731
      %s1733 = smul.addr %s1732, 4
      %s1734 = scalar_lea.vmem %s8, %s1733
      %p1735 = scmp.lt.s32.totalorder %s25, 1
      %s1736 = scalar_select %p1735, %s25, 1
      %p1737 = scmp.lt.s32.totalorder %s26, 3
      %s1738 = scalar_select %p1737, %s26, 3
      %s1739 = smul.addr %s1736, 4
      %s1740 = sadd.s32 %s1738, %s1739
      %s1741 = scalar_lea.vmem %s9, %s1740
      // Predicated region
      $region49: #{feature_loss.5} parent=47 // pred_check
        %p1742 = pneg %p232
      $region50: #{feature_loss.5} parent=47 // pred_check_branch
        %1744 = sbr.rel (%p1742) target = $region52
      $region51: #{feature_loss.5} parent=47 // pred_region
        %s1745 = smul.u32 2, %s26
      $region52: #{feature_loss.5} parent=47 // pred_fallthru
        _
      // Predicated region
      $region53: #{feature_loss.5} parent=47 // pred_check
        %p1746 = pneg %p260
      $region54: #{feature_loss.5} parent=47 // pred_check_branch
        %1748 = sbr.rel (%p1746) target = $region56
      $region55: #{feature_loss.5} parent=47 // pred_region
        %s1749 = smul.u32 2, %s26
      $region56: #{feature_loss.5} parent=47 // pred_fallthru
        _
      // Predicated region
      $region57: #{feature_loss.5} parent=47 // pred_check
        %p1750 = pneg %p288
      $region58: #{feature_loss.5} parent=47 // pred_check_branch
        %1752 = sbr.rel (%p1750) target = $region60
      $region59: #{feature_loss.5} parent=47 // pred_region
        _
      $region60: #{feature_loss.5} parent=47 // pred_fallthru
        _
    $region48: #{feature_loss.5} parent=5 // pred_fallthru
      _
    %p1753 = scmp.le.s32.totalorder 2, %s16
    // Predicated region
    $region61: #{feature_loss.5} parent=5 // pred_check
      %p1754 = pneg %p1753
    $region62: #{feature_loss.5} parent=5 // pred_check_branch
      %1756 = sbr.rel (%p1754) target = $region64
    $region63: #{feature_loss.5} parent=5 // pred_region
      %s1757 = ssub.s32 %s16, 2
      // Predicated region
      $region65: #{feature_loss.5} parent=63 // pred_check
        %p1758 = pneg %p238
      $region66: #{feature_loss.5} parent=63 // pred_check_branch
        %1760 = sbr.rel (%p1758) target = $region68
      $region67: #{feature_loss.5} parent=63 // pred_region
        %s1761 = smul.u32 2, %s28
        %p1762 = scmp.lt.s32.totalorder %s27, 1
        %s1763 = scalar_select %p1762, %s27, 1
        %p1764 = scmp.lt.s32.totalorder %s1761, 7
        %s1765 = scalar_select %p1764, %s1761, 7
        %s1766 = smul.addr %s1763, 8
        %s1767 = sadd.s32 %s1765, %s1766
        %s1768 = smul.addr %s1767, 4
        %s1769 = scalar_lea.vmem %s7, %s1768
      $region68: #{feature_loss.5} parent=63 // pred_fallthru
        _
      // Predicated region
      $region69: #{feature_loss.5} parent=63 // pred_check
        %p1770 = pneg %p266
      $region70: #{feature_loss.5} parent=63 // pred_check_branch
        %1772 = sbr.rel (%p1770) target = $region72
      $region71: #{feature_loss.5} parent=63 // pred_region
        %s1773 = smul.u32 2, %s28
        %p1774 = scmp.lt.s32.totalorder %s27, 1
        %s1775 = scalar_select %p1774, %s27, 1
        %p1776 = scmp.lt.s32.totalorder %s1773, 7
        %s1777 = scalar_select %p1776, %s1773, 7
        %s1778 = smul.addr %s1775, 8
        %s1779 = sadd.s32 %s1777, %s1778
        %s1780 = smul.addr %s1779, 4
        %s1781 = scalar_lea.vmem %s8, %s1780
      $region72: #{feature_loss.5} parent=63 // pred_fallthru
        _
      // Predicated region
      $region73: #{feature_loss.5} parent=63 // pred_check
        %p1782 = pneg %p294
      $region74: #{feature_loss.5} parent=63 // pred_check_branch
        %1784 = sbr.rel (%p1782) target = $region76
      $region75: #{feature_loss.5} parent=63 // pred_region
        %p1785 = scmp.lt.s32.totalorder %s27, 1
        %s1786 = scalar_select %p1785, %s27, 1
        %p1787 = scmp.lt.s32.totalorder %s28, 3
        %s1788 = scalar_select %p1787, %s28, 3
        %s1789 = smul.addr %s1786, 4
        %s1790 = sadd.s32 %s1788, %s1789
        %s1791 = scalar_lea.vmem %s9, %s1790
      $region76: #{feature_loss.5} parent=63 // pred_fallthru
        _
    $region64: #{feature_loss.5} parent=5 // pred_fallthru
      _
  $region6: #{feature_loss.5} parent=0 // loop_footer
    %s20 = sadd.s32 1, %s16
  $region7: #{feature_loss.5} parent=0 // loop_footer_branch
    %15 = sbr.rel target = $region3
  $region8: #{feature_loss.5} parent=0 // loop_exit
    _

// kernel: feature_loss.7
$region0: #{feature_loss.7}
  #allocation0 [shape = 'u32[]', space=smem, size = 0x4, offset = 0x4, fixed_abs, tag = 'smem constant byte address 0x4 - core index']
  #allocation1 [shape = 'u32[144,128]{1,0:T(1,128)}', space=vmem, size = 0x12000, scoped, tag = 'internal scratch']
  %s0 = inlined_call_operand.vmem [shape: bf16[2,12,10,128], index: 0, kind: input, shape index: {}, may-alias: {0,1}]
  %s1 = inlined_call_operand.vmem [shape: bf16[2,12,10,128], index: 1, kind: input, shape index: {}, may-alias: {0,1}]
  %s2 = inlined_call_operand.vmem [shape: bf16[2,12,10,128], index: 2, kind: input, shape index: {}, may-alias: {2,3}]
  %s3 = inlined_call_operand.vmem [shape: bf16[2,12,10,128], index: 3, kind: input, shape index: {}, may-alias: {2,3}]
  %s4 = inlined_call_operand.vmem [shape: bf16[3,384,128], index: 4, kind: input, shape index: {}]
  %s5 = inlined_call_operand.vmem [shape: f32[1,128], index: 5, kind: input, shape index: {}]
  %s6 = inlined_call_operand.vmem [shape: f32[1,128], index: 6, kind: input, shape index: {}]
  %s7 = inlined_call_operand.vmem [shape: f32[2,2,1,1], index: 7, kind: output, shape index: {}]
  %s8 = sld [smem:[#allocation0]]
  $region61: #{feature_loss.7} parent=0
    _
  %s10 = ssub.s32 1, %s8
  %s11 = scalar_select 0, %s10, %s8
  loop: start=0, step=1, limit=6
  $region2: #{feature_loss.7} parent=0 // loop_pre_header
    _
  $region3: #{feature_loss.7} parent=0 // loop_header
    %s13 = sphi 0, %s17
    %p14 = scmp.ge.s32.totalorder %s13, 6
    %s20 = sphi 0, %s32
    %s21 = sphi 0, %s28
    %s22 = sphi 0, %s20
    %s23 = sphi 0, %s21
    %s24 = sphi 0, %s22
    %s25 = sphi 0, %s23
    %s37 = sphi 0, %s39
    %s40 = sphi 0, %s37
    %s41 = sphi 0, %s40
    %s57 = sphi 0, %s41
    %s67 = sphi 0, %s69
    %s70 = sphi 0, %s67
    %s71 = sphi 0, %s70
    %s87 = sphi 0, %s71
    %s95 = sphi 0, %s97
    %s98 = sphi 0, %s95
    %s99 = sphi 0, %s98
    %s115 = sphi 0, %s99
    %s125 = sphi 0, %s127
    %s128 = sphi 0, %s125
    %s129 = sphi 0, %s128
    %s145 = sphi 0, %s129
    %s149 = sphi 0, %s149
    %s151 = sphi 0, %s149
    %s152 = sphi 0, %s151
    %s166 = sphi 0, %s152
    %s170 = sphi 0, %s170
    %s172 = sphi 0, %s170
    %s173 = sphi 0, %s172
    %s187 = sphi 0, %s173
    %s191 = sphi 0, %s191
    %s193 = sphi 0, %s191
    %s194 = sphi 0, %s193
    %s208 = sphi 0, %s194
    %s216 = sphi 0, %s218
    %s219 = sphi 0, %s216
    %s220 = sphi 0, %s219
    %s236 = sphi 0, %s220
  $region4: #{feature_loss.7} parent=0 // loop_header_branch
    %16 = sbr.rel (%p14) target = $region8
  $region5: #{feature_loss.7} parent=0 // loop_body
    %s18 = ssub.s32 %s13, 1
    %s19 = ssub.s32 %s13, 2
    %s26 = sadd.s32 1, %s21
    %p27 = scmp.ge.s32.totalorder %s26, 2
    %s28 = scalar_select %p27, 0, %s26
    %s29 = sadd.s32 1, %s20
    %s30 = scalar_select %p27, %s29, %s20
    %p31 = scmp.ge.s32.totalorder %s30, 2
    %s32 = scalar_select %p31, 0, %s30
    %s33 = ssub.s32 %s20, %s32
    %s34 = ssub.s32 %s21, %s28
    %s35 = sor.u32 %s33, %s34
    %p36 = scmp.eq.s32.totalorder %s35, 0
    %s38 = sadd.s32 %s37, 1
    %s39 = scalar_select %p36, %s37, %s38
    %p42 = pneg %p36
    %p43 = scmp.eq.s32.totalorder %s13, 3
    %p44 = por %p42, %p43
    %p45 = scmp.ne.s32.totalorder %s37, %s40
    %p46 = scmp.eq.s32.totalorder %s13, 0
    %p47 = por %p45, %p46
    %p48 = scmp.ne.s32.totalorder %s37, %s40
    %p49 = scmp.eq.s32.totalorder %s18, 3
    %p50 = por %p48, %p49
    %p51 = scmp.ne.s32.totalorder %s40, %s41
    %p52 = scmp.eq.s32.totalorder %s18, 0
    %p53 = por %p51, %p52
    %p54 = scmp.ne.s32.totalorder %s40, %s41
    %p55 = scmp.eq.s32.totalorder %s19, 3
    %p56 = por %p54, %p55
    %p58 = scmp.ne.s32.totalorder %s41, %s57
    %p59 = scmp.eq.s32.totalorder %s19, 0
    %p60 = por %p58, %p59
    %s61 = sadd.s32 %s21, 1
    %s62 = sadd.s32 %s28, 1
    %s63 = ssub.s32 %s20, %s32
    %s64 = ssub.s32 %s61, %s62
    %s65 = sor.u32 %s63, %s64
    %p66 = scmp.eq.s32.totalorder %s65, 0
    %s68 = sadd.s32 %s67, 1
    %s69 = scalar_select %p66, %s67, %s68
    %p72 = pneg %p66
    %p73 = scmp.eq.s32.totalorder %s13, 3
    %p74 = por %p72, %p73
    %p75 = scmp.ne.s32.totalorder %s67, %s70
    %p76 = scmp.eq.s32.totalorder %s13, 0
    %p77 = por %p75, %p76
    %p78 = scmp.ne.s32.totalorder %s67, %s70
    %p79 = scmp.eq.s32.totalorder %s18, 3
    %p80 = por %p78, %p79
    %p81 = scmp.ne.s32.totalorder %s70, %s71
    %p82 = scmp.eq.s32.totalorder %s18, 0
    %p83 = por %p81, %p82
    %p84 = scmp.ne.s32.totalorder %s70, %s71
    %p85 = scmp.eq.s32.totalorder %s19, 3
    %p86 = por %p84, %p85
    %p88 = scmp.ne.s32.totalorder %s71, %s87
    %p89 = scmp.eq.s32.totalorder %s19, 0
    %p90 = por %p88, %p89
    %s91 = ssub.s32 %s20, %s32
    %s92 = ssub.s32 %s21, %s28
    %s93 = sor.u32 %s91, %s92
    %p94 = scmp.eq.s32.totalorder %s93, 0
    %s96 = sadd.s32 %s95, 1
    %s97 = scalar_select %p94, %s95, %s96
    %p100 = pneg %p94
    %p101 = scmp.eq.s32.totalorder %s13, 3
    %p102 = por %p100, %p101
    %p103 = scmp.ne.s32.totalorder %s95, %s98
    %p104 = scmp.eq.s32.totalorder %s13, 0
    %p105 = por %p103, %p104
    %p106 = scmp.ne.s32.totalorder %s95, %s98
    %p107 = scmp.eq.s32.totalorder %s18, 3
    %p108 = por %p106, %p107
    %p109 = scmp.ne.s32.totalorder %s98, %s99
    %p110 = scmp.eq.s32.totalorder %s18, 0
    %p111 = por %p109, %p110
    %p112 = scmp.ne.s32.totalorder %s98, %s99
    %p113 = scmp.eq.s32.totalorder %s19, 3
    %p114 = por %p112, %p113
    %p116 = scmp.ne.s32.totalorder %s99, %s115
    %p117 = scmp.eq.s32.totalorder %s19, 0
    %p118 = por %p116, %p117
    %s119 = sadd.s32 %s21, 1
    %s120 = sadd.s32 %s28, 1
    %s121 = ssub.s32 %s20, %s32
    %s122 = ssub.s32 %s119, %s120
    %s123 = sor.u32 %s121, %s122
    %p124 = scmp.eq.s32.totalorder %s123, 0
    %s126 = sadd.s32 %s125, 1
    %s127 = scalar_select %p124, %s125, %s126
    %p130 = pneg %p124
    %p131 = scmp.eq.s32.totalorder %s13, 3
    %p132 = por %p130, %p131
    %p133 = scmp.ne.s32.totalorder %s125, %s128
    %p134 = scmp.eq.s32.totalorder %s13, 0
    %p135 = por %p133, %p134
    %p136 = scmp.ne.s32.totalorder %s125, %s128
    %p137 = scmp.eq.s32.totalorder %s18, 3
    %p138 = por %p136, %p137
    %p139 = scmp.ne.s32.totalorder %s128, %s129
    %p140 = scmp.eq.s32.totalorder %s18, 0
    %p141 = por %p139, %p140
    %p142 = scmp.ne.s32.totalorder %s128, %s129
    %p143 = scmp.eq.s32.totalorder %s19, 3
    %p144 = por %p142, %p143
    %p146 = scmp.ne.s32.totalorder %s129, %s145
    %p147 = scmp.eq.s32.totalorder %s19, 0
    %p148 = por %p146, %p147
    %s150 = sadd.s32 %s149, 1
    %p153 = scmp.eq.s32.totalorder %s13, 3
    %p154 = scmp.ne.s32.totalorder %s149, %s151
    %p155 = scmp.eq.s32.totalorder %s13, 0
    %p156 = por %p154, %p155
    %p157 = scmp.ne.s32.totalorder %s149, %s151
    %p158 = scmp.eq.s32.totalorder %s18, 3
    %p159 = por %p157, %p158
    %p160 = scmp.ne.s32.totalorder %s151, %s152
    %p161 = scmp.eq.s32.totalorder %s18, 0
    %p162 = por %p160, %p161
    %p163 = scmp.ne.s32.totalorder %s151, %s152
    %p164 = scmp.eq.s32.totalorder %s19, 3
    %p165 = por %p163, %p164
    %p167 = scmp.ne.s32.totalorder %s152, %s166
    %p168 = scmp.eq.s32.totalorder %s19, 0
    %p169 = por %p167, %p168
    %s171 = sadd.s32 %s170, 1
    %p174 = scmp.eq.s32.totalorder %s13, 3
    %p175 = scmp.ne.s32.totalorder %s170, %s172
    %p176 = scmp.eq.s32.totalorder %s13, 0
    %p177 = por %p175, %p176
    %p178 = scmp.ne.s32.totalorder %s170, %s172
    %p179 = scmp.eq.s32.totalorder %s18, 3
    %p180 = por %p178, %p179
    %p181 = scmp.ne.s32.totalorder %s172, %s173
    %p182 = scmp.eq.s32.totalorder %s18, 0
    %p183 = por %p181, %p182
    %p184 = scmp.ne.s32.totalorder %s172, %s173
    %p185 = scmp.eq.s32.totalorder %s19, 3
    %p186 = por %p184, %p185
    %p188 = scmp.ne.s32.totalorder %s173, %s187
    %p189 = scmp.eq.s32.totalorder %s19, 0
    %p190 = por %p188, %p189
    %s192 = sadd.s32 %s191, 1
    %p195 = scmp.eq.s32.totalorder %s13, 3
    %p196 = scmp.ne.s32.totalorder %s191, %s193
    %p197 = scmp.eq.s32.totalorder %s13, 0
    %p198 = por %p196, %p197
    %p199 = scmp.ne.s32.totalorder %s191, %s193
    %p200 = scmp.eq.s32.totalorder %s18, 3
    %p201 = por %p199, %p200
    %p202 = scmp.ne.s32.totalorder %s193, %s194
    %p203 = scmp.eq.s32.totalorder %s18, 0
    %p204 = por %p202, %p203
    %p205 = scmp.ne.s32.totalorder %s193, %s194
    %p206 = scmp.eq.s32.totalorder %s19, 3
    %p207 = por %p205, %p206
    %p209 = scmp.ne.s32.totalorder %s194, %s208
    %p210 = scmp.eq.s32.totalorder %s19, 0
    %p211 = por %p209, %p210
    %s212 = ssub.s32 %s20, %s32
    %s213 = ssub.s32 %s21, %s28
    %s214 = sor.u32 %s212, %s213
    %p215 = scmp.eq.s32.totalorder %s214, 0
    %s217 = sadd.s32 %s216, 1
    %s218 = scalar_select %p215, %s216, %s217
    %p221 = pneg %p215
    %p222 = scmp.eq.s32.totalorder %s13, 3
    %p223 = por %p221, %p222
    %p224 = scmp.ne.s32.totalorder %s216, %s219
    %p225 = scmp.eq.s32.totalorder %s13, 0
    %p226 = por %p224, %p225
    %p227 = scmp.ne.s32.totalorder %s216, %s219
    %p228 = scmp.eq.s32.totalorder %s18, 3
    %p229 = por %p227, %p228
    %p230 = scmp.ne.s32.totalorder %s219, %s220
    %p231 = scmp.eq.s32.totalorder %s18, 0
    %p232 = por %p230, %p231
    %p233 = scmp.ne.s32.totalorder %s219, %s220
    %p234 = scmp.eq.s32.totalorder %s19, 3
    %p235 = por %p233, %p234
    %p237 = scmp.ne.s32.totalorder %s220, %s236
    %p238 = scmp.eq.s32.totalorder %s19, 0
    %p239 = por %p237, %p238
    %p240 = scmp.le.s32.totalorder 1, %s13
    %p241 = scmp.lt.s32.totalorder %s13, 5
    %p242 = pnand %p240, %p241
    %p243 = pneg %p242
    // Predicated region
    $region9: #{feature_loss.7} parent=5 // pred_check
      _
    $region10: #{feature_loss.7} parent=5 // pred_check_branch
      %245 = sbr.rel (%p242) target = $region12
    $region11: #{feature_loss.7} parent=5 // pred_region
      %s246 = ssub.s32 %s13, 1
      // Predicated region
      $region13: #{feature_loss.7} parent=11 // pred_check
        %p247 = pneg %p162
      $region14: #{feature_loss.7} parent=11 // pred_check_branch
        %249 = sbr.rel (%p247) target = $region16
      $region15: #{feature_loss.7} parent=11 // pred_region
        _
      $region16: #{feature_loss.7} parent=11 // pred_fallthru
        _
      // Predicated region
      $region17: #{feature_loss.7} parent=11 // pred_check
        %p250 = pneg %p183
      $region18: #{feature_loss.7} parent=11 // pred_check_branch
        %252 = sbr.rel (%p250) target = $region20
      $region19: #{feature_loss.7} parent=11 // pred_region
        _
      $region20: #{feature_loss.7} parent=11 // pred_fallthru
        _
      // Predicated region
      $region21: #{feature_loss.7} parent=11 // pred_check
        %p253 = pneg %p204
      $region22: #{feature_loss.7} parent=11 // pred_check_branch
        %255 = sbr.rel (%p253) target = $region24
      $region23: #{feature_loss.7} parent=11 // pred_region
        _
      $region24: #{feature_loss.7} parent=11 // pred_fallthru
        _
    $region12: #{feature_loss.7} parent=5 // pred_fallthru
      _
    %p256 = scmp.lt.s32.totalorder %s13, 4
    // Predicated region
    $region25: #{feature_loss.7} parent=5 // pred_check
      %p257 = pneg %p256
    $region26: #{feature_loss.7} parent=5 // pred_check_branch
      %259 = sbr.rel (%p257) target = $region28
    $region27: #{feature_loss.7} parent=5 // pred_region
      // Predicated region
      $region29: #{feature_loss.7} parent=27 // pred_check
        %p260 = pneg %p47
      $region30: #{feature_loss.7} parent=27 // pred_check_branch
        %262 = sbr.rel (%p260) target = $region32
      $region31: #{feature_loss.7} parent=27 // pred_region
        %s263 = smul.u32 4, %s21
        %p264 = scmp.lt.s32.totalorder %s20, 1
        %s265 = scalar_select %p264, %s20, 1
        %p266 = scmp.lt.s32.totalorder %s263, 11
        %s267 = scalar_select %p266, %s263, 11
        %s268 = smul.addr %s267, 2
        %s269 = smul.addr %s265, 24
        %s270 = sadd.s32 %s268, %s269
        %s271 = smul.addr %s270, 4
        %s272 = scalar_lea.vmem %s0, %s271
        %s273 = smul.u32 4, %s21
      $region32: #{feature_loss.7} parent=27 // pred_fallthru
        _
      // Predicated region
      $region33: #{feature_loss.7} parent=27 // pred_check
        %p274 = pneg %p77
      $region34: #{feature_loss.7} parent=27 // pred_check_branch
        %276 = sbr.rel (%p274) target = $region36
      $region35: #{feature_loss.7} parent=27 // pred_region
        %s277 = sadd.s32 %s21, 1
        %s278 = smul.u32 4, %s277
        %p279 = scmp.lt.s32.totalorder %s20, 1
        %s280 = scalar_select %p279, %s20, 1
        %p281 = scmp.lt.s32.totalorder %s278, 11
        %s282 = scalar_select %p281, %s278, 11
        %s283 = smul.addr %s282, 2
        %s284 = smul.addr %s280, 24
        %s285 = sadd.s32 %s283, %s284
        %s286 = smul.addr %s285, 4
        %s287 = scalar_lea.vmem %s1, %s286
        %s288 = sadd.s32 %s21, 1
        %s289 = smul.u32 4, %s288
      $region36: #{feature_loss.7} parent=27 // pred_fallthru
        _
      // Predicated region
      $region37: #{feature_loss.7} parent=27 // pred_check
        %p290 = pneg %p105
      $region38: #{feature_loss.7} parent=27 // pred_check_branch
        %292 = sbr.rel (%p290) target = $region40
      $region39: #{feature_loss.7} parent=27 // pred_region
        %s293 = smul.u32 4, %s21
        %p294 = scmp.lt.s32.totalorder %s20, 1
        %s295 = scalar_select %p294, %s20, 1
        %p296 = scmp.lt.s32.totalorder %s293, 11
        %s297 = scalar_select %p296, %s293, 11
        %s298 = smul.addr %s297, 2
        %s299 = smul.addr %s295, 24
        %s300 = sadd.s32 %s298, %s299
        %s301 = smul.addr %s300, 4
        %s302 = scalar_lea.vmem %s2, %s301
        %s303 = smul.u32 4, %s21
      $region40: #{feature_loss.7} parent=27 // pred_fallthru
        _
      // Predicated region
      $region41: #{feature_loss.7} parent=27 // pred_check
        %p304 = pneg %p135
      $region42: #{feature_loss.7} parent=27 // pred_check_branch
        %306 = sbr.rel (%p304) target = $region44
      $region43: #{feature_loss.7} parent=27 // pred_region
        %s307 = sadd.s32 %s21, 1
        %s308 = smul.u32 4, %s307
        %p309 = scmp.lt.s32.totalorder %s20, 1
        %s310 = scalar_select %p309, %s20, 1
        %p311 = scmp.lt.s32.totalorder %s308, 11
        %s312 = scalar_select %p311, %s308, 11
        %s313 = smul.addr %s312, 2
        %s314 = smul.addr %s310, 24
        %s315 = sadd.s32 %s313, %s314
        %s316 = smul.addr %s315, 4
        %s317 = scalar_lea.vmem %s3, %s316
        %s318 = sadd.s32 %s21, 1
        %s319 = smul.u32 4, %s318
      $region44: #{feature_loss.7} parent=27 // pred_fallthru
        _
    $region28: #{feature_loss.7} parent=5 // pred_fallthru
      _
    %p320 = scmp.le.s32.totalorder 1, %s13
    %p321 = scmp.lt.s32.totalorder %s13, 5
    %p322 = pnand %p320, %p321
    %p323 = pneg %p322
    // Predicated region
    $region45: #{feature_loss.7} parent=5 // pred_check
      _
    $region46: #{feature_loss.7} parent=5 // pred_check_branch
      %325 = sbr.rel (%p322) target = $region48
    $region47: #{feature_loss.7} parent=5 // pred_region
      %s326 = ssub.s32 %s13, 1
      %s327 = smul.u32 4, %s23
      %p328 = scmp.lt.s32.totalorder %s22, 1
      %s329 = scalar_select %p328, %s22, 1
      %p330 = scmp.lt.s32.totalorder %s327, 11
      %s331 = scalar_select %p330, %s327, 11
      %s332 = smul.addr %s331, 2
      %s333 = smul.addr %s329, 24
      %s334 = sadd.s32 %s332, %s333
      %s335 = smul.addr %s334, 4
      %s336 = scalar_lea.vmem %s0, %s335
      %p337 = pneg %p53
      %p338 = pneg %p50
      %s339 = sadd.s32 %s23, 1
      %s340 = smul.u32 4, %s339
      %p341 = scmp.lt.s32.totalorder %s22, 1
      %s342 = scalar_select %p341, %s22, 1
      %p343 = scmp.lt.s32.totalorder %s340, 11
      %s344 = scalar_select %p343, %s340, 11
      %s345 = smul.addr %s344, 2
      %s346 = smul.addr %s342, 24
      %s347 = sadd.s32 %s345, %s346
      %s348 = smul.addr %s347, 4
      %s349 = scalar_lea.vmem %s1, %s348
      %p350 = pneg %p83
      %p351 = pneg %p80
      %s352 = smul.u32 4, %s23
      %p353 = scmp.lt.s32.totalorder %s22, 1
      %s354 = scalar_select %p353, %s22, 1
      %p355 = scmp.lt.s32.totalorder %s352, 11
      %s356 = scalar_select %p355, %s352, 11
      %s357 = smul.addr %s356, 2
      %s358 = smul.addr %s354, 24
      %s359 = sadd.s32 %s357, %s358
      %s360 = smul.addr %s359, 4
      %s361 = scalar_lea.vmem %s2, %s360
      %p362 = pneg %p111
      %p363 = pneg %p108
      %s364 = sadd.s32 %s23, 1
      %s365 = smul.u32 4, %s364
      %p366 = scmp.lt.s32.totalorder %s22, 1
      %s367 = scalar_select %p366, %s22, 1
      %p368 = scmp.lt.s32.totalorder %s365, 11
      %s369 = scalar_select %p368, %s365, 11
      %s370 = smul.addr %s369, 2
      %s371 = smul.addr %s367, 24
      %s372 = sadd.s32 %s370, %s371
      %s373 = smul.addr %s372, 4
      %s374 = scalar_lea.vmem %s3, %s373
      %p375 = pneg %p141
      %p376 = pneg %p138
      %p377 = pneg %p162
      %p378 = pneg %p159
      %p379 = pneg %p183
      %p380 = pneg %p180
      %p381 = pneg %p204
      %p382 = pneg %p201
      %p383 = pneg %p232
      %p384 = pneg %p229
      %p385 = scmp.lt.s32.totalorder %s22, 1
      %s386 = scalar_select %p385, %s22, 1
      %p387 = scmp.lt.s32.totalorder %s23, 1
      %s388 = scalar_select %p387, %s23, 1
      %s389 = smul.addr %s386, 2
      %s390 = sadd.s32 %s388, %s389
      %s391 = scalar_lea.vmem %s7, %s390
      %s392 = smul.u32 4, %s23
      %p393 = scmp.lt.s32.totalorder %s22, 1
      %s394 = scalar_select %p393, %s22, 1
      %p395 = scmp.lt.s32.totalorder %s392, 11
      %s396 = scalar_select %p395, %s392, 11
      %s397 = smul.addr %s396, 2
      %s398 = smul.addr %s394, 24
      %s399 = sadd.s32 %s397, %s398
      %s400 = smul.addr %s399, 4
      %s401 = scalar_lea.vmem %s0, %s400
      %s402 = smul.u32 4, %s23
      %s403 = sadd.s32 %s23, 1
      %s404 = smul.u32 4, %s403
      %p405 = scmp.lt.s32.totalorder %s22, 1
      %s406 = scalar_select %p405, %s22, 1
      %p407 = scmp.lt.s32.totalorder %s404, 11
      %s408 = scalar_select %p407, %s404, 11
      %s409 = smul.addr %s408, 2
      %s410 = smul.addr %s406, 24
      %s411 = sadd.s32 %s409, %s410
      %s412 = smul.addr %s411, 4
      %s413 = scalar_lea.vmem %s1, %s412
      %s414 = sadd.s32 %s23, 1
      %s415 = smul.u32 4, %s414
      %s416 = smul.u32 4, %s23
      %p417 = scmp.lt.s32.totalorder %s22, 1
      %s418 = scalar_select %p417, %s22, 1
      %p419 = scmp.lt.s32.totalorder %s416, 11
      %s420 = scalar_select %p419, %s416, 11
      %s421 = smul.addr %s420, 2
      %s422 = smul.addr %s418, 24
      %s423 = sadd.s32 %s421, %s422
      %s424 = smul.addr %s423, 4
      %s425 = scalar_lea.vmem %s2, %s424
      %s426 = smul.u32 4, %s23
      %s427 = sadd.s32 %s23, 1
      %s428 = smul.u32 4, %s427
      %p429 = scmp.lt.s32.totalorder %s22, 1
      %s430 = scalar_select %p429, %s22, 1
      %p431 = scmp.lt.s32.totalorder %s428, 11
      %s432 = scalar_select %p431, %s428, 11
      %s433 = smul.addr %s432, 2
      %s434 = smul.addr %s430, 24
      %s435 = sadd.s32 %s433, %s434
      %s436 = smul.addr %s435, 4
      %s437 = scalar_lea.vmem %s3, %s436
      %s438 = sadd.s32 %s23, 1
      %s439 = smul.u32 4, %s438
      %p440 = scmp.lt.s32.totalorder %s22, 1
      %s441 = scalar_select %p440, %s22, 1
      %p442 = scmp.lt.s32.totalorder %s23, 1
      %s443 = scalar_select %p442, %s23, 1
      %s444 = smul.addr %s441, 2
      %s445 = sadd.s32 %s443, %s444
      %s446 = scalar_lea.vmem %s7, %s445
      %v448 = vld [vmem:[%s401] sm:$0xf]
      %v449 = vld [vmem:[%s401 + $0x4] sm:$0x1]
      %v450 = vld [vmem:[%s401 + $0x8] sm:$0xf]
      %v451 = vld [vmem:[%s401 + $0xc] sm:$0x1]
      %v452 = vld [vmem:[%s401 + $0x10] sm:$0xf]
      %v453 = vld [vmem:[%s401 + $0x14] sm:$0x1]
      %v454 = vld [vmem:[%s401 + $0x18] sm:$0xf]
      %v455 = vld [vmem:[%s401 + $0x1c] sm:$0x1]
      %v456 = vld [vmem:[%s413] sm:$0xf]
      %v457 = vld [vmem:[%s413 + $0x4] sm:$0x1]
      %v458 = vld [vmem:[%s413 + $0x8] sm:$0xf]
      %v459 = vld [vmem:[%s413 + $0xc] sm:$0x1]
      %v460 = vld [vmem:[%s425] sm:$0xf]
      %v461 = vld [vmem:[%s425 + $0x4] sm:$0x1]
      %v462 = vld [vmem:[%s425 + $0x8] sm:$0xf]
      %v463 = vld [vmem:[%s425 + $0xc] sm:$0x1]
      %v464 = vld [vmem:[%s425 + $0x10] sm:$0xf]
      %v465 = vld [vmem:[%s425 + $0x14] sm:$0x1]
      %v466 = vld [vmem:[%s425 + $0x18] sm:$0xf]
      %v467 = vld [vmem:[%s425 + $0x1c] sm:$0x1]
      %v468 = vld [vmem:[%s437] sm:$0xf]
      %v469 = vld [vmem:[%s437 + $0x4] sm:$0x1]
      %v470 = vld [vmem:[%s437 + $0x8] sm:$0xf]
      %v471 = vld [vmem:[%s437 + $0xc] sm:$0x1]
      %v480 = vunpack.c.l.b16 %v448
      %v481 = vunpack.c.l.b16 %v449
      %v482 = vunpack.c.l.b16 %v450
      %v483 = vunpack.c.l.b16 %v451
      %v484 = vunpack.c.l.b16 %v452
      %v485 = vunpack.c.l.b16 %v453
      %v486 = vunpack.c.l.b16 %v454
      %v487 = vunpack.c.l.b16 %v455
      %v488 = vpack.c.b16 %v481, %v480
      %v489 = vpack.c.b16 %v483, %v482
      %v490 = vpack.c.b16 %v485, %v484
      %v491 = vpack.c.b16 %v487, %v486
      %v493 = vshrl.u32 %v488, 16
      %v495 = vshll.u32 %v488, 16
      %v497 = vrot.slane %v495, 1
      %v498 = vor.u32 %v493, %v497
      %v500 = vshrl.u32 %v489, 16
      %v502 = vshll.u32 %v489, 16
      %v504 = vrot.slane %v502, 1
      %v505 = vor.u32 %v500, %v504
      %v507 = vshrl.u32 %v490, 16
      %v509 = vshll.u32 %v490, 16
      %v511 = vrot.slane %v509, 1
      %v512 = vor.u32 %v507, %v511
      %v514 = vshrl.u32 %v491, 16
      %v516 = vshll.u32 %v491, 16
      %v518 = vrot.slane %v516, 1
      %v519 = vor.u32 %v514, %v518
      %v520 = vrot.slane %v488, 1
      %v521 = vrot.slane %v489, 1
      %v522 = vrot.slane %v490, 1
      %v523 = vrot.slane %v491, 1
      %v524 = vunpack.c.l.b16 %v498
      %v525 = vunpack.c.l.b16 %v520
      %v526 = vunpack.c.l.b16 %v505
      %v527 = vunpack.c.l.b16 %v521
      %v528 = vunpack.c.l.b16 %v512
      %v529 = vunpack.c.l.b16 %v522
      %v530 = vunpack.c.l.b16 %v519
      %v531 = vunpack.c.l.b16 %v523
      %v540 = vunpack.c.l.b16 %v460
      %v541 = vunpack.c.l.b16 %v461
      %v542 = vunpack.c.l.b16 %v462
      %v543 = vunpack.c.l.b16 %v463
      %v544 = vunpack.c.l.b16 %v464
      %v545 = vunpack.c.l.b16 %v465
      %v546 = vunpack.c.l.b16 %v466
      %v547 = vunpack.c.l.b16 %v467
      %v548 = vpack.c.b16 %v541, %v540
      %v549 = vpack.c.b16 %v543, %v542
      %v550 = vpack.c.b16 %v545, %v544
      %v551 = vpack.c.b16 %v547, %v546
      %v553 = vshrl.u32 %v548, 16
      %v555 = vshll.u32 %v548, 16
      %v557 = vrot.slane %v555, 1
      %v558 = vor.u32 %v553, %v557
      %v560 = vshrl.u32 %v549, 16
      %v562 = vshll.u32 %v549, 16
      %v564 = vrot.slane %v562, 1
      %v565 = vor.u32 %v560, %v564
      %v567 = vshrl.u32 %v550, 16
      %v569 = vshll.u32 %v550, 16
      %v571 = vrot.slane %v569, 1
      %v572 = vor.u32 %v567, %v571
      %v574 = vshrl.u32 %v551, 16
      %v576 = vshll.u32 %v551, 16
      %v578 = vrot.slane %v576, 1
      %v579 = vor.u32 %v574, %v578
      %v580 = vrot.slane %v548, 1
      %v581 = vrot.slane %v549, 1
      %v582 = vrot.slane %v550, 1
      %v583 = vrot.slane %v551, 1
      %v584 = vunpack.c.l.b16 %v558
      %v585 = vunpack.c.l.b16 %v580
      %v586 = vunpack.c.l.b16 %v565
      %v587 = vunpack.c.l.b16 %v581
      %v588 = vunpack.c.l.b16 %v572
      %v589 = vunpack.c.l.b16 %v582
      %v590 = vunpack.c.l.b16 %v579
      %v591 = vunpack.c.l.b16 %v583
      %v592 = vpack.c.b16 %v482, %v480
      %v593 = vpack.c.b16 %v526, %v524
      %v594 = vpack.c.b16 %v527, %v525
      %v595 = vpack.c.b16 %v486, %v484
      %v596 = vpack.c.b16 %v530, %v528
      %v597 = vpack.c.b16 %v531, %v529
      %v604 = vpack.c.b16 %v542, %v540
      %v605 = vpack.c.b16 %v586, %v584
      %v606 = vpack.c.b16 %v587, %v585
      %v607 = vpack.c.b16 %v546, %v544
      %v608 = vpack.c.b16 %v590, %v588
      %v609 = vpack.c.b16 %v591, %v589
      %v616 = vld [vmem:[%s4] sm:$0xf]
      %v617 = vld [vmem:[%s4 + $0x4] sm:$0xf]
      %v618 = vld [vmem:[%s4 + $0x8] sm:$0xf]
      %v619 = vld [vmem:[%s4 + $0xc] sm:$0xf]
      %v620 = vld [vmem:[%s4 + $0x10] sm:$0xf]
      %v621 = vld [vmem:[%s4 + $0x14] sm:$0xf]
      %v622 = vld [vmem:[%s4 + $0x18] sm:$0xf]
      %v623 = vld [vmem:[%s4 + $0x1c] sm:$0xf]
      %v624 = vld [vmem:[%s4 + $0x20] sm:$0xf]
      %v625 = vld [vmem:[%s4 + $0x24] sm:$0xf]
      %v626 = vld [vmem:[%s4 + $0x28] sm:$0xf]
      %v627 = vld [vmem:[%s4 + $0x2c] sm:$0xf]
      %v628 = vld [vmem:[%s4 + $0x30] sm:$0xf]
      %v629 = vld [vmem:[%s4 + $0x34] sm:$0xf]
      %v630 = vld [vmem:[%s4 + $0x38] sm:$0xf]
      %v631 = vld [vmem:[%s4 + $0x3c] sm:$0xf]
      %v632 = vld [vmem:[%s4 + $0x40] sm:$0xf]
      %v633 = vld [vmem:[%s4 + $0x44] sm:$0xf]
      %v634 = vld [vmem:[%s4 + $0x48] sm:$0xf]
      %v635 = vld [vmem:[%s4 + $0x4c] sm:$0xf]
      %v636 = vld [vmem:[%s4 + $0x50] sm:$0xf]
      %v637 = vld [vmem:[%s4 + $0x54] sm:$0xf]
      %v638 = vld [vmem:[%s4 + $0x58] sm:$0xf]
      %v639 = vld [vmem:[%s4 + $0x5c] sm:$0xf]
      %v640 = vld [vmem:[%s4 + $0x60] sm:$0xf]
      %v641 = vld [vmem:[%s4 + $0x64] sm:$0xf]
      %v642 = vld [vmem:[%s4 + $0x68] sm:$0xf]
      %v643 = vld [vmem:[%s4 + $0x6c] sm:$0xf]
      %v644 = vld [vmem:[%s4 + $0x70] sm:$0xf]
      %v645 = vld [vmem:[%s4 + $0x74] sm:$0xf]
      %v646 = vld [vmem:[%s4 + $0x78] sm:$0xf]
      %v647 = vld [vmem:[%s4 + $0x7c] sm:$0xf]
      %v648 = vld [vmem:[%s4 + $0x80] sm:$0xf]
      %v649 = vld [vmem:[%s4 + $0x84] sm:$0xf]
      %v650 = vld [vmem:[%s4 + $0x88] sm:$0xf]
      %v651 = vld [vmem:[%s4 + $0x8c] sm:$0xf]
      %v652 = vld [vmem:[%s4 + $0x90] sm:$0xf]
      %v653 = vld [vmem:[%s4 + $0x94] sm:$0xf]
      %v654 = vld [vmem:[%s4 + $0x98] sm:$0xf]
      %v655 = vld [vmem:[%s4 + $0x9c] sm:$0xf]
      %v656 = vld [vmem:[%s4 + $0xa0] sm:$0xf]
      %v657 = vld [vmem:[%s4 + $0xa4] sm:$0xf]
      %v658 = vld [vmem:[%s4 + $0xa8] sm:$0xf]
      %v659 = vld [vmem:[%s4 + $0xac] sm:$0xf]
      %v660 = vld [vmem:[%s4 + $0xb0] sm:$0xf]
      %v661 = vld [vmem:[%s4 + $0xb4] sm:$0xf]
      %v662 = vld [vmem:[%s4 + $0xb8] sm:$0xf]
      %v663 = vld [vmem:[%s4 + $0xbc] sm:$0xf]
      %v666 = vunpack.c.l.b16 %v456
      %v667 = vunpack.c.l.b16 %v457
      %v668 = vpack.c.b16 %v667, %v666
      %v670 = vshrl.u32 %v668, 16
      %v672 = vshll.u32 %v668, 16
      %v674 = vrot.slane %v672, 1
      %v675 = vor.u32 %v670, %v674
      %v676 = vrot.slane %v668, 1
      %v677 = vunpack.c.l.b16 %v675
      %v678 = vunpack.c.l.b16 %v676
      %v681 = vunpack.c.l.b16 %v468
      %v682 = vunpack.c.l.b16 %v469
      %v683 = vpack.c.b16 %v682, %v681
      %v685 = vshrl.u32 %v683, 16
      %v687 = vshll.u32 %v683, 16
      %v689 = vrot.slane %v687, 1
      %v690 = vor.u32 %v685, %v689
      %v691 = vrot.slane %v683, 1
      %v692 = vunpack.c.l.b16 %v690
      %v693 = vunpack.c.l.b16 %v691
      %v694 = vpack.c.b16 %v484, %v482
      %v695 = vpack.c.b16 %v528, %v526
      %v696 = vpack.c.b16 %v529, %v527
      %v697 = vpack.c.b16 %v666, %v486
      %v698 = vpack.c.b16 %v677, %v530
      %v699 = vpack.c.b16 %v678, %v531
      %v706 = vpack.c.b16 %v544, %v542
      %v707 = vpack.c.b16 %v588, %v586
      %v708 = vpack.c.b16 %v589, %v587
      %v709 = vpack.c.b16 %v681, %v546
      %v710 = vpack.c.b16 %v692, %v590
      %v711 = vpack.c.b16 %v693, %v591
      %s718 = scalar_lea.vmem %s4, 192
      %v719 = vld [vmem:[%s718] sm:$0xf]
      %v720 = vld [vmem:[%s718 + $0x4] sm:$0xf]
      %v721 = vld [vmem:[%s718 + $0x8] sm:$0xf]
      %v722 = vld [vmem:[%s718 + $0xc] sm:$0xf]
      %v723 = vld [vmem:[%s718 + $0x10] sm:$0xf]
      %v724 = vld [vmem:[%s718 + $0x14] sm:$0xf]
      %v725 = vld [vmem:[%s718 + $0x18] sm:$0xf]
      %v726 = vld [vmem:[%s718 + $0x1c] sm:$0xf]
      %v727 = vld [vmem:[%s718 + $0x20] sm:$0xf]
      %v728 = vld [vmem:[%s718 + $0x24] sm:$0xf]
      %v729 = vld [vmem:[%s718 + $0x28] sm:$0xf]
      %v730 = vld [vmem:[%s718 + $0x2c] sm:$0xf]
      %v731 = vld [vmem:[%s718 + $0x30] sm:$0xf]
      %v732 = vld [vmem:[%s718 + $0x34] sm:$0xf]
      %v733 = vld [vmem:[%s718 + $0x38] sm:$0xf]
      %v734 = vld [vmem:[%s718 + $0x3c] sm:$0xf]
      %v735 = vld [vmem:[%s718 + $0x40] sm:$0xf]
      %v736 = vld [vmem:[%s718 + $0x44] sm:$0xf]
      %v737 = vld [vmem:[%s718 + $0x48] sm:$0xf]
      %v738 = vld [vmem:[%s718 + $0x4c] sm:$0xf]
      %v739 = vld [vmem:[%s718 + $0x50] sm:$0xf]
      %v740 = vld [vmem:[%s718 + $0x54] sm:$0xf]
      %v741 = vld [vmem:[%s718 + $0x58] sm:$0xf]
      %v742 = vld [vmem:[%s718 + $0x5c] sm:$0xf]
      %v743 = vld [vmem:[%s718 + $0x60] sm:$0xf]
      %v744 = vld [vmem:[%s718 + $0x64] sm:$0xf]
      %v745 = vld [vmem:[%s718 + $0x68] sm:$0xf]
      %v746 = vld [vmem:[%s718 + $0x6c] sm:$0xf]
      %v747 = vld [vmem:[%s718 + $0x70] sm:$0xf]
      %v748 = vld [vmem:[%s718 + $0x74] sm:$0xf]
      %v749 = vld [vmem:[%s718 + $0x78] sm:$0xf]
      %v750 = vld [vmem:[%s718 + $0x7c] sm:$0xf]
      %v751 = vld [vmem:[%s718 + $0x80] sm:$0xf]
      %v752 = vld [vmem:[%s718 + $0x84] sm:$0xf]
      %v753 = vld [vmem:[%s718 + $0x88] sm:$0xf]
      %v754 = vld [vmem:[%s718 + $0x8c] sm:$0xf]
      %v755 = vld [vmem:[%s718 + $0x90] sm:$0xf]
      %v756 = vld [vmem:[%s718 + $0x94] sm:$0xf]
      %v757 = vld [vmem:[%s718 + $0x98] sm:$0xf]
      %v758 = vld [vmem:[%s718 + $0x9c] sm:$0xf]
      %v759 = vld [vmem:[%s718 + $0xa0] sm:$0xf]
      %v760 = vld [vmem:[%s718 + $0xa4] sm:$0xf]
      %v761 = vld [vmem:[%s718 + $0xa8] sm:$0xf]
      %v762 = vld [vmem:[%s718 + $0xac] sm:$0xf]
      %v763 = vld [vmem:[%s718 + $0xb0] sm:$0xf]
      %v764 = vld [vmem:[%s718 + $0xb4] sm:$0xf]
      %v765 = vld [vmem:[%s718 + $0xb8] sm:$0xf]
      %v766 = vld [vmem:[%s718 + $0xbc] sm:$0xf]
      %v815 = vunpack.c.l.b16 %v719
      %v816 = vunpack.c.l.b16 %v720
      %v817 = vunpack.c.l.b16 %v721
      %v818 = vunpack.c.l.b16 %v722
      %v819 = vunpack.c.l.b16 %v723
      %v820 = vunpack.c.l.b16 %v724
      %v821 = vunpack.c.l.b16 %v725
      %v822 = vunpack.c.l.b16 %v726
      %v823 = vunpack.c.l.b16 %v727
      %v824 = vunpack.c.l.b16 %v728
      %v825 = vunpack.c.l.b16 %v729
      %v826 = vunpack.c.l.b16 %v730
      %v827 = vunpack.c.l.b16 %v731
      %v828 = vunpack.c.l.b16 %v732
      %v829 = vunpack.c.l.b16 %v733
      %v830 = vunpack.c.l.b16 %v734
      %v831 = vunpack.c.l.b16 %v735
      %v832 = vunpack.c.l.b16 %v736
      %v833 = vunpack.c.l.b16 %v737
      %v834 = vunpack.c.l.b16 %v738
      %v835 = vunpack.c.l.b16 %v739
      %v836 = vunpack.c.l.b16 %v740
      %v837 = vunpack.c.l.b16 %v741
      %v838 = vunpack.c.l.b16 %v742
      %v839 = vunpack.c.l.b16 %v743
      %v840 = vunpack.c.l.b16 %v744
      %v841 = vunpack.c.l.b16 %v745
      %v842 = vunpack.c.l.b16 %v746
      %v843 = vunpack.c.l.b16 %v747
      %v844 = vunpack.c.l.b16 %v748
      %v845 = vunpack.c.l.b16 %v749
      %v846 = vunpack.c.l.b16 %v750
      %v847 = vunpack.c.l.b16 %v751
      %v848 = vunpack.c.l.b16 %v752
      %v849 = vunpack.c.l.b16 %v753
      %v850 = vunpack.c.l.b16 %v754
      %v851 = vunpack.c.l.b16 %v755
      %v852 = vunpack.c.l.b16 %v756
      %v853 = vunpack.c.l.b16 %v757
      %v854 = vunpack.c.l.b16 %v758
      %v855 = vunpack.c.l.b16 %v759
      %v856 = vunpack.c.l.b16 %v760
      %v857 = vunpack.c.l.b16 %v761
      %v858 = vunpack.c.l.b16 %v762
      %v859 = vunpack.c.l.b16 %v763
      %v860 = vunpack.c.l.b16 %v764
      %v861 = vunpack.c.l.b16 %v765
      %v862 = vunpack.c.l.b16 %v766
      %v863 = vpack.c.b16 %v816, %v815
      %v864 = vpack.c.b16 %v818, %v817
      %v865 = vpack.c.b16 %v820, %v819
      %v866 = vpack.c.b16 %v822, %v821
      %v867 = vpack.c.b16 %v824, %v823
      %v868 = vpack.c.b16 %v826, %v825
      %v869 = vpack.c.b16 %v828, %v827
      %v870 = vpack.c.b16 %v830, %v829
      %v871 = vpack.c.b16 %v832, %v831
      %v872 = vpack.c.b16 %v834, %v833
      %v873 = vpack.c.b16 %v836, %v835
      %v874 = vpack.c.b16 %v838, %v837
      %v875 = vpack.c.b16 %v840, %v839
      %v876 = vpack.c.b16 %v842, %v841
      %v877 = vpack.c.b16 %v844, %v843
      %v878 = vpack.c.b16 %v846, %v845
      %v879 = vpack.c.b16 %v848, %v847
      %v880 = vpack.c.b16 %v850, %v849
      %v881 = vpack.c.b16 %v852, %v851
      %v882 = vpack.c.b16 %v854, %v853
      %v883 = vpack.c.b16 %v856, %v855
      %v884 = vpack.c.b16 %v858, %v857
      %v885 = vpack.c.b16 %v860, %v859
      %v886 = vpack.c.b16 %v862, %v861
      %911 = vmatprep.subr.bf16.mxu0 0
      %912 = vmatpush1.bf16.msra.mxu0 %v863
      %913 = vmatprep.subr.bf16.mxu0 0
      %914 = vmatpush1.bf16.msra.mxu0 %v864
      %915 = vmatprep.subr.bf16.mxu0 0
      %916 = vmatpush1.bf16.msra.mxu0 %v865
      %917 = vmatprep.subr.bf16.mxu0 0
      %918 = vmatpush1.bf16.msra.mxu0 %v866
      %919 = vmatprep.subr.bf16.mxu0 0
      %920 = vmatpush1.bf16.msra.mxu0 %v867
      %921 = vmatprep.subr.bf16.mxu0 0
      %922 = vmatpush1.bf16.msra.mxu0 %v868
      %923 = vmatprep.subr.bf16.mxu0 0
      %924 = vmatpush1.bf16.msra.mxu0 %v869
      %925 = vmatprep.subr.bf16.mxu0 0
      %926 = vmatpush1.bf16.msra.mxu0 %v870
      %927 = vmatprep.subr.bf16.mxu0 0
      %928 = vmatpush1.bf16.msra.mxu0 %v871
      %929 = vmatprep.subr.bf16.mxu0 0
      %930 = vmatpush1.bf16.msra.mxu0 %v872
      %931 = vmatprep.subr.bf16.mxu0 0
      %932 = vmatpush1.bf16.msra.mxu0 %v873
      %933 = vmatprep.subr.bf16.mxu0 0
      %934 = vmatpush1.bf16.msra.mxu0 %v874
      %935 = vmatprep.subr.bf16.mxu0 0
      %936 = vmatpush1.bf16.msra.mxu0 %v875
      %937 = vmatprep.subr.bf16.mxu0 0
      %938 = vmatpush1.bf16.msra.mxu0 %v876
      %939 = vmatprep.subr.bf16.mxu0 0
      %940 = vmatpush1.bf16.msra.mxu0 %v877
      %941 = vmatprep.subr.bf16.mxu0 0
      %942 = vmatpush1.bf16.msra.mxu0 %v878
      %943 = vmatprep.mubr.bf16.mxu0 %v695
      %944 = vmatmul.mubr.bf16.gmra.mrb[0].mxu0 %v694
      %v945 = vpop.f32.mrb[0].mxu0
      %v946 = vadd.f32 0.0, %v945
      %v947 = vpop.f32.mrb[0].mxu0
      %v948 = vpop.f32.mrb[0].mxu0
      %v949 = vadd.f32 0.0, %v948
      %v950 = vpop.f32.mrb[0].mxu0
      %951 = vmatprep.mubr.bf16.mxu0 %v698
      %952 = vmatmul.mubr.bf16.gmra.mrb[0].mxu0 %v697
      %v953 = vpop.f32.mrb[0].mxu0
      %v954 = vadd.f32 0.0, %v953
      %v955 = vpop.f32.mrb[0].mxu0
      %v956 = vpop.f32.mrb[0].mxu0
      %v957 = vadd.f32 0.0, %v956
      %v958 = vpop.f32.mrb[0].mxu0
      %959 = vmatprep.mubr.bf16.mxu0 %v707
      %960 = vmatmul.mubr.bf16.gmra.mrb[0].mxu0 %v706
      %v961 = vpop.f32.mrb[0].mxu0
      %v962 = vadd.f32 0.0, %v961
      %v963 = vpop.f32.mrb[0].mxu0
      %v964 = vpop.f32.mrb[0].mxu0
      %v965 = vadd.f32 0.0, %v964
      %v966 = vpop.f32.mrb[0].mxu0
      %967 = vmatprep.mubr.bf16.mxu0 %v710
      %968 = vmatmul.mubr.bf16.gmra.mrb[0].mxu0 %v709
      %v969 = vpop.f32.mrb[0].mxu0
      %v970 = vadd.f32 0.0, %v969
      %v971 = vpop.f32.mrb[0].mxu0
      %v972 = vpop.f32.mrb[0].mxu0
      %v973 = vadd.f32 0.0, %v972
      %v974 = vpop.f32.mrb[0].mxu0
      %975 = vdwg.mxu0
      %976 = vmatprep.subr.bf16.mxu0 0
      %977 = vmatpush1.bf16.msra.mxu0 %v879
      %978 = vmatprep.subr.bf16.mxu0 0
      %979 = vmatpush1.bf16.msra.mxu0 %v880
      %980 = vmatprep.subr.bf16.mxu0 0
      %981 = vmatpush1.bf16.msra.mxu0 %v881
      %982 = vmatprep.subr.bf16.mxu0 0
      %983 = vmatpush1.bf16.msra.mxu0 %v882
      %984 = vmatprep.subr.bf16.mxu0 0
      %985 = vmatpush1.bf16.msra.mxu0 %v883
      %986 = vmatprep.subr.bf16.mxu0 0
      %987 = vmatpush1.bf16.msra.mxu0 %v884
      %988 = vmatprep.subr.bf16.mxu0 0
      %989 = vmatpush1.bf16.msra.mxu0 %v885
      %990 = vmatprep.subr.bf16.mxu0 0
      %991 = vmatpush1.bf16.msra.mxu0 %v886
      %992 = vmatprep.subr.bf16.mxu0 0
      %993 = vmatpush1.bf16.msra.mxu0 0
      %994 = vmatprep.subr.bf16.mxu0 0
      %995 = vmatpush1.bf16.msra.mxu0 0
      %996 = vmatprep.subr.bf16.mxu0 0
      %997 = vmatpush1.bf16.msra.mxu0 0
      %998 = vmatprep.subr.bf16.mxu0 0
      %999 = vmatpush1.bf16.msra.mxu0 0
      %1000 = vmatprep.subr.bf16.mxu0 0
      %1001 = vmatpush1.bf16.msra.mxu0 0
      %1002 = vmatprep.subr.bf16.mxu0 0
      %1003 = vmatpush1.bf16.msra.mxu0 0
      %1004 = vmatprep.subr.bf16.mxu0 0
      %1005 = vmatpush1.bf16.msra.mxu0 0
      %1006 = vmatprep.subr.bf16.mxu0 0
      %1007 = vmatpush1.bf16.msra.mxu0 0
      %1008 = vmatprep.mubr.bf16.mxu0 0
      %1009 = vmatmul.mubr.bf16.gmra.mrb[0].mxu0 %v696
      %v1010 = vpop.f32.mrb[0].mxu0
      %v1011 = vadd.f32 %v946, %v1010
      %v1012 = vpop.f32.mrb[0].mxu0
      %v1013 = vpop.f32.mrb[0].mxu0
      %v1014 = vadd.f32 %v949, %v1013
      %v1015 = vpop.f32.mrb[0].mxu0
      %1016 = vmatprep.mubr.bf16.mxu0 0
      %1017 = vmatmul.mubr.bf16.gmra.mrb[0].mxu0 %v699
      %v1018 = vpop.f32.mrb[0].mxu0
      %v1019 = vadd.f32 %v954, %v1018
      %v1020 = vpop.f32.mrb[0].mxu0
      %v1021 = vpop.f32.mrb[0].mxu0
      %v1022 = vadd.f32 %v957, %v1021
      %v1023 = vpop.f32.mrb[0].mxu0
      %1024 = vmatprep.mubr.bf16.mxu0 0
      %1025 = vmatmul.mubr.bf16.gmra.mrb[0].mxu0 %v708
      %v1026 = vpop.f32.mrb[0].mxu0
      %v1027 = vadd.f32 %v962, %v1026
      %v1028 = vpop.f32.mrb[0].mxu0
      %v1029 = vpop.f32.mrb[0].mxu0
      %v1030 = vadd.f32 %v965, %v1029
      %v1031 = vpop.f32.mrb[0].mxu0
      %1032 = vmatprep.mubr.bf16.mxu0 0
      %1033 = vmatmul.mubr.bf16.gmra.mrb[0].mxu0 %v711
      %v1034 = vpop.f32.mrb[0].mxu0
      %v1035 = vadd.f32 %v970, %v1034
      %v1036 = vpop.f32.mrb[0].mxu0
      %v1037 = vpop.f32.mrb[0].mxu0
      %v1038 = vadd.f32 %v973, %v1037
      %v1039 = vpop.f32.mrb[0].mxu0
      %1040 = vdwg.mxu0
      %v1089 = vunpack.c.l.b16 %v616
      %v1090 = vunpack.c.l.b16 %v617
      %v1091 = vunpack.c.l.b16 %v618
      %v1092 = vunpack.c.l.b16 %v619
      %v1093 = vunpack.c.l.b16 %v620
      %v1094 = vunpack.c.l.b16 %v621
      %v1095 = vunpack.c.l.b16 %v622
      %v1096 = vunpack.c.l.b16 %v623
      %v1097 = vunpack.c.l.b16 %v624
      %v1098 = vunpack.c.l.b16 %v625
      %v1099 = vunpack.c.l.b16 %v626
      %v1100 = vunpack.c.l.b16 %v627
      %v1101 = vunpack.c.l.b16 %v628
      %v1102 = vunpack.c.l.b16 %v629
      %v1103 = vunpack.c.l.b16 %v630
      %v1104 = vunpack.c.l.b16 %v631
      %v1105 = vunpack.c.l.b16 %v632
      %v1106 = vunpack.c.l.b16 %v633
      %v1107 = vunpack.c.l.b16 %v634
      %v1108 = vunpack.c.l.b16 %v635
      %v1109 = vunpack.c.l.b16 %v636
      %v1110 = vunpack.c.l.b16 %v637
      %v1111 = vunpack.c.l.b16 %v638
      %v1112 = vunpack.c.l.b16 %v639
      %v1113 = vunpack.c.l.b16 %v640
      %v1114 = vunpack.c.l.b16 %v641
      %v1115 = vunpack.c.l.b16 %v642
      %v1116 = vunpack.c.l.b16 %v643
      %v1117 = vunpack.c.l.b16 %v644
      %v1118 = vunpack.c.l.b16 %v645
      %v1119 = vunpack.c.l.b16 %v646
      %v1120 = vunpack.c.l.b16 %v647
      %v1121 = vunpack.c.l.b16 %v648
      %v1122 = vunpack.c.l.b16 %v649
      %v1123 = vunpack.c.l.b16 %v650
      %v1124 = vunpack.c.l.b16 %v651
      %v1125 = vunpack.c.l.b16 %v652
      %v1126 = vunpack.c.l.b16 %v653
      %v1127 = vunpack.c.l.b16 %v654
      %v1128 = vunpack.c.l.b16 %v655
      %v1129 = vunpack.c.l.b16 %v656
      %v1130 = vunpack.c.l.b16 %v657
      %v1131 = vunpack.c.l.b16 %v658
      %v1132 = vunpack.c.l.b16 %v659
      %v1133 = vunpack.c.l.b16 %v660
      %v1134 = vunpack.c.l.b16 %v661
      %v1135 = vunpack.c.l.b16 %v662
      %v1136 = vunpack.c.l.b16 %v663
      %v1137 = vpack.c.b16 %v1090, %v1089
      %v1138 = vpack.c.b16 %v1092, %v1091
      %v1139 = vpack.c.b16 %v1094, %v1093
      %v1140 = vpack.c.b16 %v1096, %v1095
      %v1141 = vpack.c.b16 %v1098, %v1097
      %v1142 = vpack.c.b16 %v1100, %v1099
      %v1143 = vpack.c.b16 %v1102, %v1101
      %v1144 = vpack.c.b16 %v1104, %v1103
      %v1145 = vpack.c.b16 %v1106, %v1105
      %v1146 = vpack.c.b16 %v1108, %v1107
      %v1147 = vpack.c.b16 %v1110, %v1109
      %v1148 = vpack.c.b16 %v1112, %v1111
      %v1149 = vpack.c.b16 %v1114, %v1113
      %v1150 = vpack.c.b16 %v1116, %v1115
      %v1151 = vpack.c.b16 %v1118, %v1117
      %v1152 = vpack.c.b16 %v1120, %v1119
      %v1153 = vpack.c.b16 %v1122, %v1121
      %v1154 = vpack.c.b16 %v1124, %v1123
      %v1155 = vpack.c.b16 %v1126, %v1125
      %v1156 = vpack.c.b16 %v1128, %v1127
      %v1157 = vpack.c.b16 %v1130, %v1129
      %v1158 = vpack.c.b16 %v1132, %v1131
      %v1159 = vpack.c.b16 %v1134, %v1133
      %v1160 = vpack.c.b16 %v1136, %v1135
      %1185 = vmatprep.subr.bf16.mxu0 0
      %1186 = vmatpush1.bf16.msra.mxu0 %v1137
      %1187 = vmatprep.subr.bf16.mxu0 0
      %1188 = vmatpush1.bf16.msra.mxu0 %v1138
      %1189 = vmatprep.subr.bf16.mxu0 0
      %1190 = vmatpush1.bf16.msra.mxu0 %v1139
      %1191 = vmatprep.subr.bf16.mxu0 0
      %1192 = vmatpush1.bf16.msra.mxu0 %v1140
      %1193 = vmatprep.subr.bf16.mxu0 0
      %1194 = vmatpush1.bf16.msra.mxu0 %v1141
      %1195 = vmatprep.subr.bf16.mxu0 0
      %1196 = vmatpush1.bf16.msra.mxu0 %v1142
      %1197 = vmatprep.subr.bf16.mxu0 0
      %1198 = vmatpush1.bf16.msra.mxu0 %v1143
      %1199 = vmatprep.subr.bf16.mxu0 0
      %1200 = vmatpush1.bf16.msra.mxu0 %v1144
      %1201 = vmatprep.subr.bf16.mxu0 0
      %1202 = vmatpush1.bf16.msra.mxu0 %v1145
      %1203 = vmatprep.subr.bf16.mxu0 0
      %1204 = vmatpush1.bf16.msra.mxu0 %v1146
      %1205 = vmatprep.subr.bf16.mxu0 0
      %1206 = vmatpush1.bf16.msra.mxu0 %v1147
      %1207 = vmatprep.subr.bf16.mxu0 0
      %1208 = vmatpush1.bf16.msra.mxu0 %v1148
      %1209 = vmatprep.subr.bf16.mxu0 0
      %1210 = vmatpush1.bf16.msra.mxu0 %v1149
      %1211 = vmatprep.subr.bf16.mxu0 0
      %1212 = vmatpush1.bf16.msra.mxu0 %v1150
      %1213 = vmatprep.subr.bf16.mxu0 0
      %1214 = vmatpush1.bf16.msra.mxu0 %v1151
      %1215 = vmatprep.subr.bf16.mxu0 0
      %1216 = vmatpush1.bf16.msra.mxu0 %v1152
      %1217 = vmatprep.mubr.bf16.mxu0 %v593
      %1218 = vmatmul.mubr.bf16.gmra.mrb[0].mxu0 %v592
      %v1219 = vpop.f32.mrb[0].mxu0
      %v1220 = vadd.f32 %v1011, %v1219
      %v1221 = vpop.f32.mrb[0].mxu0
      %v1222 = vpop.f32.mrb[0].mxu0
      %v1223 = vadd.f32 %v1014, %v1222
      %v1224 = vpop.f32.mrb[0].mxu0
      %1225 = vmatprep.mubr.bf16.mxu0 %v596
      %1226 = vmatmul.mubr.bf16.gmra.mrb[0].mxu0 %v595
      %v1227 = vpop.f32.mrb[0].mxu0
      %v1228 = vadd.f32 %v1019, %v1227
      %v1229 = vpop.f32.mrb[0].mxu0
      %v1230 = vpop.f32.mrb[0].mxu0
      %v1231 = vadd.f32 %v1022, %v1230
      %v1232 = vpop.f32.mrb[0].mxu0
      %1233 = vmatprep.mubr.bf16.mxu0 %v605
      %1234 = vmatmul.mubr.bf16.gmra.mrb[0].mxu0 %v604
      %v1235 = vpop.f32.mrb[0].mxu0
      %v1236 = vadd.f32 %v1027, %v1235
      %v1237 = vpop.f32.mrb[0].mxu0
      %v1238 = vpop.f32.mrb[0].mxu0
      %v1239 = vadd.f32 %v1030, %v1238
      %v1240 = vpop.f32.mrb[0].mxu0
      %1241 = vmatprep.mubr.bf16.mxu0 %v608
      %1242 = vmatmul.mubr.bf16.gmra.mrb[0].mxu0 %v607
      %v1243 = vpop.f32.mrb[0].mxu0
      %v1244 = vadd.f32 %v1035, %v1243
      %v1245 = vpop.f32.mrb[0].mxu0
      %v1246 = vpop.f32.mrb[0].mxu0
      %v1247 = vadd.f32 %v1038, %v1246
      %v1248 = vpop.f32.mrb[0].mxu0
      %1249 = vdwg.mxu0
      %1250 = vmatprep.subr.bf16.mxu0 0
      %1251 = vmatpush1.bf16.msra.mxu0 %v1153
      %1252 = vmatprep.subr.bf16.mxu0 0
      %1253 = vmatpush1.bf16.msra.mxu0 %v1154
      %1254 = vmatprep.subr.bf16.mxu0 0
      %1255 = vmatpush1.bf16.msra.mxu0 %v1155
      %1256 = vmatprep.subr.bf16.mxu0 0
      %1257 = vmatpush1.bf16.msra.mxu0 %v1156
      %1258 = vmatprep.subr.bf16.mxu0 0
      %1259 = vmatpush1.bf16.msra.mxu0 %v1157
      %1260 = vmatprep.subr.bf16.mxu0 0
      %1261 = vmatpush1.bf16.msra.mxu0 %v1158
      %1262 = vmatprep.subr.bf16.mxu0 0
      %1263 = vmatpush1.bf16.msra.mxu0 %v1159
      %1264 = vmatprep.subr.bf16.mxu0 0
      %1265 = vmatpush1.bf16.msra.mxu0 %v1160
      %1266 = vmatprep.subr.bf16.mxu0 0
      %1267 = vmatpush1.bf16.msra.mxu0 0
      %1268 = vmatprep.subr.bf16.mxu0 0
      %1269 = vmatpush1.bf16.msra.mxu0 0
      %1270 = vmatprep.subr.bf16.mxu0 0
      %1271 = vmatpush1.bf16.msra.mxu0 0
      %1272 = vmatprep.subr.bf16.mxu0 0
      %1273 = vmatpush1.bf16.msra.mxu0 0
      %1274 = vmatprep.subr.bf16.mxu0 0
      %1275 = vmatpush1.bf16.msra.mxu0 0
      %1276 = vmatprep.subr.bf16.mxu0 0
      %1277 = vmatpush1.bf16.msra.mxu0 0
      %1278 = vmatprep.subr.bf16.mxu0 0
      %1279 = vmatpush1.bf16.msra.mxu0 0
      %1280 = vmatprep.subr.bf16.mxu0 0
      %1281 = vmatpush1.bf16.msra.mxu0 0
      %1282 = vmatprep.mubr.bf16.mxu0 0
      %1283 = vmatmul.mubr.bf16.gmra.mrb[0].mxu0 %v594
      %v1284 = vpop.f32.mrb[0].mxu0
      %v1285 = vadd.f32 %v1220, %v1284
      %v1286 = vpop.f32.mrb[0].mxu0
      %v1287 = vpop.f32.mrb[0].mxu0
      %v1288 = vadd.f32 %v1223, %v1287
      %v1289 = vpop.f32.mrb[0].mxu0
      %1290 = vmatprep.mubr.bf16.mxu0 0
      %1291 = vmatmul.mubr.bf16.gmra.mrb[0].mxu0 %v597
      %v1292 = vpop.f32.mrb[0].mxu0
      %v1293 = vadd.f32 %v1228, %v1292
      %v1294 = vpop.f32.mrb[0].mxu0
      %v1295 = vpop.f32.mrb[0].mxu0
      %v1296 = vadd.f32 %v1231, %v1295
      %v1297 = vpop.f32.mrb[0].mxu0
      %1298 = vmatprep.mubr.bf16.mxu0 0
      %1299 = vmatmul.mubr.bf16.gmra.mrb[0].mxu0 %v606
      %v1300 = vpop.f32.mrb[0].mxu0
      %v1301 = vadd.f32 %v1236, %v1300
      %v1302 = vpop.f32.mrb[0].mxu0
      %v1303 = vpop.f32.mrb[0].mxu0
      %v1304 = vadd.f32 %v1239, %v1303
      %v1305 = vpop.f32.mrb[0].mxu0
      %1306 = vmatprep.mubr.bf16.mxu0 0
      %1307 = vmatmul.mubr.bf16.gmra.mrb[0].mxu0 %v609
      %v1308 = vpop.f32.mrb[0].mxu0
      %v1309 = vadd.f32 %v1244, %v1308
      %v1310 = vpop.f32.mrb[0].mxu0
      %v1311 = vpop.f32.mrb[0].mxu0
      %v1312 = vadd.f32 %v1247, %v1311
      %v1313 = vpop.f32.mrb[0].mxu0
      %1314 = vdwg.mxu0
      %v1317 = vunpack.c.l.b16 %v458
      %v1318 = vunpack.c.l.b16 %v459
      %v1319 = vpack.c.b16 %v1318, %v1317
      %v1321 = vshrl.u32 %v1319, 16
      %v1323 = vshll.u32 %v1319, 16
      %v1325 = vrot.slane %v1323, 1
      %v1326 = vor.u32 %v1321, %v1325
      %v1327 = vrot.slane %v1319, 1
      %v1328 = vunpack.c.l.b16 %v1326
      %v1329 = vunpack.c.l.b16 %v1327
      %v1332 = vunpack.c.l.b16 %v470
      %v1333 = vunpack.c.l.b16 %v471
      %v1334 = vpack.c.b16 %v1333, %v1332
      %v1336 = vshrl.u32 %v1334, 16
      %v1338 = vshll.u32 %v1334, 16
      %v1340 = vrot.slane %v1338, 1
      %v1341 = vor.u32 %v1336, %v1340
      %v1342 = vrot.slane %v1334, 1
      %v1343 = vunpack.c.l.b16 %v1341
      %v1344 = vunpack.c.l.b16 %v1342
      %v1345 = vpack.c.b16 %v1317, %v666
      %v1346 = vpack.c.b16 %v1328, %v677
      %v1347 = vpack.c.b16 %v1329, %v678
      %v1351 = vpack.c.b16 %v1332, %v681
      %v1352 = vpack.c.b16 %v1343, %v692
      %v1353 = vpack.c.b16 %v1344, %v693
      %s1357 = scalar_lea.vmem %s4, 384
      %v1358 = vld [vmem:[%s1357] sm:$0xf]
      %v1359 = vld [vmem:[%s1357 + $0x4] sm:$0xf]
      %v1360 = vld [vmem:[%s1357 + $0x8] sm:$0xf]
      %v1361 = vld [vmem:[%s1357 + $0xc] sm:$0xf]
      %v1362 = vld [vmem:[%s1357 + $0x10] sm:$0xf]
      %v1363 = vld [vmem:[%s1357 + $0x14] sm:$0xf]
      %v1364 = vld [vmem:[%s1357 + $0x18] sm:$0xf]
      %v1365 = vld [vmem:[%s1357 + $0x1c] sm:$0xf]
      %v1366 = vld [vmem:[%s1357 + $0x20] sm:$0xf]
      %v1367 = vld [vmem:[%s1357 + $0x24] sm:$0xf]
      %v1368 = vld [vmem:[%s1357 + $0x28] sm:$0xf]
      %v1369 = vld [vmem:[%s1357 + $0x2c] sm:$0xf]
      %v1370 = vld [vmem:[%s1357 + $0x30] sm:$0xf]
      %v1371 = vld [vmem:[%s1357 + $0x34] sm:$0xf]
      %v1372 = vld [vmem:[%s1357 + $0x38] sm:$0xf]
      %v1373 = vld [vmem:[%s1357 + $0x3c] sm:$0xf]
      %v1374 = vld [vmem:[%s1357 + $0x40] sm:$0xf]
      %v1375 = vld [vmem:[%s1357 + $0x44] sm:$0xf]
      %v1376 = vld [vmem:[%s1357 + $0x48] sm:$0xf]
      %v1377 = vld [vmem:[%s1357 + $0x4c] sm:$0xf]
      %v1378 = vld [vmem:[%s1357 + $0x50] sm:$0xf]
      %v1379 = vld [vmem:[%s1357 + $0x54] sm:$0xf]
      %v1380 = vld [vmem:[%s1357 + $0x58] sm:$0xf]
      %v1381 = vld [vmem:[%s1357 + $0x5c] sm:$0xf]
      %v1382 = vld [vmem:[%s1357 + $0x60] sm:$0xf]
      %v1383 = vld [vmem:[%s1357 + $0x64] sm:$0xf]
      %v1384 = vld [vmem:[%s1357 + $0x68] sm:$0xf]
      %v1385 = vld [vmem:[%s1357 + $0x6c] sm:$0xf]
      %v1386 = vld [vmem:[%s1357 + $0x70] sm:$0xf]
      %v1387 = vld [vmem:[%s1357 + $0x74] sm:$0xf]
      %v1388 = vld [vmem:[%s1357 + $0x78] sm:$0xf]
      %v1389 = vld [vmem:[%s1357 + $0x7c] sm:$0xf]
      %v1390 = vld [vmem:[%s1357 + $0x80] sm:$0xf]
      %v1391 = vld [vmem:[%s1357 + $0x84] sm:$0xf]
      %v1392 = vld [vmem:[%s1357 + $0x88] sm:$0xf]
      %v1393 = vld [vmem:[%s1357 + $0x8c] sm:$0xf]
      %v1394 = vld [vmem:[%s1357 + $0x90] sm:$0xf]
      %v1395 = vld [vmem:[%s1357 + $0x94] sm:$0xf]
      %v1396 = vld [vmem:[%s1357 + $0x98] sm:$0xf]
      %v1397 = vld [vmem:[%s1357 + $0x9c] sm:$0xf]
      %v1398 = vld [vmem:[%s1357 + $0xa0] sm:$0xf]
      %v1399 = vld [vmem:[%s1357 + $0xa4] sm:$0xf]
      %v1400 = vld [vmem:[%s1357 + $0xa8] sm:$0xf]
      %v1401 = vld [vmem:[%s1357 + $0xac] sm:$0xf]
      %v1402 = vld [vmem:[%s1357 + $0xb0] sm:$0xf]
      %v1403 = vld [vmem:[%s1357 + $0xb4] sm:$0xf]
      %v1404 = vld [vmem:[%s1357 + $0xb8] sm:$0xf]
      %v1405 = vld [vmem:[%s1357 + $0xbc] sm:$0xf]
      %v1454 = vunpack.c.l.b16 %v1358
      %v1455 = vunpack.c.l.b16 %v1359
      %v1456 = vunpack.c.l.b16 %v1360
      %v1457 = vunpack.c.l.b16 %v1361
      %v1458 = vunpack.c.l.b16 %v1362
      %v1459 = vunpack.c.l.b16 %v1363
      %v1460 = vunpack.c.l.b16 %v1364
      %v1461 = vunpack.c.l.b16 %v1365
      %v1462 = vunpack.c.l.b16 %v1366
      %v1463 = vunpack.c.l.b16 %v1367
      %v1464 = vunpack.c.l.b16 %v1368
      %v1465 = vunpack.c.l.b16 %v1369
      %v1466 = vunpack.c.l.b16 %v1370
      %v1467 = vunpack.c.l.b16 %v1371
      %v1468 = vunpack.c.l.b16 %v1372
      %v1469 = vunpack.c.l.b16 %v1373
      %v1470 = vunpack.c.l.b16 %v1374
      %v1471 = vunpack.c.l.b16 %v1375
      %v1472 = vunpack.c.l.b16 %v1376
      %v1473 = vunpack.c.l.b16 %v1377
      %v1474 = vunpack.c.l.b16 %v1378
      %v1475 = vunpack.c.l.b16 %v1379
      %v1476 = vunpack.c.l.b16 %v1380
      %v1477 = vunpack.c.l.b16 %v1381
      %v1478 = vunpack.c.l.b16 %v1382
      %v1479 = vunpack.c.l.b16 %v1383
      %v1480 = vunpack.c.l.b16 %v1384
      %v1481 = vunpack.c.l.b16 %v1385
      %v1482 = vunpack.c.l.b16 %v1386
      %v1483 = vunpack.c.l.b16 %v1387
      %v1484 = vunpack.c.l.b16 %v1388
      %v1485 = vunpack.c.l.b16 %v1389
      %v1486 = vunpack.c.l.b16 %v1390
      %v1487 = vunpack.c.l.b16 %v1391
      %v1488 = vunpack.c.l.b16 %v1392
      %v1489 = vunpack.c.l.b16 %v1393
      %v1490 = vunpack.c.l.b16 %v1394
      %v1491 = vunpack.c.l.b16 %v1395
      %v1492 = vunpack.c.l.b16 %v1396
      %v1493 = vunpack.c.l.b16 %v1397
      %v1494 = vunpack.c.l.b16 %v1398
      %v1495 = vunpack.c.l.b16 %v1399
      %v1496 = vunpack.c.l.b16 %v1400
      %v1497 = vunpack.c.l.b16 %v1401
      %v1498 = vunpack.c.l.b16 %v1402
      %v1499 = vunpack.c.l.b16 %v1403
      %v1500 = vunpack.c.l.b16 %v1404
      %v1501 = vunpack.c.l.b16 %v1405
      %v1502 = vpack.c.b16 %v1455, %v1454
      %v1503 = vpack.c.b16 %v1457, %v1456
      %v1504 = vpack.c.b16 %v1459, %v1458
      %v1505 = vpack.c.b16 %v1461, %v1460
      %v1506 = vpack.c.b16 %v1463, %v1462
      %v1507 = vpack.c.b16 %v1465, %v1464
      %v1508 = vpack.c.b16 %v1467, %v1466
      %v1509 = vpack.c.b16 %v1469, %v1468
      %v1510 = vpack.c.b16 %v1471, %v1470
      %v1511 = vpack.c.b16 %v1473, %v1472
      %v1512 = vpack.c.b16 %v1475, %v1474
      %v1513 = vpack.c.b16 %v1477, %v1476
      %v1514 = vpack.c.b16 %v1479, %v1478
      %v1515 = vpack.c.b16 %v1481, %v1480
      %v1516 = vpack.c.b16 %v1483, %v1482
      %v1517 = vpack.c.b16 %v1485, %v1484
      %v1518 = vpack.c.b16 %v1487, %v1486
      %v1519 = vpack.c.b16 %v1489, %v1488
      %v1520 = vpack.c.b16 %v1491, %v1490
      %v1521 = vpack.c.b16 %v1493, %v1492
      %v1522 = vpack.c.b16 %v1495, %v1494
      %v1523 = vpack.c.b16 %v1497, %v1496
      %v1524 = vpack.c.b16 %v1499, %v1498
      %v1525 = vpack.c.b16 %v1501, %v1500
      %1550 = vmatprep.subr.bf16.mxu0 0
      %1551 = vmatpush1.bf16.msra.mxu0 %v1502
      %1552 = vmatprep.subr.bf16.mxu0 0
      %1553 = vmatpush1.bf16.msra.mxu0 %v1503
      %1554 = vmatprep.subr.bf16.mxu0 0
      %1555 = vmatpush1.bf16.msra.mxu0 %v1504
      %1556 = vmatprep.subr.bf16.mxu0 0
      %1557 = vmatpush1.bf16.msra.mxu0 %v1505
      %1558 = vmatprep.subr.bf16.mxu0 0
      %1559 = vmatpush1.bf16.msra.mxu0 %v1506
      %1560 = vmatprep.subr.bf16.mxu0 0
      %1561 = vmatpush1.bf16.msra.mxu0 %v1507
      %1562 = vmatprep.subr.bf16.mxu0 0
      %1563 = vmatpush1.bf16.msra.mxu0 %v1508
      %1564 = vmatprep.subr.bf16.mxu0 0
      %1565 = vmatpush1.bf16.msra.mxu0 %v1509
      %1566 = vmatprep.subr.bf16.mxu0 0
      %1567 = vmatpush1.bf16.msra.mxu0 %v1510
      %1568 = vmatprep.subr.bf16.mxu0 0
      %1569 = vmatpush1.bf16.msra.mxu0 %v1511
      %1570 = vmatprep.subr.bf16.mxu0 0
      %1571 = vmatpush1.bf16.msra.mxu0 %v1512
      %1572 = vmatprep.subr.bf16.mxu0 0
      %1573 = vmatpush1.bf16.msra.mxu0 %v1513
      %1574 = vmatprep.subr.bf16.mxu0 0
      %1575 = vmatpush1.bf16.msra.mxu0 %v1514
      %1576 = vmatprep.subr.bf16.mxu0 0
      %1577 = vmatpush1.bf16.msra.mxu0 %v1515
      %1578 = vmatprep.subr.bf16.mxu0 0
      %1579 = vmatpush1.bf16.msra.mxu0 %v1516
      %1580 = vmatprep.subr.bf16.mxu0 0
      %1581 = vmatpush1.bf16.msra.mxu0 %v1517
      %1582 = vmatprep.mubr.bf16.mxu0 %v596
      %1583 = vmatmul.mubr.bf16.gmra.mrb[0].mxu0 %v595
      %v1584 = vpop.f32.mrb[0].mxu0
      %v1585 = vadd.f32 0.0, %v1584
      %v1586 = vpop.f32.mrb[0].mxu0
      %v1587 = vpop.f32.mrb[0].mxu0
      %v1588 = vadd.f32 0.0, %v1587
      %v1589 = vpop.f32.mrb[0].mxu0
      %1590 = vmatprep.mubr.bf16.mxu0 %v1346
      %1591 = vmatmul.mubr.bf16.gmra.mrb[0].mxu0 %v1345
      %v1592 = vpop.f32.mrb[0].mxu0
      %v1593 = vadd.f32 0.0, %v1592
      %v1594 = vpop.f32.mrb[0].mxu0
      %v1595 = vpop.f32.mrb[0].mxu0
      %v1596 = vadd.f32 0.0, %v1595
      %v1597 = vpop.f32.mrb[0].mxu0
      %1598 = vmatprep.mubr.bf16.mxu0 %v608
      %1599 = vmatmul.mubr.bf16.gmra.mrb[0].mxu0 %v607
      %v1600 = vpop.f32.mrb[0].mxu0
      %v1601 = vadd.f32 0.0, %v1600
      %v1602 = vpop.f32.mrb[0].mxu0
      %v1603 = vpop.f32.mrb[0].mxu0
      %v1604 = vadd.f32 0.0, %v1603
      %v1605 = vpop.f32.mrb[0].mxu0
      %1606 = vmatprep.mubr.bf16.mxu0 %v1352
      %1607 = vmatmul.mubr.bf16.gmra.mrb[0].mxu0 %v1351
      %v1608 = vpop.f32.mrb[0].mxu0
      %v1609 = vadd.f32 0.0, %v1608
      %v1610 = vpop.f32.mrb[0].mxu0
      %v1611 = vpop.f32.mrb[0].mxu0
      %v1612 = vadd.f32 0.0, %v1611
      %v1613 = vpop.f32.mrb[0].mxu0
      %1614 = vdwg.mxu0
      %1615 = vmatprep.subr.bf16.mxu0 0
      %1616 = vmatpush1.bf16.msra.mxu0 %v1518
      %1617 = vmatprep.subr.bf16.mxu0 0
      %1618 = vmatpush1.bf16.msra.mxu0 %v1519
      %1619 = vmatprep.subr.bf16.mxu0 0
      %1620 = vmatpush1.bf16.msra.mxu0 %v1520
      %1621 = vmatprep.subr.bf16.mxu0 0
      %1622 = vmatpush1.bf16.msra.mxu0 %v1521
      %1623 = vmatprep.subr.bf16.mxu0 0
      %1624 = vmatpush1.bf16.msra.mxu0 %v1522
      %1625 = vmatprep.subr.bf16.mxu0 0
      %1626 = vmatpush1.bf16.msra.mxu0 %v1523
      %1627 = vmatprep.subr.bf16.mxu0 0
      %1628 = vmatpush1.bf16.msra.mxu0 %v1524
      %1629 = vmatprep.subr.bf16.mxu0 0
      %1630 = vmatpush1.bf16.msra.mxu0 %v1525
      %1631 = vmatprep.subr.bf16.mxu0 0
      %1632 = vmatpush1.bf16.msra.mxu0 0
      %1633 = vmatprep.subr.bf16.mxu0 0
      %1634 = vmatpush1.bf16.msra.mxu0 0
      %1635 = vmatprep.subr.bf16.mxu0 0
      %1636 = vmatpush1.bf16.msra.mxu0 0
      %1637 = vmatprep.subr.bf16.mxu0 0
      %1638 = vmatpush1.bf16.msra.mxu0 0
      %1639 = vmatprep.subr.bf16.mxu0 0
      %1640 = vmatpush1.bf16.msra.mxu0 0
      %1641 = vmatprep.subr.bf16.mxu0 0
      %1642 = vmatpush1.bf16.msra.mxu0 0
      %1643 = vmatprep.subr.bf16.mxu0 0
      %1644 = vmatpush1.bf16.msra.mxu0 0
      %1645 = vmatprep.subr.bf16.mxu0 0
      %1646 = vmatpush1.bf16.msra.mxu0 0
      %1647 = vmatprep.mubr.bf16.mxu0 0
      %1648 = vmatmul.mubr.bf16.gmra.mrb[0].mxu0 %v597
      %v1649 = vpop.f32.mrb[0].mxu0
      %v1650 = vadd.f32 %v1585, %v1649
      %v1651 = vpop.f32.mrb[0].mxu0
      %v1652 = vpop.f32.mrb[0].mxu0
      %v1653 = vadd.f32 %v1588, %v1652
      %v1654 = vpop.f32.mrb[0].mxu0
      %1655 = vmatprep.mubr.bf16.mxu0 0
      %1656 = vmatmul.mubr.bf16.gmra.mrb[0].mxu0 %v1347
      %v1657 = vpop.f32.mrb[0].mxu0
      %v1658 = vadd.f32 %v1593, %v1657
      %v1659 = vpop.f32.mrb[0].mxu0
      %v1660 = vpop.f32.mrb[0].mxu0
      %v1661 = vadd.f32 %v1596, %v1660
      %v1662 = vpop.f32.mrb[0].mxu0
      %1663 = vmatprep.mubr.bf16.mxu0 0
      %1664 = vmatmul.mubr.bf16.gmra.mrb[0].mxu0 %v609
      %v1665 = vpop.f32.mrb[0].mxu0
      %v1666 = vadd.f32 %v1601, %v1665
      %v1667 = vpop.f32.mrb[0].mxu0
      %v1668 = vpop.f32.mrb[0].mxu0
      %v1669 = vadd.f32 %v1604, %v1668
      %v1670 = vpop.f32.mrb[0].mxu0
      %1671 = vmatprep.mubr.bf16.mxu0 0
      %1672 = vmatmul.mubr.bf16.gmra.mrb[0].mxu0 %v1353
      %v1673 = vpop.f32.mrb[0].mxu0
      %v1674 = vadd.f32 %v1609, %v1673
      %v1675 = vpop.f32.mrb[0].mxu0
      %v1676 = vpop.f32.mrb[0].mxu0
      %v1677 = vadd.f32 %v1612, %v1676
      %v1678 = vpop.f32.mrb[0].mxu0
      %1679 = vdwg.mxu0
      %v1680 = vadd.f32 %v1285, %v1650
      %v1681 = vadd.f32 %v1288, %v1653
      %v1682 = vadd.f32 %v1293, %v1658
      %v1683 = vadd.f32 %v1296, %v1661
      %v1684 = vadd.f32 %v1301, %v1666
      %v1685 = vadd.f32 %v1304, %v1669
      %v1686 = vadd.f32 %v1309, %v1674
      %v1687 = vadd.f32 %v1312, %v1677
      %v1688 = vld [vmem:[%s5] sm:$0x1]
      %v1689 = vld [vmem:[%s6] sm:$0x1]
      %v1691 = vlaneseq
      %v1692 = vshrl.u32 %v1691, 7
      %v1693 = vsub.s32 0, %v1692
      %v1694 = vrot.slane %v1688, %v1693
      %v1696 = vmul.f32 %v1680, %v1694
      %v1697 = vmul.f32 %v1681, %v1694
      %v1698 = vmul.f32 %v1682, %v1694
      %v1699 = vmul.f32 %v1683, %v1694
      %v1701 = vlaneseq
      %v1702 = vshrl.u32 %v1701, 7
      %v1703 = vsub.s32 0, %v1702
      %v1704 = vrot.slane %v1689, %v1703
      %v1706 = vadd.f32 %v1696, %v1704
      %v1707 = vadd.f32 %v1697, %v1704
      %v1708 = vadd.f32 %v1698, %v1704
      %v1709 = vadd.f32 %v1699, %v1704
      %v1710 = vmul.f32 %v1684, %v1694
      %v1711 = vmul.f32 %v1685, %v1694
      %v1712 = vmul.f32 %v1686, %v1694
      %v1713 = vmul.f32 %v1687, %v1694
      %v1714 = vadd.f32 %v1710, %v1704
      %v1715 = vadd.f32 %v1711, %v1704
      %v1716 = vadd.f32 %v1712, %v1704
      %v1717 = vadd.f32 %v1713, %v1704
      %v1718 = vsub.f32 %v1706, %v1714
      %v1719 = vsub.f32 %v1707, %v1715
      %v1720 = vsub.f32 %v1708, %v1716
      %v1721 = vsub.f32 %v1709, %v1717
      %v1722 = vand.u32 2147483647, %v1718
      %v1723 = vand.u32 2147483647, %v1719
      %v1724 = vand.u32 2147483647, %v1720
      %v1725 = vand.u32 2147483647, %v1721
      %v1726 = vadd.f32 %v1722, %v1723
      %v1727 = vadd.f32 %v1726, %v1724
      %v1728 = vadd.f32 %v1727, %v1725
      %v1729 = vrot.slane %v1728, 4
      %v1730 = vadd.f32 %v1728, %v1729
      %v1731 = vrot.slane %v1730, 2
      %v1732 = vadd.f32 %v1730, %v1731
      %v1733 = vrot.slane %v1732, 1
      %v1734 = vadd.f32 %v1732, %v1733
      %1735 = vadd.xlane.f32.xlu0 %v1734
      %v1736 = vpop.xlane.xlu0 %1735
      %vm1737 = vcmask 0
      %1738 = vst.msk [vmem:[%s446] sm:$0x1] %vm1737, %v1736
      %p1739 = scmp.lt.s32.totalorder %s22, 1
      %s1740 = scalar_select %p1739, %s22, 1
      %p1741 = scmp.lt.s32.totalorder %s23, 1
      %s1742 = scalar_select %p1741, %s23, 1
      %s1743 = smul.addr %s1740, 2
      %s1744 = sadd.s32 %s1742, %s1743
      %s1745 = scalar_lea.vmem %s7, %s1744
      // Predicated region
      $region49: #{feature_loss.7} parent=47 // pred_check
        %p1746 = pneg %p229
      $region50: #{feature_loss.7} parent=47 // pred_check_branch
        %1748 = sbr.rel (%p1746) target = $region52
      $region51: #{feature_loss.7} parent=47 // pred_region
        _
      $region52: #{feature_loss.7} parent=47 // pred_fallthru
        _
    $region48: #{feature_loss.7} parent=5 // pred_fallthru
      _
    %p1749 = scmp.le.s32.totalorder 2, %s13
    // Predicated region
    $region53: #{feature_loss.7} parent=5 // pred_check
      %p1750 = pneg %p1749
    $region54: #{feature_loss.7} parent=5 // pred_check_branch
      %1752 = sbr.rel (%p1750) target = $region56
    $region55: #{feature_loss.7} parent=5 // pred_region
      %s1753 = ssub.s32 %s13, 2
      // Predicated region
      $region57: #{feature_loss.7} parent=55 // pred_check
        %p1754 = pneg %p235
      $region58: #{feature_loss.7} parent=55 // pred_check_branch
        %1756 = sbr.rel (%p1754) target = $region60
      $region59: #{feature_loss.7} parent=55 // pred_region
        %p1757 = scmp.lt.s32.totalorder %s24, 1
        %s1758 = scalar_select %p1757, %s24, 1
        %p1759 = scmp.lt.s32.totalorder %s25, 1
        %s1760 = scalar_select %p1759, %s25, 1
        %s1761 = smul.addr %s1758, 2
        %s1762 = sadd.s32 %s1760, %s1761
        %s1763 = scalar_lea.vmem %s7, %s1762
      $region60: #{feature_loss.7} parent=55 // pred_fallthru
        _
    $region56: #{feature_loss.7} parent=5 // pred_fallthru
      _
  $region6: #{feature_loss.7} parent=0 // loop_footer
    %s17 = sadd.s32 1, %s13
  $region7: #{feature_loss.7} parent=0 // loop_footer_branch
    %12 = sbr.rel target = $region3
  $region8: #{feature_loss.7} parent=0 // loop_exit
    _

</llo_original>
